<compile_context>
chip_gen: v7x
topology: tpu7x:2x2x1
jax: 0.10.0
libtpu: 0.0.40
codegen_flags: <defaults>
</compile_context>

<pallas_src>
import numpy as np

import jax
import jax.numpy as jnp
from jax.experimental import pallas as pl
from jax.experimental.pallas import tpu as pltpu


# ---------------------------------------------------------------------------
# Fixed LeNet geometry (32x32x3 input, required by the 16*5*5 flatten)
# ---------------------------------------------------------------------------
_LANES = 128
_H0, _W0, _CIN = 32, 32, 3
_K = 5
_C1, _HO1 = 6, 28
_HP1, _WP1 = 14, 14                  # conv1 pooled H, W
_C2, _HO2 = 16, 10
_HP2, _WP2 = 5, 5                    # conv2 pooled H, W
_ROWS1 = _H0                         # rows/image through stage 1 (28 valid)
_ROWS1P = 16                         # rows/image after pool 1    (14 valid)
_ROWS2P = 8                          # rows/image after pool 2    (5 valid)


# ---------------------------------------------------------------------------
# Host-side (one-time) weight preparation
# ---------------------------------------------------------------------------
def _banded_conv_weights(w, w_in, rows_pad, half_pad):
    """w: (Cout, Cin, k, k) -> (k*rows_pad, 2*half_pad) K-stacked banded GEMM RHS.

    LHS row layout (per shift i): lane l = ci*w_in + x_col, zero-padded to rows_pad.
    Output column layout: ph*half_pad + (co*Wp + wp); the two 128-lane halves are
    the even/odd conv output columns, i.e. the two W-pool candidates.
    """
    w = np.asarray(w, np.float32)
    cout, cin, k, _ = w.shape
    wo = w_in - k + 1
    wp_n = wo // 2
    band = np.zeros((k, cin, w_in, 2, cout, wp_n), np.float32)
    for i in range(k):
        for j in range(k):
            for ph in range(2):
                for wp in range(wp_n):
                    band[i, :, 2 * wp + ph + j, ph, :, wp] = w[:, :, i, j].T
    band = band.reshape(k, cin * w_in, 2, cout * wp_n)
    full = np.zeros((k, rows_pad, 2, half_pad), np.float32)
    full[:, :cin * w_in, :, :cout * wp_n] = band
    return full.reshape(k * rows_pad, 2 * half_pad)


def _pad_row(vec):
    v = np.asarray(vec, np.float32).reshape(-1)
    out = np.zeros((1, _LANES), np.float32)
    out[0, : v.shape[0]] = v
    return jnp.asarray(out)


def prepare_params(params, compute_dtype=jnp.float32):
    """PyTorch-layout params -> padded, kernel-layout params (once, outside jit).

    compute_dtype: dtype of the GEMM operands (weights + staged activations).
    Use jnp.bfloat16 on v6e/v7x for extra MXU throughput; biases stay f32 and
    accumulation is always f32.
    """
    cd = compute_dtype
    kp = {}
    kp["w1b"] = jnp.asarray(_banded_conv_weights(params["conv1_w"], _W0,
                                                 _LANES, _LANES)).astype(cd)   # (640,256)
    kp["b1r"] = _pad_row(np.repeat(np.asarray(params["conv1_b"], np.float32), _WP1))
    kp["w2b"] = jnp.asarray(_banded_conv_weights(params["conv2_w"], _WP1,
                                                 _LANES, _LANES)).astype(cd)   # (640,256)
    kp["b2r"] = _pad_row(np.repeat(np.asarray(params["conv2_b"], np.float32), _WP2))

    # fc1: PyTorch flattens (c, h, w); kernel LHS band h has lane layout (c, w).
    fc1 = np.asarray(params["fc1_w"], np.float32).reshape(120, _C2, _HP2, _WP2)
    fc1 = np.transpose(fc1, (2, 1, 3, 0)).reshape(_HP2, _C2 * _WP2, 120)       # (h, c*w, o)
    full = np.zeros((_HP2, _LANES, _LANES), np.float32)
    full[:, : _C2 * _WP2, :120] = fc1
    kp["fc1w"] = jnp.asarray(full.reshape(_HP2 * _LANES, _LANES)).astype(cd)   # (640,128)
    kp["fc1b"] = _pad_row(params["fc1_b"])

    f2 = np.zeros((_LANES, _LANES), np.float32)
    f2[:120, :84] = np.asarray(params["fc2_w"], np.float32).T
    kp["fc2w"] = jnp.asarray(f2).astype(cd)
    kp["fc2b"] = _pad_row(params["fc2_b"])

    n_classes = int(params["fc3_w"].shape[0])
    assert n_classes <= _LANES, "n_classes must be <= 128"
    f3 = np.zeros((_LANES, _LANES), np.float32)
    f3[:84, :n_classes] = np.asarray(params["fc3_w"], np.float32).T
    kp["fc3w"] = jnp.asarray(f3).astype(cd)
    kp["fc3b"] = _pad_row(params["fc3_b"])
    return kp


# ---------------------------------------------------------------------------
# The fused Pallas kernel (one grid step = TB images)
# ---------------------------------------------------------------------------
def _lenet_fused_kernel(x_ref, w1_ref, b1_ref, w2_ref, b2_ref,
                        fc1w_ref, fc1b_ref, fc2w_ref, fc2b_ref,
                        fc3w_ref, fc3b_ref, out_ref,
                        x_scr, lhs1_scr, c1_scr, p1_scr,
                        lhs2_scr, c2_scr, p2_scr, lhsf_scr):
    f32 = jnp.float32
    tb = out_ref.shape[0]
    m1 = tb * _ROWS1          # conv1 GEMM rows   (28 valid + 4 pad per image)
    m1p = tb * _ROWS1P        # pooled-1 rows     (14 valid + 2 pad per image)
    m2p = tb * _ROWS2P        # pooled-2 rows     ( 5 valid + 3 pad per image)
    cd = x_scr.dtype

    # Stage the input slab with an 8-row zero tail so the kernel-row-shifted reads
    # below never leave the buffer (shifted garbage only feeds invalid pad rows).
    x_scr[pl.ds(0, m1), :] = x_ref[...]
    x_scr[pl.ds(m1, 8), :] = jnp.zeros((8, _LANES), cd)

    # ---- stage 1: conv1(5x5,3->6) + bias + ReLU + 2x2 maxpool, as ONE GEMM ----
    for i in range(_K):                                   # K-fused LHS (M=m1, K=640)
        lhs1_scr[:, i * _LANES:(i + 1) * _LANES] = x_scr[pl.ds(i, m1), :]
    acc1 = jnp.dot(lhs1_scr[...], w1_ref[...], preferred_element_type=f32)  # (m1,256)
    # Column halves are the two W-pool phases (each a full 128-lane slab).
    z1 = jnp.maximum(jnp.maximum(acc1[:, :_LANES], acc1[:, _LANES:]) + b1_ref[...], 0.0)
    c1_scr[...] = z1.astype(cd)
    # H-pool: stride-2 row pairs (32 rows/image keeps even/odd parity global).
    p1 = jnp.maximum(c1_scr[pl.ds(0, m1p, stride=2), :],
                     c1_scr[pl.ds(1, m1p, stride=2), :])                    # (m1p,128)
    p1_scr[pl.ds(0, m1p), :] = p1
    p1_scr[pl.ds(m1p, 8), :] = jnp.zeros((8, _LANES), cd)

    # ---- stage 2: conv2(5x5,6->16) + bias + ReLU + 2x2 maxpool, as ONE GEMM ---
    for i in range(_K):
        lhs2_scr[:, i * _LANES:(i + 1) * _LANES] = p1_scr[pl.ds(i, m1p), :]
    acc2 = jnp.dot(lhs2_scr[...], w2_ref[...], preferred_element_type=f32)  # (m1p,256)
    z2 = jnp.maximum(jnp.maximum(acc2[:, :_LANES], acc2[:, _LANES:]) + b2_ref[...], 0.0)
    c2_scr[...] = z2.astype(cd)
    p2 = jnp.maximum(c2_scr[pl.ds(0, m2p, stride=2), :],
                     c2_scr[pl.ds(1, m2p, stride=2), :])                    # (m2p,128)
    p2_scr[...] = p2

    # ---- fc1 -> ReLU -> fc2 -> ReLU -> fc3, batched over the TB images -------
    # Band h of the fc1 LHS = pooled row h of every image (stride-8 row gather).
    for h in range(_HP2):
        lhsf_scr[:, h * _LANES:(h + 1) * _LANES] = p2_scr[pl.ds(h, tb, stride=_ROWS2P), :]
    h1 = jnp.dot(lhsf_scr[...], fc1w_ref[...], preferred_element_type=f32)  # (tb,128)
    h1 = jnp.maximum(h1 + fc1b_ref[...], 0.0)
    h2 = jnp.dot(h1.astype(cd), fc2w_ref[...], preferred_element_type=f32)
    h2 = jnp.maximum(h2 + fc2b_ref[...], 0.0)                               # (tb,128)
    logits = jnp.dot(h2.astype(cd), fc3w_ref[...], preferred_element_type=f32)
    out_ref[...] = (logits + fc3b_ref[...]).astype(out_ref.dtype)


def _resident_spec(arr):
    """Whole-array block, re-used (not re-DMA'd) across the batch grid."""
    zeros = (0,) * arr.ndim
    return pl.BlockSpec(arr.shape, lambda b, _z=zeros: _z)


def simple_conv3d_forward(x_nchw, kp, *, n_classes, block_batch=8):
    if n_classes > _LANES:
        raise ValueError("n_classes must be <= 128")
    if block_batch % 8 != 0:
        raise ValueError("block_batch must be a multiple of 8")
    cd = kp["w1b"].dtype
    tb = block_batch
    B = x_nchw.shape[0]
    b_pad = ((B + tb - 1) // tb) * tb
    if b_pad != B:
        x_nchw = jnp.pad(x_nchw, ((0, b_pad - B), (0, 0), (0, 0), (0, 0)))

    # NCHW -> lane-dense (B*H, Cin*W) slab, zero-padded to 128 lanes.
    # TODO(synk): accept a producer-side (B*H, 128) layout to skip this relayout.
    x2d = jnp.transpose(x_nchw, (0, 2, 1, 3)).reshape(b_pad, _H0, _CIN * _W0)
    x2d = jnp.pad(x2d, ((0, 0), (0, 0), (0, _LANES - _CIN * _W0)))
    x2d = x2d.reshape(b_pad * _H0, _LANES).astype(cd)

    n_steps = b_pad // tb
    itemsize = np.dtype(cd).itemsize
    flops = 2 * b_pad * (_ROWS1 * (_K * _LANES) * (2 * _LANES)
                         + _ROWS1P * (_K * _LANES) * (2 * _LANES)
                         + (_HP2 * _LANES) * _LANES + 2 * _LANES * _LANES)
    w_bytes = sum(int(v.size) * np.dtype(v.dtype).itemsize for v in kp.values())
    bytes_accessed = int(x2d.size) * itemsize + b_pad * _LANES * 4 + w_bytes

    out = pl.pallas_call(
        _lenet_fused_kernel,
        out_shape=jax.ShapeDtypeStruct((b_pad, _LANES), jnp.float32),
        grid_spec=pltpu.PrefetchScalarGridSpec(
            num_scalar_prefetch=0,
            grid=(n_steps,),
            in_specs=[
                pl.BlockSpec((tb * _H0, _LANES), lambda b: (b, 0)),
                _resident_spec(kp["w1b"]), _resident_spec(kp["b1r"]),
                _resident_spec(kp["w2b"]), _resident_spec(kp["b2r"]),
                _resident_spec(kp["fc1w"]), _resident_spec(kp["fc1b"]),
                _resident_spec(kp["fc2w"]), _resident_spec(kp["fc2b"]),
                _resident_spec(kp["fc3w"]), _resident_spec(kp["fc3b"]),
            ],
            out_specs=pl.BlockSpec((tb, _LANES), lambda b: (b, 0)),
            scratch_shapes=[
                pltpu.VMEM((tb * _ROWS1 + 8, _LANES), cd),    # x_scr   (input + pad)
                pltpu.VMEM((tb * _ROWS1, _K * _LANES), cd),   # lhs1_scr (K-fused)
                pltpu.VMEM((tb * _ROWS1, _LANES), cd),        # c1_scr  (conv1+ReLU)
                pltpu.VMEM((tb * _ROWS1P + 8, _LANES), cd),   # p1_scr  (pool1 + pad)
                pltpu.VMEM((tb * _ROWS1P, _K * _LANES), cd),  # lhs2_scr
                pltpu.VMEM((tb * _ROWS1P, _LANES), cd),       # c2_scr
                pltpu.VMEM((tb * _ROWS2P, _LANES), cd),       # p2_scr  (pool2)
                pltpu.VMEM((tb, _HP2 * _LANES), cd),          # lhsf_scr (fc1 LHS)
            ]),
        compiler_params=pltpu.CompilerParams(
            dimension_semantics=("parallel",),
            vmem_limit_bytes=32 * 1024 * 1024),
        cost_estimate=pl.CostEstimate(flops=int(flops), transcendentals=0,
                                      bytes_accessed=int(bytes_accessed)),
    )(x2d, kp["w1b"], kp["b1r"], kp["w2b"], kp["b2r"],
      kp["fc1w"], kp["fc1b"], kp["fc2w"], kp["fc2b"], kp["fc3w"], kp["fc3b"])
    return out[:B, :n_classes]


# ---------------------------------------------------------------------------
# Pure-JAX reference (mirrors the PyTorch module) for the correctness check
# ---------------------------------------------------------------------------
def reference_forward(x, params):
    hi = jax.lax.Precision.HIGHEST

    def conv(inp, w):
        return jax.lax.conv_general_dilated(
            inp, w, window_strides=(1, 1), padding="VALID",
            dimension_numbers=("NCHW", "OIHW", "NCHW"), precision=hi)

    def pool(t):
        return jax.lax.reduce_window(t, -jnp.inf, jax.lax.max,
                                     (1, 1, 2, 2), (1, 1, 2, 2), "VALID")

    h = pool(jax.nn.relu(conv(x, params["conv1_w"])
                         + params["conv1_b"][None, :, None, None]))
    h = pool(jax.nn.relu(conv(h, params["conv2_w"])
                         + params["conv2_b"][None, :, None, None]))
    h = h.reshape(h.shape[0], -1)
    h = jax.nn.relu(jnp.dot(h, params["fc1_w"].T, precision=hi) + params["fc1_b"])
    h = jax.nn.relu(jnp.dot(h, params["fc2_w"].T, precision=hi) + params["fc2_b"])
    return jnp.dot(h, params["fc3_w"].T, precision=hi) + params["fc3_b"]


def init_params(key, n_classes):
    ks = jax.random.split(key, 10)

    def u(k, shape, fan_in):
        bound = 1.0 / float(np.sqrt(fan_in))
        return jax.random.uniform(k, shape, jnp.float32, -bound, bound)

    return {
        "conv1_w": u(ks[0], (6, 3, 5, 5), 3 * 25),
        "conv1_b": u(ks[1], (6,), 3 * 25),
        "conv2_w": u(ks[2], (16, 6, 5, 5), 6 * 25),
        "conv2_b": u(ks[3], (16,), 6 * 25),
        "fc1_w": u(ks[4], (120, 400), 400),
        "fc1_b": u(ks[5], (120,), 400),
        "fc2_w": u(ks[6], (84, 120), 120),
        "fc2_b": u(ks[7], (84,), 120),
        "fc3_w": u(ks[8], (n_classes, 84), 84),
        "fc3_b": u(ks[9], (n_classes,), 84),
    }


if __name__ == "__main__":
    key = jax.random.PRNGKey(0)
    k_x, k_p = jax.random.split(key)

    B, n_classes = 16, 10
    # 32x32 spatial is required so the flatten to 16*5*5 = 400 holds.
    x = jax.random.normal(k_x, (B, 3, 32, 32), dtype=jnp.float32)
    params = init_params(k_p, n_classes)
    # One-time kernel-layout weight prep (pass compute_dtype=jnp.bfloat16 on v6e/v7x).
    kparams = prepare_params(params)

    fwd = jax.jit(simple_conv3d_forward, static_argnames=("n_classes", "block_batch"))
    out = fwd(x, kparams, n_classes=n_classes, block_batch=8)
    out = jax.block_until_ready(out)

    assert out.shape == (B, n_classes), out.shape
    assert bool(jnp.all(jnp.isfinite(out)))

    ref = reference_forward(x, params)
    max_err = float(jnp.max(jnp.abs(out - ref)))
    assert max_err < 5e-2, f"mismatch vs reference: max abs err = {max_err}"

    print("KERNEL_OK")
</pallas_src>

<mosaic_0001>
module attributes {stable_mosaic.version = 11 : i64} {
  func.func @_lenet_fused_kernel(%arg0: i32, %arg1: memref<256x128xf32, #tpu.memory_space<vmem>>, %arg2: memref<640x256xf32, #tpu.memory_space<vmem>>, %arg3: memref<1x128xf32, #tpu.memory_space<vmem>>, %arg4: memref<640x256xf32, #tpu.memory_space<vmem>>, %arg5: memref<1x128xf32, #tpu.memory_space<vmem>>, %arg6: memref<640x128xf32, #tpu.memory_space<vmem>>, %arg7: memref<1x128xf32, #tpu.memory_space<vmem>>, %arg8: memref<128x128xf32, #tpu.memory_space<vmem>>, %arg9: memref<1x128xf32, #tpu.memory_space<vmem>>, %arg10: memref<128x128xf32, #tpu.memory_space<vmem>>, %arg11: memref<1x128xf32, #tpu.memory_space<vmem>>, %arg12: memref<8x128xf32, #tpu.memory_space<vmem>>, %arg13: memref<264x128xf32, #tpu.memory_space<vmem>>, %arg14: memref<256x640xf32, #tpu.memory_space<vmem>>, %arg15: memref<256x128xf32, #tpu.memory_space<vmem>>, %arg16: memref<136x128xf32, #tpu.memory_space<vmem>>, %arg17: memref<128x640xf32, #tpu.memory_space<vmem>>, %arg18: memref<128x128xf32, #tpu.memory_space<vmem>>, %arg19: memref<64x128xf32, #tpu.memory_space<vmem>>, %arg20: memref<8x640xf32, #tpu.memory_space<vmem>>) attributes {dimension_semantics = [#tpu.dimension_semantics<parallel>], iteration_bounds = array<i64: 2>, scalar_prefetch = 0 : i64, scratch_operands = 8 : i64, tpu.core_type = #tpu.core_type<tc>, window_params = [{transform_indices = @transform_0, window_bounds = array<i64: 256, 128>}, {pipeline_mode = #tpu.pipeline_mode<synchronous>, transform_indices = @transform_1, window_bounds = array<i64: 640, 256>}, {pipeline_mode = #tpu.pipeline_mode<synchronous>, transform_indices = @transform_2, window_bounds = array<i64: 1, 128>}, {pipeline_mode = #tpu.pipeline_mode<synchronous>, transform_indices = @transform_3, window_bounds = array<i64: 640, 256>}, {pipeline_mode = #tpu.pipeline_mode<synchronous>, transform_indices = @transform_4, window_bounds = array<i64: 1, 128>}, {pipeline_mode = #tpu.pipeline_mode<synchronous>, transform_indices = @transform_5, window_bounds = array<i64: 640, 128>}, {pipeline_mode = #tpu.pipeline_mode<synchronous>, transform_indices = @transform_6, window_bounds = array<i64: 1, 128>}, {pipeline_mode = #tpu.pipeline_mode<synchronous>, transform_indices = @transform_7, window_bounds = array<i64: 128, 128>}, {pipeline_mode = #tpu.pipeline_mode<synchronous>, transform_indices = @transform_8, window_bounds = array<i64: 1, 128>}, {pipeline_mode = #tpu.pipeline_mode<synchronous>, transform_indices = @transform_9, window_bounds = array<i64: 128, 128>}, {pipeline_mode = #tpu.pipeline_mode<synchronous>, transform_indices = @transform_10, window_bounds = array<i64: 1, 128>}, {transform_indices = @transform_11, window_bounds = array<i64: 8, 128>}]} {
    %c0 = arith.constant 0 : index
    %c0_0 = arith.constant 0 : index
    %0 = vector.load %arg1[%c0, %c0_0] : memref<256x128xf32, #tpu.memory_space<vmem>>, vector<256x128xf32>
    %c0_1 = arith.constant 0 : index
    %c0_2 = arith.constant 0 : index
    %1 = vector.load %arg13[%c0_1, %c0_2] : memref<264x128xf32, #tpu.memory_space<vmem>>, vector<256x128xf32>
    tpu.vector_store %arg13[%c0_1, %c0_2], %0 {strides = array<i32>} : memref<264x128xf32, #tpu.memory_space<vmem>>, vector<256x128xf32>,
    %cst = arith.constant 0.000000e+00 : f32
    %2 = vector.broadcast %cst : f32 to vector<8x128xf32>
    %c256 = arith.constant 256 : index
    %c0_3 = arith.constant 0 : index
    %3 = vector.load %arg13[%c256, %c0_3] : memref<264x128xf32, #tpu.memory_space<vmem>>, vector<8x128xf32>
    tpu.vector_store %arg13[%c256, %c0_3], %2 {strides = array<i32>} : memref<264x128xf32, #tpu.memory_space<vmem>>, vector<8x128xf32>,
    %c0_4 = arith.constant 0 : index
    %c0_5 = arith.constant 0 : index
    %4 = vector.load %arg13[%c0_4, %c0_5] : memref<264x128xf32, #tpu.memory_space<vmem>>, vector<256x128xf32>
    %c0_6 = arith.constant 0 : index
    %c0_7 = arith.constant 0 : index
    %5 = vector.load %arg14[%c0_6, %c0_7] : memref<256x640xf32, #tpu.memory_space<vmem>>, vector<256x128xf32>
    tpu.vector_store %arg14[%c0_6, %c0_7], %4 {strides = array<i32>} : memref<256x640xf32, #tpu.memory_space<vmem>>, vector<256x128xf32>,
    %c1 = arith.constant 1 : index
    %c0_8 = arith.constant 0 : index
    %6 = vector.load %arg13[%c1, %c0_8] : memref<264x128xf32, #tpu.memory_space<vmem>>, vector<256x128xf32>
    %c0_9 = arith.constant 0 : index
    %c128 = arith.constant 128 : index
    %7 = vector.load %arg14[%c0_9, %c128] : memref<256x640xf32, #tpu.memory_space<vmem>>, vector<256x128xf32>
    tpu.vector_store %arg14[%c0_9, %c128], %6 {strides = array<i32>} : memref<256x640xf32, #tpu.memory_space<vmem>>, vector<256x128xf32>,
    %c2 = arith.constant 2 : index
    %c0_10 = arith.constant 0 : index
    %8 = vector.load %arg13[%c2, %c0_10] : memref<264x128xf32, #tpu.memory_space<vmem>>, vector<256x128xf32>
    %c0_11 = arith.constant 0 : index
    %c256_12 = arith.constant 256 : index
    %9 = vector.load %arg14[%c0_11, %c256_12] : memref<256x640xf32, #tpu.memory_space<vmem>>, vector<256x128xf32>
    tpu.vector_store %arg14[%c0_11, %c256_12], %8 {strides = array<i32>} : memref<256x640xf32, #tpu.memory_space<vmem>>, vector<256x128xf32>,
    %c3 = arith.constant 3 : index
    %c0_13 = arith.constant 0 : index
    %10 = vector.load %arg13[%c3, %c0_13] : memref<264x128xf32, #tpu.memory_space<vmem>>, vector<256x128xf32>
    %c0_14 = arith.constant 0 : index
    %c384 = arith.constant 384 : index
    %11 = vector.load %arg14[%c0_14, %c384] : memref<256x640xf32, #tpu.memory_space<vmem>>, vector<256x128xf32>
    tpu.vector_store %arg14[%c0_14, %c384], %10 {strides = array<i32>} : memref<256x640xf32, #tpu.memory_space<vmem>>, vector<256x128xf32>,
    %c4 = arith.constant 4 : index
    %c0_15 = arith.constant 0 : index
    %12 = vector.load %arg13[%c4, %c0_15] : memref<264x128xf32, #tpu.memory_space<vmem>>, vector<256x128xf32>
    %c0_16 = arith.constant 0 : index
    %c512 = arith.constant 512 : index
    %13 = vector.load %arg14[%c0_16, %c512] : memref<256x640xf32, #tpu.memory_space<vmem>>, vector<256x128xf32>
    tpu.vector_store %arg14[%c0_16, %c512], %12 {strides = array<i32>} : memref<256x640xf32, #tpu.memory_space<vmem>>, vector<256x128xf32>,
    %c0_17 = arith.constant 0 : index
    %c0_18 = arith.constant 0 : index
    %14 = vector.load %arg14[%c0_17, %c0_18] : memref<256x640xf32, #tpu.memory_space<vmem>>, vector<256x640xf32>
    %c0_19 = arith.constant 0 : index
    %c0_20 = arith.constant 0 : index
    %15 = vector.load %arg2[%c0_19, %c0_20] : memref<640x256xf32, #tpu.memory_space<vmem>>, vector<640x256xf32>
    %cst_21 = arith.constant dense<0.000000e+00> : vector<256x256xf32>
    %16 = tpu.matmul %14, %15, %cst_21 {dimension_numbers = #tpu.dot_dimension_numbers<[1], [0], [0], [1], [0, 0, 1, 1], [], []>} : vector<256x640xf32>, vector<640x256xf32>, vector<256x256xf32> -> vector<256x256xf32>
    %17 = vector.extract_strided_slice %16 {offsets = [0, 0], sizes = [256, 128], strides = [1, 1]} : vector<256x256xf32> to vector<256x128xf32>
    %18 = vector.extract_strided_slice %16 {offsets = [0, 128], sizes = [256, 128], strides = [1, 1]} : vector<256x256xf32> to vector<256x128xf32>
    %19 = arith.maximumf %17, %18 : vector<256x128xf32>
    %c0_22 = arith.constant 0 : index
    %c0_23 = arith.constant 0 : index
    %20 = vector.load %arg3[%c0_22, %c0_23] : memref<1x128xf32, #tpu.memory_space<vmem>>, vector<1x128xf32>
    %21 = vector.broadcast %20 : vector<1x128xf32> to vector<256x128xf32>
    %22 = arith.addf %19, %21 : vector<256x128xf32>
    %cst_24 = arith.constant 0.000000e+00 : f32
    %23 = vector.broadcast %cst_24 : f32 to vector<256x128xf32>
    %24 = arith.maximumf %22, %23 : vector<256x128xf32>
    %c0_25 = arith.constant 0 : index
    %c0_26 = arith.constant 0 : index
    %25 = vector.load %arg15[%c0_25, %c0_26] : memref<256x128xf32, #tpu.memory_space<vmem>>, vector<256x128xf32>
    tpu.vector_store %arg15[%c0_25, %c0_26], %24 {strides = array<i32>} : memref<256x128xf32, #tpu.memory_space<vmem>>, vector<256x128xf32>,
    %c0_27 = arith.constant 0 : index
    %c0_28 = arith.constant 0 : index
    %26 = tpu.strided_load %arg15[%c0_27, %c0_28] {strides = array<i32: 2, 1>} : memref<256x128xf32, #tpu.memory_space<vmem>>, vector<128x128xf32>
    %c1_29 = arith.constant 1 : index
    %c0_30 = arith.constant 0 : index
    %27 = tpu.strided_load %arg15[%c1_29, %c0_30] {strides = array<i32: 2, 1>} : memref<256x128xf32, #tpu.memory_space<vmem>>, vector<128x128xf32>
    %28 = arith.maximumf %26, %27 : vector<128x128xf32>
    %c0_31 = arith.constant 0 : index
    %c0_32 = arith.constant 0 : index
    %29 = vector.load %arg16[%c0_31, %c0_32] : memref<136x128xf32, #tpu.memory_space<vmem>>, vector<128x128xf32>
    tpu.vector_store %arg16[%c0_31, %c0_32], %28 {strides = array<i32>} : memref<136x128xf32, #tpu.memory_space<vmem>>, vector<128x128xf32>,
    %cst_33 = arith.constant 0.000000e+00 : f32
    %30 = vector.broadcast %cst_33 : f32 to vector<8x128xf32>
    %c128_34 = arith.constant 128 : index
    %c0_35 = arith.constant 0 : index
    %31 = vector.load %arg16[%c128_34, %c0_35] : memref<136x128xf32, #tpu.memory_space<vmem>>, vector<8x128xf32>
    tpu.vector_store %arg16[%c128_34, %c0_35], %30 {strides = array<i32>} : memref<136x128xf32, #tpu.memory_space<vmem>>, vector<8x128xf32>,
    %c0_36 = arith.constant 0 : index
    %c0_37 = arith.constant 0 : index
    %32 = vector.load %arg16[%c0_36, %c0_37] : memref<136x128xf32, #tpu.memory_space<vmem>>, vector<128x128xf32>
    %c0_38 = arith.constant 0 : index
    %c0_39 = arith.constant 0 : index
    %33 = vector.load %arg17[%c0_38, %c0_39] : memref<128x640xf32, #tpu.memory_space<vmem>>, vector<128x128xf32>
    tpu.vector_store %arg17[%c0_38, %c0_39], %32 {strides = array<i32>} : memref<128x640xf32, #tpu.memory_space<vmem>>, vector<128x128xf32>,
    %c1_40 = arith.constant 1 : index
    %c0_41 = arith.constant 0 : index
    %34 = vector.load %arg16[%c1_40, %c0_41] : memref<136x128xf32, #tpu.memory_space<vmem>>, vector<128x128xf32>
    %c0_42 = arith.constant 0 : index
    %c128_43 = arith.constant 128 : index
    %35 = vector.load %arg17[%c0_42, %c128_43] : memref<128x640xf32, #tpu.memory_space<vmem>>, vector<128x128xf32>
    tpu.vector_store %arg17[%c0_42, %c128_43], %34 {strides = array<i32>} : memref<128x640xf32, #tpu.memory_space<vmem>>, vector<128x128xf32>,
    %c2_44 = arith.constant 2 : index
    %c0_45 = arith.constant 0 : index
    %36 = vector.load %arg16[%c2_44, %c0_45] : memref<136x128xf32, #tpu.memory_space<vmem>>, vector<128x128xf32>
    %c0_46 = arith.constant 0 : index
    %c256_47 = arith.constant 256 : index
    %37 = vector.load %arg17[%c0_46, %c256_47] : memref<128x640xf32, #tpu.memory_space<vmem>>, vector<128x128xf32>
    tpu.vector_store %arg17[%c0_46, %c256_47], %36 {strides = array<i32>} : memref<128x640xf32, #tpu.memory_space<vmem>>, vector<128x128xf32>,
    %c3_48 = arith.constant 3 : index
    %c0_49 = arith.constant 0 : index
    %38 = vector.load %arg16[%c3_48, %c0_49] : memref<136x128xf32, #tpu.memory_space<vmem>>, vector<128x128xf32>
    %c0_50 = arith.constant 0 : index
    %c384_51 = arith.constant 384 : index
    %39 = vector.load %arg17[%c0_50, %c384_51] : memref<128x640xf32, #tpu.memory_space<vmem>>, vector<128x128xf32>
    tpu.vector_store %arg17[%c0_50, %c384_51], %38 {strides = array<i32>} : memref<128x640xf32, #tpu.memory_space<vmem>>, vector<128x128xf32>,
    %c4_52 = arith.constant 4 : index
    %c0_53 = arith.constant 0 : index
    %40 = vector.load %arg16[%c4_52, %c0_53] : memref<136x128xf32, #tpu.memory_space<vmem>>, vector<128x128xf32>
    %c0_54 = arith.constant 0 : index
    %c512_55 = arith.constant 512 : index
    %41 = vector.load %arg17[%c0_54, %c512_55] : memref<128x640xf32, #tpu.memory_space<vmem>>, vector<128x128xf32>
    tpu.vector_store %arg17[%c0_54, %c512_55], %40 {strides = array<i32>} : memref<128x640xf32, #tpu.memory_space<vmem>>, vector<128x128xf32>,
    %c0_56 = arith.constant 0 : index
    %c0_57 = arith.constant 0 : index
    %42 = vector.load %arg17[%c0_56, %c0_57] : memref<128x640xf32, #tpu.memory_space<vmem>>, vector<128x640xf32>
    %c0_58 = arith.constant 0 : index
    %c0_59 = arith.constant 0 : index
    %43 = vector.load %arg4[%c0_58, %c0_59] : memref<640x256xf32, #tpu.memory_space<vmem>>, vector<640x256xf32>
    %cst_60 = arith.constant dense<0.000000e+00> : vector<128x256xf32>
    %44 = tpu.matmul %42, %43, %cst_60 {dimension_numbers = #tpu.dot_dimension_numbers<[1], [0], [0], [1], [0, 0, 1, 1], [], []>} : vector<128x640xf32>, vector<640x256xf32>, vector<128x256xf32> -> vector<128x256xf32>
    %45 = vector.extract_strided_slice %44 {offsets = [0, 0], sizes = [128, 128], strides = [1, 1]} : vector<128x256xf32> to vector<128x128xf32>
    %46 = vector.extract_strided_slice %44 {offsets = [0, 128], sizes = [128, 128], strides = [1, 1]} : vector<128x256xf32> to vector<128x128xf32>
    %47 = arith.maximumf %45, %46 : vector<128x128xf32>
    %c0_61 = arith.constant 0 : index
    %c0_62 = arith.constant 0 : index
    %48 = vector.load %arg5[%c0_61, %c0_62] : memref<1x128xf32, #tpu.memory_space<vmem>>, vector<1x128xf32>
    %49 = vector.broadcast %48 : vector<1x128xf32> to vector<128x128xf32>
    %50 = arith.addf %47, %49 : vector<128x128xf32>
    %cst_63 = arith.constant 0.000000e+00 : f32
    %51 = vector.broadcast %cst_63 : f32 to vector<128x128xf32>
    %52 = arith.maximumf %50, %51 : vector<128x128xf32>
    %c0_64 = arith.constant 0 : index
    %c0_65 = arith.constant 0 : index
    %53 = vector.load %arg18[%c0_64, %c0_65] : memref<128x128xf32, #tpu.memory_space<vmem>>, vector<128x128xf32>
    tpu.vector_store %arg18[%c0_64, %c0_65], %52 {strides = array<i32>} : memref<128x128xf32, #tpu.memory_space<vmem>>, vector<128x128xf32>,
    %c0_66 = arith.constant 0 : index
    %c0_67 = arith.constant 0 : index
    %54 = tpu.strided_load %arg18[%c0_66, %c0_67] {strides = array<i32: 2, 1>} : memref<128x128xf32, #tpu.memory_space<vmem>>, vector<64x128xf32>
    %c1_68 = arith.constant 1 : index
    %c0_69 = arith.constant 0 : index
    %55 = tpu.strided_load %arg18[%c1_68, %c0_69] {strides = array<i32: 2, 1>} : memref<128x128xf32, #tpu.memory_space<vmem>>, vector<64x128xf32>
    %56 = arith.maximumf %54, %55 : vector<64x128xf32>
    %c0_70 = arith.constant 0 : index
    %c0_71 = arith.constant 0 : index
    %57 = vector.load %arg19[%c0_70, %c0_71] : memref<64x128xf32, #tpu.memory_space<vmem>>, vector<64x128xf32>
    tpu.vector_store %arg19[%c0_70, %c0_71], %56 {strides = array<i32>} : memref<64x128xf32, #tpu.memory_space<vmem>>, vector<64x128xf32>,
    %c0_72 = arith.constant 0 : index
    %c0_73 = arith.constant 0 : index
    %58 = tpu.strided_load %arg19[%c0_72, %c0_73] {strides = array<i32: 8, 1>} : memref<64x128xf32, #tpu.memory_space<vmem>>, vector<8x128xf32>
    %c0_74 = arith.constant 0 : index
    %c0_75 = arith.constant 0 : index
    %59 = vector.load %arg20[%c0_74, %c0_75] : memref<8x640xf32, #tpu.memory_space<vmem>>, vector<8x128xf32>
    tpu.vector_store %arg20[%c0_74, %c0_75], %58 {strides = array<i32>} : memref<8x640xf32, #tpu.memory_space<vmem>>, vector<8x128xf32>,
    %c1_76 = arith.constant 1 : index
    %c0_77 = arith.constant 0 : index
    %60 = tpu.strided_load %arg19[%c1_76, %c0_77] {strides = array<i32: 8, 1>} : memref<64x128xf32, #tpu.memory_space<vmem>>, vector<8x128xf32>
    %c0_78 = arith.constant 0 : index
    %c128_79 = arith.constant 128 : index
    %61 = vector.load %arg20[%c0_78, %c128_79] : memref<8x640xf32, #tpu.memory_space<vmem>>, vector<8x128xf32>
    tpu.vector_store %arg20[%c0_78, %c128_79], %60 {strides = array<i32>} : memref<8x640xf32, #tpu.memory_space<vmem>>, vector<8x128xf32>,
    %c2_80 = arith.constant 2 : index
    %c0_81 = arith.constant 0 : index
    %62 = tpu.strided_load %arg19[%c2_80, %c0_81] {strides = array<i32: 8, 1>} : memref<64x128xf32, #tpu.memory_space<vmem>>, vector<8x128xf32>
    %c0_82 = arith.constant 0 : index
    %c256_83 = arith.constant 256 : index
    %63 = vector.load %arg20[%c0_82, %c256_83] : memref<8x640xf32, #tpu.memory_space<vmem>>, vector<8x128xf32>
    tpu.vector_store %arg20[%c0_82, %c256_83], %62 {strides = array<i32>} : memref<8x640xf32, #tpu.memory_space<vmem>>, vector<8x128xf32>,
    %c3_84 = arith.constant 3 : index
    %c0_85 = arith.constant 0 : index
    %64 = tpu.strided_load %arg19[%c3_84, %c0_85] {strides = array<i32: 8, 1>} : memref<64x128xf32, #tpu.memory_space<vmem>>, vector<8x128xf32>
    %c0_86 = arith.constant 0 : index
    %c384_87 = arith.constant 384 : index
    %65 = vector.load %arg20[%c0_86, %c384_87] : memref<8x640xf32, #tpu.memory_space<vmem>>, vector<8x128xf32>
    tpu.vector_store %arg20[%c0_86, %c384_87], %64 {strides = array<i32>} : memref<8x640xf32, #tpu.memory_space<vmem>>, vector<8x128xf32>,
    %c4_88 = arith.constant 4 : index
    %c0_89 = arith.constant 0 : index
    %66 = tpu.strided_load %arg19[%c4_88, %c0_89] {strides = array<i32: 8, 1>} : memref<64x128xf32, #tpu.memory_space<vmem>>, vector<8x128xf32>
    %c0_90 = arith.constant 0 : index
    %c512_91 = arith.constant 512 : index
    %67 = vector.load %arg20[%c0_90, %c512_91] : memref<8x640xf32, #tpu.memory_space<vmem>>, vector<8x128xf32>
    tpu.vector_store %arg20[%c0_90, %c512_91], %66 {strides = array<i32>} : memref<8x640xf32, #tpu.memory_space<vmem>>, vector<8x128xf32>,
    %c0_92 = arith.constant 0 : index
    %c0_93 = arith.constant 0 : index
    %68 = vector.load %arg20[%c0_92, %c0_93] : memref<8x640xf32, #tpu.memory_space<vmem>>, vector<8x640xf32>
    %c0_94 = arith.constant 0 : index
    %c0_95 = arith.constant 0 : index
    %69 = vector.load %arg6[%c0_94, %c0_95] : memref<640x128xf32, #tpu.memory_space<vmem>>, vector<640x128xf32>
    %cst_96 = arith.constant dense<0.000000e+00> : vector<8x128xf32>
    %70 = tpu.matmul %68, %69, %cst_96 {dimension_numbers = #tpu.dot_dimension_numbers<[1], [0], [0], [1], [0, 0, 1, 1], [], []>} : vector<8x640xf32>, vector<640x128xf32>, vector<8x128xf32> -> vector<8x128xf32>
    %c0_97 = arith.constant 0 : index
    %c0_98 = arith.constant 0 : index
    %71 = vector.load %arg7[%c0_97, %c0_98] : memref<1x128xf32, #tpu.memory_space<vmem>>, vector<1x128xf32>
    %72 = vector.broadcast %71 : vector<1x128xf32> to vector<8x128xf32>
    %73 = arith.addf %70, %72 : vector<8x128xf32>
    %cst_99 = arith.constant 0.000000e+00 : f32
    %74 = vector.broadcast %cst_99 : f32 to vector<8x128xf32>
    %75 = arith.maximumf %73, %74 : vector<8x128xf32>
    %c0_100 = arith.constant 0 : index
    %c0_101 = arith.constant 0 : index
    %76 = vector.load %arg8[%c0_100, %c0_101] : memref<128x128xf32, #tpu.memory_space<vmem>>, vector<128x128xf32>
    %cst_102 = arith.constant dense<0.000000e+00> : vector<8x128xf32>
    %77 = tpu.matmul %75, %76, %cst_102 {dimension_numbers = #tpu.dot_dimension_numbers<[1], [0], [0], [1], [0, 0, 1, 1], [], []>} : vector<8x128xf32>, vector<128x128xf32>, vector<8x128xf32> -> vector<8x128xf32>
    %c0_103 = arith.constant 0 : index
    %c0_104 = arith.constant 0 : index
    %78 = vector.load %arg9[%c0_103, %c0_104] : memref<1x128xf32, #tpu.memory_space<vmem>>, vector<1x128xf32>
    %79 = vector.broadcast %78 : vector<1x128xf32> to vector<8x128xf32>
    %80 = arith.addf %77, %79 : vector<8x128xf32>
    %cst_105 = arith.constant 0.000000e+00 : f32
    %81 = vector.broadcast %cst_105 : f32 to vector<8x128xf32>
    %82 = arith.maximumf %80, %81 : vector<8x128xf32>
    %c0_106 = arith.constant 0 : index
    %c0_107 = arith.constant 0 : index
    %83 = vector.load %arg10[%c0_106, %c0_107] : memref<128x128xf32, #tpu.memory_space<vmem>>, vector<128x128xf32>
    %cst_108 = arith.constant dense<0.000000e+00> : vector<8x128xf32>
    %84 = tpu.matmul %82, %83, %cst_108 {dimension_numbers = #tpu.dot_dimension_numbers<[1], [0], [0], [1], [0, 0, 1, 1], [], []>} : vector<8x128xf32>, vector<128x128xf32>, vector<8x128xf32> -> vector<8x128xf32>
    %c0_109 = arith.constant 0 : index
    %c0_110 = arith.constant 0 : index
    %85 = vector.load %arg11[%c0_109, %c0_110] : memref<1x128xf32, #tpu.memory_space<vmem>>, vector<1x128xf32>
    %86 = vector.broadcast %85 : vector<1x128xf32> to vector<8x128xf32>
    %87 = arith.addf %84, %86 : vector<8x128xf32>
    %c0_111 = arith.constant 0 : index
    %c0_112 = arith.constant 0 : index
    %88 = vector.load %arg12[%c0_111, %c0_112] : memref<8x128xf32, #tpu.memory_space<vmem>>, vector<8x128xf32>
    tpu.vector_store %arg12[%c0_111, %c0_112], %87 {strides = array<i32>} : memref<8x128xf32, #tpu.memory_space<vmem>>, vector<8x128xf32>,
    return
  }
  func.func @transform_0(%arg0: i32) -> (i32, i32) {
    %c0_i32 = arith.constant 0 : i32
    %c0_i32_0 = arith.constant 0 : i32
    return %arg0, %c0_i32 : i32, i32
  }
  func.func @transform_1(%arg0: i32) -> (i32, i32) {
    %c0_i32 = arith.constant 0 : i32
    %c0_i32_0 = arith.constant 0 : i32
    %c0_i32_1 = arith.constant 0 : i32
    return %c0_i32, %c0_i32_0 : i32, i32
  }
  func.func @transform_2(%arg0: i32) -> (i32, i32) {
    %c0_i32 = arith.constant 0 : i32
    %c0_i32_0 = arith.constant 0 : i32
    %c0_i32_1 = arith.constant 0 : i32
    return %c0_i32, %c0_i32_0 : i32, i32
  }
  func.func @transform_3(%arg0: i32) -> (i32, i32) {
    %c0_i32 = arith.constant 0 : i32
    %c0_i32_0 = arith.constant 0 : i32
    %c0_i32_1 = arith.constant 0 : i32
    return %c0_i32, %c0_i32_0 : i32, i32
  }
  func.func @transform_4(%arg0: i32) -> (i32, i32) {
    %c0_i32 = arith.constant 0 : i32
    %c0_i32_0 = arith.constant 0 : i32
    %c0_i32_1 = arith.constant 0 : i32
    return %c0_i32, %c0_i32_0 : i32, i32
  }
  func.func @transform_5(%arg0: i32) -> (i32, i32) {
    %c0_i32 = arith.constant 0 : i32
    %c0_i32_0 = arith.constant 0 : i32
    %c0_i32_1 = arith.constant 0 : i32
    return %c0_i32, %c0_i32_0 : i32, i32
  }
  func.func @transform_6(%arg0: i32) -> (i32, i32) {
    %c0_i32 = arith.constant 0 : i32
    %c0_i32_0 = arith.constant 0 : i32
    %c0_i32_1 = arith.constant 0 : i32
    return %c0_i32, %c0_i32_0 : i32, i32
  }
  func.func @transform_7(%arg0: i32) -> (i32, i32) {
    %c0_i32 = arith.constant 0 : i32
    %c0_i32_0 = arith.constant 0 : i32
    %c0_i32_1 = arith.constant 0 : i32
    return %c0_i32, %c0_i32_0 : i32, i32
  }
  func.func @transform_8(%arg0: i32) -> (i32, i32) {
    %c0_i32 = arith.constant 0 : i32
    %c0_i32_0 = arith.constant 0 : i32
    %c0_i32_1 = arith.constant 0 : i32
    return %c0_i32, %c0_i32_0 : i32, i32
  }
  func.func @transform_9(%arg0: i32) -> (i32, i32) {
    %c0_i32 = arith.constant 0 : i32
    %c0_i32_0 = arith.constant 0 : i32
    %c0_i32_1 = arith.constant 0 : i32
    return %c0_i32, %c0_i32_0 : i32, i32
  }
  func.func @transform_10(%arg0: i32) -> (i32, i32) {
    %c0_i32 = arith.constant 0 : i32
    %c0_i32_0 = arith.constant 0 : i32
    %c0_i32_1 = arith.constant 0 : i32
    return %c0_i32, %c0_i32_0 : i32, i32
  }
  func.func @transform_11(%arg0: i32) -> (i32, i32) {
    %c0_i32 = arith.constant 0 : i32
    %c0_i32_0 = arith.constant 0 : i32
    return %arg0, %c0_i32 : i32, i32
  }
}

</mosaic_0001>

<llo_original>
// kernel: simple_conv3d_forward.1
$region0: #{simple_conv3d_forward.1}
  #allocation0 [shape = 'u32[]', space=smem, size = 0x4, offset = 0x4, fixed_abs, tag = 'smem constant byte address 0x4 - core index']
  #allocation1 [shape = 'u32[144,128]{1,0:T(1,128)}', space=vmem, size = 0x12000, scoped, tag = 'internal scratch']
  #allocation2 [shape = 'f32[264,128]{1,0:T(8,128)}', space=vmem, size = 0x21000, scoped, tag = 'scratch operand']
  #allocation3 [shape = 'f32[256,640]{1,0:T(8,128)}', space=vmem, size = 0xa0000, scoped, tag = 'scratch operand']
  #allocation4 [shape = 'f32[256,128]{1,0:T(8,128)}', space=vmem, size = 0x20000, scoped, tag = 'scratch operand']
  #allocation5 [shape = 'f32[136,128]{1,0:T(8,128)}', space=vmem, size = 0x11000, scoped, tag = 'scratch operand']
  #allocation6 [shape = 'f32[128,640]{1,0:T(8,128)}', space=vmem, size = 0x50000, scoped, tag = 'scratch operand']
  #allocation7 [shape = 'f32[128,128]{1,0:T(8,128)}', space=vmem, size = 0x10000, scoped, tag = 'scratch operand']
  #allocation8 [shape = 'f32[64,128]{1,0:T(8,128)}', space=vmem, size = 0x8000, scoped, tag = 'scratch operand']
  #allocation9 [shape = 'f32[8,640]{1,0:T(8,128)}', space=vmem, size = 0x5000, scoped, tag = 'scratch operand']
  %s0 = inlined_call_operand.vmem [shape: f32[512,128], index: 0, kind: input, shape index: {}]
  %s1 = inlined_call_operand.vmem [shape: f32[640,256], index: 1, kind: input, shape index: {}]
  %s2 = inlined_call_operand.vmem [shape: f32[1,128], index: 2, kind: input, shape index: {}]
  %s3 = inlined_call_operand.vmem [shape: f32[640,256], index: 3, kind: input, shape index: {}]
  %s4 = inlined_call_operand.vmem [shape: f32[1,128], index: 4, kind: input, shape index: {}]
  %s5 = inlined_call_operand.vmem [shape: f32[640,128], index: 5, kind: input, shape index: {}]
  %s6 = inlined_call_operand.vmem [shape: f32[1,128], index: 6, kind: input, shape index: {}]
  %s7 = inlined_call_operand.vmem [shape: f32[128,128], index: 7, kind: input, shape index: {}]
  %s8 = inlined_call_operand.vmem [shape: f32[1,128], index: 8, kind: input, shape index: {}]
  %s9 = inlined_call_operand.vmem [shape: f32[128,128], index: 9, kind: input, shape index: {}]
  %s10 = inlined_call_operand.vmem [shape: f32[1,128], index: 10, kind: input, shape index: {}]
  %s11 = inlined_call_operand.hbm [shape: f32[16,128], index: 11, kind: output, shape index: {}]
  %s12 = sld [smem:[#allocation0]]
  $region77: #{simple_conv3d_forward.1} parent=0
    _
  %s14 = ssub.s32 1, %s12
  %s15 = scalar_select 0, %s14, %s12
  $region1: #{simple_conv3d_forward.1} parent=0
    #allocation10 [shape = 'u8[8192]{0}', space=vmem, size = 0x2000, scoped, tag = 'output window, operand 0']
    #allocation11 [shape = 's32[2]{0}', space=sflag, size = 0x8, scoped, tag = 'scoped memory for simple_conv3d_forward.1']
    %16 = vsyncpa [#allocation11], 0
    %s17 = scalar_lea.sflag [#allocation11], 1
    %18 = vsyncpa %s17, 0
    loop: start=0, step=1, limit=4
    $region2: #{simple_conv3d_forward.1} parent=1 // loop_pre_header
      _
    $region3: #{simple_conv3d_forward.1} parent=1 // loop_header
      %s20 = sphi 0, %s24
      %p21 = scmp.ge.s32.totalorder %s20, 4
      %s30 = sphi 0, %s32
      %s33 = sphi 0, %s30
      %s34 = sphi 0, %s33
      %s50 = sphi 0, %s34
      %s54 = sphi 0, %s54
      %s56 = sphi 0, %s54
      %s57 = sphi 0, %s56
      %s71 = sphi 0, %s57
      %s75 = sphi 0, %s75
      %s77 = sphi 0, %s75
      %s78 = sphi 0, %s77
      %s92 = sphi 0, %s78
      %s96 = sphi 0, %s96
      %s98 = sphi 0, %s96
      %s99 = sphi 0, %s98
      %s113 = sphi 0, %s99
      %s117 = sphi 0, %s117
      %s119 = sphi 0, %s117
      %s120 = sphi 0, %s119
      %s134 = sphi 0, %s120
      %s138 = sphi 0, %s138
      %s140 = sphi 0, %s138
      %s141 = sphi 0, %s140
      %s155 = sphi 0, %s141
      %s159 = sphi 0, %s159
      %s161 = sphi 0, %s159
      %s162 = sphi 0, %s161
      %s176 = sphi 0, %s162
      %s180 = sphi 0, %s180
      %s182 = sphi 0, %s180
      %s183 = sphi 0, %s182
      %s197 = sphi 0, %s183
      %s201 = sphi 0, %s201
      %s203 = sphi 0, %s201
      %s204 = sphi 0, %s203
      %s218 = sphi 0, %s204
      %s222 = sphi 0, %s222
      %s224 = sphi 0, %s222
      %s225 = sphi 0, %s224
      %s239 = sphi 0, %s225
      %s243 = sphi 0, %s243
      %s245 = sphi 0, %s243
      %s246 = sphi 0, %s245
      %s260 = sphi 0, %s246
      %s266 = sphi 0, %s268
      %s269 = sphi 0, %s266
      %s270 = sphi 0, %s269
      %s286 = sphi 0, %s270
    $region4: #{simple_conv3d_forward.1} parent=1 // loop_header_branch
      %23 = sbr.rel (%p21) target = $region8
    $region5: #{simple_conv3d_forward.1} parent=1 // loop_body
      %s25 = ssub.s32 %s20, 1
      %s26 = ssub.s32 %s20, 2
      %s27 = sadd.s32 %s20, 1
      %s28 = ssub.s32 %s20, %s27
      %p29 = scmp.eq.s32.totalorder %s28, 0
      %s31 = sadd.s32 %s30, 1
      %s32 = scalar_select %p29, %s30, %s31
      %p35 = pneg %p29
      %p36 = scmp.eq.s32.totalorder %s20, 1
      %p37 = por %p35, %p36
      %p38 = scmp.ne.s32.totalorder %s30, %s33
      %p39 = scmp.eq.s32.totalorder %s20, 0
      %p40 = por %p38, %p39
      %p41 = scmp.ne.s32.totalorder %s30, %s33
      %p42 = scmp.eq.s32.totalorder %s25, 1
      %p43 = por %p41, %p42
      %p44 = scmp.ne.s32.totalorder %s33, %s34
      %p45 = scmp.eq.s32.totalorder %s25, 0
      %p46 = por %p44, %p45
      %p47 = scmp.ne.s32.totalorder %s33, %s34
      %p48 = scmp.eq.s32.totalorder %s26, 1
      %p49 = por %p47, %p48
      %p51 = scmp.ne.s32.totalorder %s34, %s50
      %p52 = scmp.eq.s32.totalorder %s26, 0
      %p53 = por %p51, %p52
      %s55 = sadd.s32 %s54, 1
      %p58 = scmp.eq.s32.totalorder %s20, 1
      %p59 = scmp.ne.s32.totalorder %s54, %s56
      %p60 = scmp.eq.s32.totalorder %s20, 0
      %p61 = por %p59, %p60
      %p62 = scmp.ne.s32.totalorder %s54, %s56
      %p63 = scmp.eq.s32.totalorder %s25, 1
      %p64 = por %p62, %p63
      %p65 = scmp.ne.s32.totalorder %s56, %s57
      %p66 = scmp.eq.s32.totalorder %s25, 0
      %p67 = por %p65, %p66
      %p68 = scmp.ne.s32.totalorder %s56, %s57
      %p69 = scmp.eq.s32.totalorder %s26, 1
      %p70 = por %p68, %p69
      %p72 = scmp.ne.s32.totalorder %s57, %s71
      %p73 = scmp.eq.s32.totalorder %s26, 0
      %p74 = por %p72, %p73
      %s76 = sadd.s32 %s75, 1
      %p79 = scmp.eq.s32.totalorder %s20, 1
      %p80 = scmp.ne.s32.totalorder %s75, %s77
      %p81 = scmp.eq.s32.totalorder %s20, 0
      %p82 = por %p80, %p81
      %p83 = scmp.ne.s32.totalorder %s75, %s77
      %p84 = scmp.eq.s32.totalorder %s25, 1
      %p85 = por %p83, %p84
      %p86 = scmp.ne.s32.totalorder %s77, %s78
      %p87 = scmp.eq.s32.totalorder %s25, 0
      %p88 = por %p86, %p87
      %p89 = scmp.ne.s32.totalorder %s77, %s78
      %p90 = scmp.eq.s32.totalorder %s26, 1
      %p91 = por %p89, %p90
      %p93 = scmp.ne.s32.totalorder %s78, %s92
      %p94 = scmp.eq.s32.totalorder %s26, 0
      %p95 = por %p93, %p94
      %s97 = sadd.s32 %s96, 1
      %p100 = scmp.eq.s32.totalorder %s20, 1
      %p101 = scmp.ne.s32.totalorder %s96, %s98
      %p102 = scmp.eq.s32.totalorder %s20, 0
      %p103 = por %p101, %p102
      %p104 = scmp.ne.s32.totalorder %s96, %s98
      %p105 = scmp.eq.s32.totalorder %s25, 1
      %p106 = por %p104, %p105
      %p107 = scmp.ne.s32.totalorder %s98, %s99
      %p108 = scmp.eq.s32.totalorder %s25, 0
      %p109 = por %p107, %p108
      %p110 = scmp.ne.s32.totalorder %s98, %s99
      %p111 = scmp.eq.s32.totalorder %s26, 1
      %p112 = por %p110, %p111
      %p114 = scmp.ne.s32.totalorder %s99, %s113
      %p115 = scmp.eq.s32.totalorder %s26, 0
      %p116 = por %p114, %p115
      %s118 = sadd.s32 %s117, 1
      %p121 = scmp.eq.s32.totalorder %s20, 1
      %p122 = scmp.ne.s32.totalorder %s117, %s119
      %p123 = scmp.eq.s32.totalorder %s20, 0
      %p124 = por %p122, %p123
      %p125 = scmp.ne.s32.totalorder %s117, %s119
      %p126 = scmp.eq.s32.totalorder %s25, 1
      %p127 = por %p125, %p126
      %p128 = scmp.ne.s32.totalorder %s119, %s120
      %p129 = scmp.eq.s32.totalorder %s25, 0
      %p130 = por %p128, %p129
      %p131 = scmp.ne.s32.totalorder %s119, %s120
      %p132 = scmp.eq.s32.totalorder %s26, 1
      %p133 = por %p131, %p132
      %p135 = scmp.ne.s32.totalorder %s120, %s134
      %p136 = scmp.eq.s32.totalorder %s26, 0
      %p137 = por %p135, %p136
      %s139 = sadd.s32 %s138, 1
      %p142 = scmp.eq.s32.totalorder %s20, 1
      %p143 = scmp.ne.s32.totalorder %s138, %s140
      %p144 = scmp.eq.s32.totalorder %s20, 0
      %p145 = por %p143, %p144
      %p146 = scmp.ne.s32.totalorder %s138, %s140
      %p147 = scmp.eq.s32.totalorder %s25, 1
      %p148 = por %p146, %p147
      %p149 = scmp.ne.s32.totalorder %s140, %s141
      %p150 = scmp.eq.s32.totalorder %s25, 0
      %p151 = por %p149, %p150
      %p152 = scmp.ne.s32.totalorder %s140, %s141
      %p153 = scmp.eq.s32.totalorder %s26, 1
      %p154 = por %p152, %p153
      %p156 = scmp.ne.s32.totalorder %s141, %s155
      %p157 = scmp.eq.s32.totalorder %s26, 0
      %p158 = por %p156, %p157
      %s160 = sadd.s32 %s159, 1
      %p163 = scmp.eq.s32.totalorder %s20, 1
      %p164 = scmp.ne.s32.totalorder %s159, %s161
      %p165 = scmp.eq.s32.totalorder %s20, 0
      %p166 = por %p164, %p165
      %p167 = scmp.ne.s32.totalorder %s159, %s161
      %p168 = scmp.eq.s32.totalorder %s25, 1
      %p169 = por %p167, %p168
      %p170 = scmp.ne.s32.totalorder %s161, %s162
      %p171 = scmp.eq.s32.totalorder %s25, 0
      %p172 = por %p170, %p171
      %p173 = scmp.ne.s32.totalorder %s161, %s162
      %p174 = scmp.eq.s32.totalorder %s26, 1
      %p175 = por %p173, %p174
      %p177 = scmp.ne.s32.totalorder %s162, %s176
      %p178 = scmp.eq.s32.totalorder %s26, 0
      %p179 = por %p177, %p178
      %s181 = sadd.s32 %s180, 1
      %p184 = scmp.eq.s32.totalorder %s20, 1
      %p185 = scmp.ne.s32.totalorder %s180, %s182
      %p186 = scmp.eq.s32.totalorder %s20, 0
      %p187 = por %p185, %p186
      %p188 = scmp.ne.s32.totalorder %s180, %s182
      %p189 = scmp.eq.s32.totalorder %s25, 1
      %p190 = por %p188, %p189
      %p191 = scmp.ne.s32.totalorder %s182, %s183
      %p192 = scmp.eq.s32.totalorder %s25, 0
      %p193 = por %p191, %p192
      %p194 = scmp.ne.s32.totalorder %s182, %s183
      %p195 = scmp.eq.s32.totalorder %s26, 1
      %p196 = por %p194, %p195
      %p198 = scmp.ne.s32.totalorder %s183, %s197
      %p199 = scmp.eq.s32.totalorder %s26, 0
      %p200 = por %p198, %p199
      %s202 = sadd.s32 %s201, 1
      %p205 = scmp.eq.s32.totalorder %s20, 1
      %p206 = scmp.ne.s32.totalorder %s201, %s203
      %p207 = scmp.eq.s32.totalorder %s20, 0
      %p208 = por %p206, %p207
      %p209 = scmp.ne.s32.totalorder %s201, %s203
      %p210 = scmp.eq.s32.totalorder %s25, 1
      %p211 = por %p209, %p210
      %p212 = scmp.ne.s32.totalorder %s203, %s204
      %p213 = scmp.eq.s32.totalorder %s25, 0
      %p214 = por %p212, %p213
      %p215 = scmp.ne.s32.totalorder %s203, %s204
      %p216 = scmp.eq.s32.totalorder %s26, 1
      %p217 = por %p215, %p216
      %p219 = scmp.ne.s32.totalorder %s204, %s218
      %p220 = scmp.eq.s32.totalorder %s26, 0
      %p221 = por %p219, %p220
      %s223 = sadd.s32 %s222, 1
      %p226 = scmp.eq.s32.totalorder %s20, 1
      %p227 = scmp.ne.s32.totalorder %s222, %s224
      %p228 = scmp.eq.s32.totalorder %s20, 0
      %p229 = por %p227, %p228
      %p230 = scmp.ne.s32.totalorder %s222, %s224
      %p231 = scmp.eq.s32.totalorder %s25, 1
      %p232 = por %p230, %p231
      %p233 = scmp.ne.s32.totalorder %s224, %s225
      %p234 = scmp.eq.s32.totalorder %s25, 0
      %p235 = por %p233, %p234
      %p236 = scmp.ne.s32.totalorder %s224, %s225
      %p237 = scmp.eq.s32.totalorder %s26, 1
      %p238 = por %p236, %p237
      %p240 = scmp.ne.s32.totalorder %s225, %s239
      %p241 = scmp.eq.s32.totalorder %s26, 0
      %p242 = por %p240, %p241
      %s244 = sadd.s32 %s243, 1
      %p247 = scmp.eq.s32.totalorder %s20, 1
      %p248 = scmp.ne.s32.totalorder %s243, %s245
      %p249 = scmp.eq.s32.totalorder %s20, 0
      %p250 = por %p248, %p249
      %p251 = scmp.ne.s32.totalorder %s243, %s245
      %p252 = scmp.eq.s32.totalorder %s25, 1
      %p253 = por %p251, %p252
      %p254 = scmp.ne.s32.totalorder %s245, %s246
      %p255 = scmp.eq.s32.totalorder %s25, 0
      %p256 = por %p254, %p255
      %p257 = scmp.ne.s32.totalorder %s245, %s246
      %p258 = scmp.eq.s32.totalorder %s26, 1
      %p259 = por %p257, %p258
      %p261 = scmp.ne.s32.totalorder %s246, %s260
      %p262 = scmp.eq.s32.totalorder %s26, 0
      %p263 = por %p261, %p262
      %s264 = ssub.s32 %s20, %s27
      %p265 = scmp.eq.s32.totalorder %s264, 0
      %s267 = sadd.s32 %s266, 1
      %s268 = scalar_select %p265, %s266, %s267
      %p271 = pneg %p265
      %p272 = scmp.eq.s32.totalorder %s20, 1
      %p273 = por %p271, %p272
      %p274 = scmp.ne.s32.totalorder %s266, %s269
      %p275 = scmp.eq.s32.totalorder %s20, 0
      %p276 = por %p274, %p275
      %p277 = scmp.ne.s32.totalorder %s266, %s269
      %p278 = scmp.eq.s32.totalorder %s25, 1
      %p279 = por %p277, %p278
      %p280 = scmp.ne.s32.totalorder %s269, %s270
      %p281 = scmp.eq.s32.totalorder %s25, 0
      %p282 = por %p280, %p281
      %p283 = scmp.ne.s32.totalorder %s269, %s270
      %p284 = scmp.eq.s32.totalorder %s26, 1
      %p285 = por %p283, %p284
      %p287 = scmp.ne.s32.totalorder %s270, %s286
      %p288 = scmp.eq.s32.totalorder %s26, 0
      %p289 = por %p287, %p288
      %p290 = scmp.le.s32.totalorder 1, %s20
      %p291 = scmp.lt.s32.totalorder %s20, 3
      %p292 = pnand %p290, %p291
      %p293 = pneg %p292
      // Predicated region
      $region9: #{simple_conv3d_forward.1} parent=5 // pred_check
        _
      $region10: #{simple_conv3d_forward.1} parent=5 // pred_check_branch
        %295 = sbr.rel (%p292) target = $region12
      $region11: #{simple_conv3d_forward.1} parent=5 // pred_region
        %s296 = ssub.s32 %s20, 1
        // Predicated region
        $region13: #{simple_conv3d_forward.1} parent=11 // pred_check
          %p297 = pneg %p67
        $region14: #{simple_conv3d_forward.1} parent=11 // pred_check_branch
          %299 = sbr.rel (%p297) target = $region16
        $region15: #{simple_conv3d_forward.1} parent=11 // pred_region
          _
        $region16: #{simple_conv3d_forward.1} parent=11 // pred_fallthru
          _
        // Predicated region
        $region17: #{simple_conv3d_forward.1} parent=11 // pred_check
          %p300 = pneg %p88
        $region18: #{simple_conv3d_forward.1} parent=11 // pred_check_branch
          %302 = sbr.rel (%p300) target = $region20
        $region19: #{simple_conv3d_forward.1} parent=11 // pred_region
          _
        $region20: #{simple_conv3d_forward.1} parent=11 // pred_fallthru
          _
        // Predicated region
        $region21: #{simple_conv3d_forward.1} parent=11 // pred_check
          %p303 = pneg %p109
        $region22: #{simple_conv3d_forward.1} parent=11 // pred_check_branch
          %305 = sbr.rel (%p303) target = $region24
        $region23: #{simple_conv3d_forward.1} parent=11 // pred_region
          _
        $region24: #{simple_conv3d_forward.1} parent=11 // pred_fallthru
          _
        // Predicated region
        $region25: #{simple_conv3d_forward.1} parent=11 // pred_check
          %p306 = pneg %p130
        $region26: #{simple_conv3d_forward.1} parent=11 // pred_check_branch
          %308 = sbr.rel (%p306) target = $region28
        $region27: #{simple_conv3d_forward.1} parent=11 // pred_region
          _
        $region28: #{simple_conv3d_forward.1} parent=11 // pred_fallthru
          _
        // Predicated region
        $region29: #{simple_conv3d_forward.1} parent=11 // pred_check
          %p309 = pneg %p151
        $region30: #{simple_conv3d_forward.1} parent=11 // pred_check_branch
          %311 = sbr.rel (%p309) target = $region32
        $region31: #{simple_conv3d_forward.1} parent=11 // pred_region
          _
        $region32: #{simple_conv3d_forward.1} parent=11 // pred_fallthru
          _
        // Predicated region
        $region33: #{simple_conv3d_forward.1} parent=11 // pred_check
          %p312 = pneg %p172
        $region34: #{simple_conv3d_forward.1} parent=11 // pred_check_branch
          %314 = sbr.rel (%p312) target = $region36
        $region35: #{simple_conv3d_forward.1} parent=11 // pred_region
          _
        $region36: #{simple_conv3d_forward.1} parent=11 // pred_fallthru
          _
        // Predicated region
        $region37: #{simple_conv3d_forward.1} parent=11 // pred_check
          %p315 = pneg %p193
        $region38: #{simple_conv3d_forward.1} parent=11 // pred_check_branch
          %317 = sbr.rel (%p315) target = $region40
        $region39: #{simple_conv3d_forward.1} parent=11 // pred_region
          _
        $region40: #{simple_conv3d_forward.1} parent=11 // pred_fallthru
          _
        // Predicated region
        $region41: #{simple_conv3d_forward.1} parent=11 // pred_check
          %p318 = pneg %p214
        $region42: #{simple_conv3d_forward.1} parent=11 // pred_check_branch
          %320 = sbr.rel (%p318) target = $region44
        $region43: #{simple_conv3d_forward.1} parent=11 // pred_region
          _
        $region44: #{simple_conv3d_forward.1} parent=11 // pred_fallthru
          _
        // Predicated region
        $region45: #{simple_conv3d_forward.1} parent=11 // pred_check
          %p321 = pneg %p235
        $region46: #{simple_conv3d_forward.1} parent=11 // pred_check_branch
          %323 = sbr.rel (%p321) target = $region48
        $region47: #{simple_conv3d_forward.1} parent=11 // pred_region
          _
        $region48: #{simple_conv3d_forward.1} parent=11 // pred_fallthru
          _
        // Predicated region
        $region49: #{simple_conv3d_forward.1} parent=11 // pred_check
          %p324 = pneg %p256
        $region50: #{simple_conv3d_forward.1} parent=11 // pred_check_branch
          %326 = sbr.rel (%p324) target = $region52
        $region51: #{simple_conv3d_forward.1} parent=11 // pred_region
          _
        $region52: #{simple_conv3d_forward.1} parent=11 // pred_fallthru
          _
      $region12: #{simple_conv3d_forward.1} parent=5 // pred_fallthru
        _
      %p327 = scmp.lt.s32.totalorder %s20, 2
      // Predicated region
      $region53: #{simple_conv3d_forward.1} parent=5 // pred_check
        %p328 = pneg %p327
      $region54: #{simple_conv3d_forward.1} parent=5 // pred_check_branch
        %330 = sbr.rel (%p328) target = $region56
      $region55: #{simple_conv3d_forward.1} parent=5 // pred_region
        // Predicated region
        $region57: #{simple_conv3d_forward.1} parent=55 // pred_check
          %p331 = pneg %p40
        $region58: #{simple_conv3d_forward.1} parent=55 // pred_check_branch
          %333 = sbr.rel (%p331) target = $region60
        $region59: #{simple_conv3d_forward.1} parent=55 // pred_region
          %s334 = smul.u32 32, %s20
          %p335 = scmp.lt.s32.totalorder %s334, 63
          %s336 = scalar_select %p335, %s334, 63
          %s337 = smul.addr %s336, 8
          %s338 = scalar_lea.vmem %s0, %s337
          %s339 = smul.u32 32, %s20
        $region60: #{simple_conv3d_forward.1} parent=55 // pred_fallthru
          _
      $region56: #{simple_conv3d_forward.1} parent=5 // pred_fallthru
        _
      %p340 = scmp.le.s32.totalorder 1, %s20
      %p341 = scmp.lt.s32.totalorder %s20, 3
      %p342 = pnand %p340, %p341
      %p343 = pneg %p342
      // Predicated region
      $region61: #{simple_conv3d_forward.1} parent=5 // pred_check
        _
      $region62: #{simple_conv3d_forward.1} parent=5 // pred_check_branch
        %345 = sbr.rel (%p342) target = $region64
      $region63: #{simple_conv3d_forward.1} parent=5 // pred_region
        %s346 = ssub.s32 %s20, 1
        %s347 = smul.u32 32, %s25
        %p348 = scmp.lt.s32.totalorder %s347, 63
        %s349 = scalar_select %p348, %s347, 63
        %s350 = smul.addr %s349, 8
        %s351 = scalar_lea.vmem %s0, %s350
        %p352 = pneg %p46
        %p353 = pneg %p43
        %p354 = pneg %p67
        %p355 = pneg %p64
        %p356 = pneg %p88
        %p357 = pneg %p85
        %p358 = pneg %p109
        %p359 = pneg %p106
        %p360 = pneg %p130
        %p361 = pneg %p127
        %p362 = pneg %p151
        %p363 = pneg %p148
        %p364 = pneg %p172
        %p365 = pneg %p169
        %p366 = pneg %p193
        %p367 = pneg %p190
        %p368 = pneg %p214
        %p369 = pneg %p211
        %p370 = pneg %p235
        %p371 = pneg %p232
        %p372 = pneg %p256
        %p373 = pneg %p253
        %p374 = pneg %p282
        %p375 = pneg %p279
        %s376 = sand.u32 %s269, 1
        %s377 = scalar_lea.sflag [#allocation11], %s376
        %s378 = sand.u32 %s269, 1
        %s379 = smul.addr %s378, 8
        %s380 = scalar_lea.vmem [#allocation10], %s379
        %s381 = smul.u32 32, %s25
        %p382 = scmp.lt.s32.totalorder %s381, 63
        %s383 = scalar_select %p382, %s381, 63
        %s384 = smul.addr %s383, 8
        %s385 = scalar_lea.vmem %s0, %s384
        %s386 = smul.u32 32, %s25
        %v387 = vld [vmem:[%s385] sm:$0xff]
        %v388 = vld [vmem:[%s385 + $0x8] sm:$0xff]
        %v389 = vld [vmem:[%s385 + $0x10] sm:$0xff]
        %v390 = vld [vmem:[%s385 + $0x18] sm:$0xff]
        %v391 = vld [vmem:[%s385 + $0x20] sm:$0xff]
        %v392 = vld [vmem:[%s385 + $0x28] sm:$0xff]
        %v393 = vld [vmem:[%s385 + $0x30] sm:$0xff]
        %v394 = vld [vmem:[%s385 + $0x38] sm:$0xff]
        %v395 = vld [vmem:[%s385 + $0x40] sm:$0xff]
        %v396 = vld [vmem:[%s385 + $0x48] sm:$0xff]
        %v397 = vld [vmem:[%s385 + $0x50] sm:$0xff]
        %v398 = vld [vmem:[%s385 + $0x58] sm:$0xff]
        %v399 = vld [vmem:[%s385 + $0x60] sm:$0xff]
        %v400 = vld [vmem:[%s385 + $0x68] sm:$0xff]
        %v401 = vld [vmem:[%s385 + $0x70] sm:$0xff]
        %v402 = vld [vmem:[%s385 + $0x78] sm:$0xff]
        %v403 = vld [vmem:[%s385 + $0x80] sm:$0xff]
        %v404 = vld [vmem:[%s385 + $0x88] sm:$0xff]
        %v405 = vld [vmem:[%s385 + $0x90] sm:$0xff]
        %v406 = vld [vmem:[%s385 + $0x98] sm:$0xff]
        %v407 = vld [vmem:[%s385 + $0xa0] sm:$0xff]
        %v408 = vld [vmem:[%s385 + $0xa8] sm:$0xff]
        %v409 = vld [vmem:[%s385 + $0xb0] sm:$0xff]
        %v410 = vld [vmem:[%s385 + $0xb8] sm:$0xff]
        %v411 = vld [vmem:[%s385 + $0xc0] sm:$0xff]
        %v412 = vld [vmem:[%s385 + $0xc8] sm:$0xff]
        %v413 = vld [vmem:[%s385 + $0xd0] sm:$0xff]
        %v414 = vld [vmem:[%s385 + $0xd8] sm:$0xff]
        %v415 = vld [vmem:[%s385 + $0xe0] sm:$0xff]
        %v416 = vld [vmem:[%s385 + $0xe8] sm:$0xff]
        %v417 = vld [vmem:[%s385 + $0xf0] sm:$0xff]
        %v418 = vld [vmem:[%s385 + $0xf8] sm:$0xff]
        %419 = vst [vmem:[#allocation2] sm:$0xff] %v387
        %420 = vst [vmem:[#allocation2 + $0x8] sm:$0xff] %v388
        %421 = vst [vmem:[#allocation2 + $0x10] sm:$0xff] %v389
        %422 = vst [vmem:[#allocation2 + $0x18] sm:$0xff] %v390
        %423 = vst [vmem:[#allocation2 + $0x20] sm:$0xff] %v391
        %424 = vst [vmem:[#allocation2 + $0x28] sm:$0xff] %v392
        %425 = vst [vmem:[#allocation2 + $0x30] sm:$0xff] %v393
        %426 = vst [vmem:[#allocation2 + $0x38] sm:$0xff] %v394
        %427 = vst [vmem:[#allocation2 + $0x40] sm:$0xff] %v395
        %428 = vst [vmem:[#allocation2 + $0x48] sm:$0xff] %v396
        %429 = vst [vmem:[#allocation2 + $0x50] sm:$0xff] %v397
        %430 = vst [vmem:[#allocation2 + $0x58] sm:$0xff] %v398
        %431 = vst [vmem:[#allocation2 + $0x60] sm:$0xff] %v399
        %432 = vst [vmem:[#allocation2 + $0x68] sm:$0xff] %v400
        %433 = vst [vmem:[#allocation2 + $0x70] sm:$0xff] %v401
        %434 = vst [vmem:[#allocation2 + $0x78] sm:$0xff] %v402
        %435 = vst [vmem:[#allocation2 + $0x80] sm:$0xff] %v403
        %436 = vst [vmem:[#allocation2 + $0x88] sm:$0xff] %v404
        %437 = vst [vmem:[#allocation2 + $0x90] sm:$0xff] %v405
        %438 = vst [vmem:[#allocation2 + $0x98] sm:$0xff] %v406
        %439 = vst [vmem:[#allocation2 + $0xa0] sm:$0xff] %v407
        %440 = vst [vmem:[#allocation2 + $0xa8] sm:$0xff] %v408
        %441 = vst [vmem:[#allocation2 + $0xb0] sm:$0xff] %v409
        %442 = vst [vmem:[#allocation2 + $0xb8] sm:$0xff] %v410
        %443 = vst [vmem:[#allocation2 + $0xc0] sm:$0xff] %v411
        %444 = vst [vmem:[#allocation2 + $0xc8] sm:$0xff] %v412
        %445 = vst [vmem:[#allocation2 + $0xd0] sm:$0xff] %v413
        %446 = vst [vmem:[#allocation2 + $0xd8] sm:$0xff] %v414
        %447 = vst [vmem:[#allocation2 + $0xe0] sm:$0xff] %v415
        %448 = vst [vmem:[#allocation2 + $0xe8] sm:$0xff] %v416
        %449 = vst [vmem:[#allocation2 + $0xf0] sm:$0xff] %v417
        %450 = vst [vmem:[#allocation2 + $0xf8] sm:$0xff] %v418
        %451 = vst [vmem:[#allocation2 + $0x100] sm:$0xff] 0.0
        %v452 = vld [vmem:[#allocation2] sm:$0xff]
        %v453 = vld [vmem:[#allocation2 + $0x8] sm:$0xff]
        %v454 = vld [vmem:[#allocation2 + $0x10] sm:$0xff]
        %v455 = vld [vmem:[#allocation2 + $0x18] sm:$0xff]
        %v456 = vld [vmem:[#allocation2 + $0x20] sm:$0xff]
        %v457 = vld [vmem:[#allocation2 + $0x28] sm:$0xff]
        %v458 = vld [vmem:[#allocation2 + $0x30] sm:$0xff]
        %v459 = vld [vmem:[#allocation2 + $0x38] sm:$0xff]
        %v460 = vld [vmem:[#allocation2 + $0x40] sm:$0xff]
        %v461 = vld [vmem:[#allocation2 + $0x48] sm:$0xff]
        %v462 = vld [vmem:[#allocation2 + $0x50] sm:$0xff]
        %v463 = vld [vmem:[#allocation2 + $0x58] sm:$0xff]
        %v464 = vld [vmem:[#allocation2 + $0x60] sm:$0xff]
        %v465 = vld [vmem:[#allocation2 + $0x68] sm:$0xff]
        %v466 = vld [vmem:[#allocation2 + $0x70] sm:$0xff]
        %v467 = vld [vmem:[#allocation2 + $0x78] sm:$0xff]
        %v468 = vld [vmem:[#allocation2 + $0x80] sm:$0xff]
        %v469 = vld [vmem:[#allocation2 + $0x88] sm:$0xff]
        %v470 = vld [vmem:[#allocation2 + $0x90] sm:$0xff]
        %v471 = vld [vmem:[#allocation2 + $0x98] sm:$0xff]
        %v472 = vld [vmem:[#allocation2 + $0xa0] sm:$0xff]
        %v473 = vld [vmem:[#allocation2 + $0xa8] sm:$0xff]
        %v474 = vld [vmem:[#allocation2 + $0xb0] sm:$0xff]
        %v475 = vld [vmem:[#allocation2 + $0xb8] sm:$0xff]
        %v476 = vld [vmem:[#allocation2 + $0xc0] sm:$0xff]
        %v477 = vld [vmem:[#allocation2 + $0xc8] sm:$0xff]
        %v478 = vld [vmem:[#allocation2 + $0xd0] sm:$0xff]
        %v479 = vld [vmem:[#allocation2 + $0xd8] sm:$0xff]
        %v480 = vld [vmem:[#allocation2 + $0xe0] sm:$0xff]
        %v481 = vld [vmem:[#allocation2 + $0xe8] sm:$0xff]
        %v482 = vld [vmem:[#allocation2 + $0xf0] sm:$0xff]
        %v483 = vld [vmem:[#allocation2 + $0xf8] sm:$0xff]
        %484 = vst [vmem:[#allocation3] sm:$0xff] %v452
        %485 = vst [vmem:[#allocation3 + $0x28] sm:$0xff] %v453
        %486 = vst [vmem:[#allocation3 + $0x50] sm:$0xff] %v454
        %487 = vst [vmem:[#allocation3 + $0x78] sm:$0xff] %v455
        %488 = vst [vmem:[#allocation3 + $0xa0] sm:$0xff] %v456
        %489 = vst [vmem:[#allocation3 + $0xc8] sm:$0xff] %v457
        %490 = vst [vmem:[#allocation3 + $0xf0] sm:$0xff] %v458
        %491 = vst [vmem:[#allocation3 + $0x118] sm:$0xff] %v459
        %492 = vst [vmem:[#allocation3 + $0x140] sm:$0xff] %v460
        %493 = vst [vmem:[#allocation3 + $0x168] sm:$0xff] %v461
        %494 = vst [vmem:[#allocation3 + $0x190] sm:$0xff] %v462
        %495 = vst [vmem:[#allocation3 + $0x1b8] sm:$0xff] %v463
        %496 = vst [vmem:[#allocation3 + $0x1e0] sm:$0xff] %v464
        %497 = vst [vmem:[#allocation3 + $0x208] sm:$0xff] %v465
        %498 = vst [vmem:[#allocation3 + $0x230] sm:$0xff] %v466
        %499 = vst [vmem:[#allocation3 + $0x258] sm:$0xff] %v467
        %500 = vst [vmem:[#allocation3 + $0x280] sm:$0xff] %v468
        %501 = vst [vmem:[#allocation3 + $0x2a8] sm:$0xff] %v469
        %502 = vst [vmem:[#allocation3 + $0x2d0] sm:$0xff] %v470
        %503 = vst [vmem:[#allocation3 + $0x2f8] sm:$0xff] %v471
        %504 = vst [vmem:[#allocation3 + $0x320] sm:$0xff] %v472
        %505 = vst [vmem:[#allocation3 + $0x348] sm:$0xff] %v473
        %506 = vst [vmem:[#allocation3 + $0x370] sm:$0xff] %v474
        %507 = vst [vmem:[#allocation3 + $0x398] sm:$0xff] %v475
        %508 = vst [vmem:[#allocation3 + $0x3c0] sm:$0xff] %v476
        %509 = vst [vmem:[#allocation3 + $0x3e8] sm:$0xff] %v477
        %510 = vst [vmem:[#allocation3 + $0x410] sm:$0xff] %v478
        %511 = vst [vmem:[#allocation3 + $0x438] sm:$0xff] %v479
        %512 = vst [vmem:[#allocation3 + $0x460] sm:$0xff] %v480
        %513 = vst [vmem:[#allocation3 + $0x488] sm:$0xff] %v481
        %514 = vst [vmem:[#allocation3 + $0x4b0] sm:$0xff] %v482
        %515 = vst [vmem:[#allocation3 + $0x4d8] sm:$0xff] %v483
        %v516 = vld [vmem:[#allocation2 + $0x1] sm:$0xff]
        %v517 = vld [vmem:[#allocation2 + $0x9] sm:$0xff]
        %v518 = vld [vmem:[#allocation2 + $0x11] sm:$0xff]
        %v519 = vld [vmem:[#allocation2 + $0x19] sm:$0xff]
        %v520 = vld [vmem:[#allocation2 + $0x21] sm:$0xff]
        %v521 = vld [vmem:[#allocation2 + $0x29] sm:$0xff]
        %v522 = vld [vmem:[#allocation2 + $0x31] sm:$0xff]
        %v523 = vld [vmem:[#allocation2 + $0x39] sm:$0xff]
        %v524 = vld [vmem:[#allocation2 + $0x41] sm:$0xff]
        %v525 = vld [vmem:[#allocation2 + $0x49] sm:$0xff]
        %v526 = vld [vmem:[#allocation2 + $0x51] sm:$0xff]
        %v527 = vld [vmem:[#allocation2 + $0x59] sm:$0xff]
        %v528 = vld [vmem:[#allocation2 + $0x61] sm:$0xff]
        %v529 = vld [vmem:[#allocation2 + $0x69] sm:$0xff]
        %v530 = vld [vmem:[#allocation2 + $0x71] sm:$0xff]
        %v531 = vld [vmem:[#allocation2 + $0x79] sm:$0xff]
        %v532 = vld [vmem:[#allocation2 + $0x81] sm:$0xff]
        %v533 = vld [vmem:[#allocation2 + $0x89] sm:$0xff]
        %v534 = vld [vmem:[#allocation2 + $0x91] sm:$0xff]
        %v535 = vld [vmem:[#allocation2 + $0x99] sm:$0xff]
        %v536 = vld [vmem:[#allocation2 + $0xa1] sm:$0xff]
        %v537 = vld [vmem:[#allocation2 + $0xa9] sm:$0xff]
        %v538 = vld [vmem:[#allocation2 + $0xb1] sm:$0xff]
        %v539 = vld [vmem:[#allocation2 + $0xb9] sm:$0xff]
        %v540 = vld [vmem:[#allocation2 + $0xc1] sm:$0xff]
        %v541 = vld [vmem:[#allocation2 + $0xc9] sm:$0xff]
        %v542 = vld [vmem:[#allocation2 + $0xd1] sm:$0xff]
        %v543 = vld [vmem:[#allocation2 + $0xd9] sm:$0xff]
        %v544 = vld [vmem:[#allocation2 + $0xe1] sm:$0xff]
        %v545 = vld [vmem:[#allocation2 + $0xe9] sm:$0xff]
        %v546 = vld [vmem:[#allocation2 + $0xf1] sm:$0xff]
        %v547 = vld [vmem:[#allocation2 + $0xf9] sm:$0xff]
        %548 = vst [vmem:[#allocation3 + $0x8] sm:$0xff] %v516
        %549 = vst [vmem:[#allocation3 + $0x30] sm:$0xff] %v517
        %550 = vst [vmem:[#allocation3 + $0x58] sm:$0xff] %v518
        %551 = vst [vmem:[#allocation3 + $0x80] sm:$0xff] %v519
        %552 = vst [vmem:[#allocation3 + $0xa8] sm:$0xff] %v520
        %553 = vst [vmem:[#allocation3 + $0xd0] sm:$0xff] %v521
        %554 = vst [vmem:[#allocation3 + $0xf8] sm:$0xff] %v522
        %555 = vst [vmem:[#allocation3 + $0x120] sm:$0xff] %v523
        %556 = vst [vmem:[#allocation3 + $0x148] sm:$0xff] %v524
        %557 = vst [vmem:[#allocation3 + $0x170] sm:$0xff] %v525
        %558 = vst [vmem:[#allocation3 + $0x198] sm:$0xff] %v526
        %559 = vst [vmem:[#allocation3 + $0x1c0] sm:$0xff] %v527
        %560 = vst [vmem:[#allocation3 + $0x1e8] sm:$0xff] %v528
        %561 = vst [vmem:[#allocation3 + $0x210] sm:$0xff] %v529
        %562 = vst [vmem:[#allocation3 + $0x238] sm:$0xff] %v530
        %563 = vst [vmem:[#allocation3 + $0x260] sm:$0xff] %v531
        %564 = vst [vmem:[#allocation3 + $0x288] sm:$0xff] %v532
        %565 = vst [vmem:[#allocation3 + $0x2b0] sm:$0xff] %v533
        %566 = vst [vmem:[#allocation3 + $0x2d8] sm:$0xff] %v534
        %567 = vst [vmem:[#allocation3 + $0x300] sm:$0xff] %v535
        %568 = vst [vmem:[#allocation3 + $0x328] sm:$0xff] %v536
        %569 = vst [vmem:[#allocation3 + $0x350] sm:$0xff] %v537
        %570 = vst [vmem:[#allocation3 + $0x378] sm:$0xff] %v538
        %571 = vst [vmem:[#allocation3 + $0x3a0] sm:$0xff] %v539
        %572 = vst [vmem:[#allocation3 + $0x3c8] sm:$0xff] %v540
        %573 = vst [vmem:[#allocation3 + $0x3f0] sm:$0xff] %v541
        %574 = vst [vmem:[#allocation3 + $0x418] sm:$0xff] %v542
        %575 = vst [vmem:[#allocation3 + $0x440] sm:$0xff] %v543
        %576 = vst [vmem:[#allocation3 + $0x468] sm:$0xff] %v544
        %577 = vst [vmem:[#allocation3 + $0x490] sm:$0xff] %v545
        %578 = vst [vmem:[#allocation3 + $0x4b8] sm:$0xff] %v546
        %579 = vst [vmem:[#allocation3 + $0x4e0] sm:$0xff] %v547
        %v580 = vld [vmem:[#allocation2 + $0x2] sm:$0xff]
        %v581 = vld [vmem:[#allocation2 + $0xa] sm:$0xff]
        %v582 = vld [vmem:[#allocation2 + $0x12] sm:$0xff]
        %v583 = vld [vmem:[#allocation2 + $0x1a] sm:$0xff]
        %v584 = vld [vmem:[#allocation2 + $0x22] sm:$0xff]
        %v585 = vld [vmem:[#allocation2 + $0x2a] sm:$0xff]
        %v586 = vld [vmem:[#allocation2 + $0x32] sm:$0xff]
        %v587 = vld [vmem:[#allocation2 + $0x3a] sm:$0xff]
        %v588 = vld [vmem:[#allocation2 + $0x42] sm:$0xff]
        %v589 = vld [vmem:[#allocation2 + $0x4a] sm:$0xff]
        %v590 = vld [vmem:[#allocation2 + $0x52] sm:$0xff]
        %v591 = vld [vmem:[#allocation2 + $0x5a] sm:$0xff]
        %v592 = vld [vmem:[#allocation2 + $0x62] sm:$0xff]
        %v593 = vld [vmem:[#allocation2 + $0x6a] sm:$0xff]
        %v594 = vld [vmem:[#allocation2 + $0x72] sm:$0xff]
        %v595 = vld [vmem:[#allocation2 + $0x7a] sm:$0xff]
        %v596 = vld [vmem:[#allocation2 + $0x82] sm:$0xff]
        %v597 = vld [vmem:[#allocation2 + $0x8a] sm:$0xff]
        %v598 = vld [vmem:[#allocation2 + $0x92] sm:$0xff]
        %v599 = vld [vmem:[#allocation2 + $0x9a] sm:$0xff]
        %v600 = vld [vmem:[#allocation2 + $0xa2] sm:$0xff]
        %v601 = vld [vmem:[#allocation2 + $0xaa] sm:$0xff]
        %v602 = vld [vmem:[#allocation2 + $0xb2] sm:$0xff]
        %v603 = vld [vmem:[#allocation2 + $0xba] sm:$0xff]
        %v604 = vld [vmem:[#allocation2 + $0xc2] sm:$0xff]
        %v605 = vld [vmem:[#allocation2 + $0xca] sm:$0xff]
        %v606 = vld [vmem:[#allocation2 + $0xd2] sm:$0xff]
        %v607 = vld [vmem:[#allocation2 + $0xda] sm:$0xff]
        %v608 = vld [vmem:[#allocation2 + $0xe2] sm:$0xff]
        %v609 = vld [vmem:[#allocation2 + $0xea] sm:$0xff]
        %v610 = vld [vmem:[#allocation2 + $0xf2] sm:$0xff]
        %v611 = vld [vmem:[#allocation2 + $0xfa] sm:$0xff]
        %612 = vst [vmem:[#allocation3 + $0x10] sm:$0xff] %v580
        %613 = vst [vmem:[#allocation3 + $0x38] sm:$0xff] %v581
        %614 = vst [vmem:[#allocation3 + $0x60] sm:$0xff] %v582
        %615 = vst [vmem:[#allocation3 + $0x88] sm:$0xff] %v583
        %616 = vst [vmem:[#allocation3 + $0xb0] sm:$0xff] %v584
        %617 = vst [vmem:[#allocation3 + $0xd8] sm:$0xff] %v585
        %618 = vst [vmem:[#allocation3 + $0x100] sm:$0xff] %v586
        %619 = vst [vmem:[#allocation3 + $0x128] sm:$0xff] %v587
        %620 = vst [vmem:[#allocation3 + $0x150] sm:$0xff] %v588
        %621 = vst [vmem:[#allocation3 + $0x178] sm:$0xff] %v589
        %622 = vst [vmem:[#allocation3 + $0x1a0] sm:$0xff] %v590
        %623 = vst [vmem:[#allocation3 + $0x1c8] sm:$0xff] %v591
        %624 = vst [vmem:[#allocation3 + $0x1f0] sm:$0xff] %v592
        %625 = vst [vmem:[#allocation3 + $0x218] sm:$0xff] %v593
        %626 = vst [vmem:[#allocation3 + $0x240] sm:$0xff] %v594
        %627 = vst [vmem:[#allocation3 + $0x268] sm:$0xff] %v595
        %628 = vst [vmem:[#allocation3 + $0x290] sm:$0xff] %v596
        %629 = vst [vmem:[#allocation3 + $0x2b8] sm:$0xff] %v597
        %630 = vst [vmem:[#allocation3 + $0x2e0] sm:$0xff] %v598
        %631 = vst [vmem:[#allocation3 + $0x308] sm:$0xff] %v599
        %632 = vst [vmem:[#allocation3 + $0x330] sm:$0xff] %v600
        %633 = vst [vmem:[#allocation3 + $0x358] sm:$0xff] %v601
        %634 = vst [vmem:[#allocation3 + $0x380] sm:$0xff] %v602
        %635 = vst [vmem:[#allocation3 + $0x3a8] sm:$0xff] %v603
        %636 = vst [vmem:[#allocation3 + $0x3d0] sm:$0xff] %v604
        %637 = vst [vmem:[#allocation3 + $0x3f8] sm:$0xff] %v605
        %638 = vst [vmem:[#allocation3 + $0x420] sm:$0xff] %v606
        %639 = vst [vmem:[#allocation3 + $0x448] sm:$0xff] %v607
        %640 = vst [vmem:[#allocation3 + $0x470] sm:$0xff] %v608
        %641 = vst [vmem:[#allocation3 + $0x498] sm:$0xff] %v609
        %642 = vst [vmem:[#allocation3 + $0x4c0] sm:$0xff] %v610
        %643 = vst [vmem:[#allocation3 + $0x4e8] sm:$0xff] %v611
        %v644 = vld [vmem:[#allocation2 + $0x3] sm:$0xff]
        %v645 = vld [vmem:[#allocation2 + $0xb] sm:$0xff]
        %v646 = vld [vmem:[#allocation2 + $0x13] sm:$0xff]
        %v647 = vld [vmem:[#allocation2 + $0x1b] sm:$0xff]
        %v648 = vld [vmem:[#allocation2 + $0x23] sm:$0xff]
        %v649 = vld [vmem:[#allocation2 + $0x2b] sm:$0xff]
        %v650 = vld [vmem:[#allocation2 + $0x33] sm:$0xff]
        %v651 = vld [vmem:[#allocation2 + $0x3b] sm:$0xff]
        %v652 = vld [vmem:[#allocation2 + $0x43] sm:$0xff]
        %v653 = vld [vmem:[#allocation2 + $0x4b] sm:$0xff]
        %v654 = vld [vmem:[#allocation2 + $0x53] sm:$0xff]
        %v655 = vld [vmem:[#allocation2 + $0x5b] sm:$0xff]
        %v656 = vld [vmem:[#allocation2 + $0x63] sm:$0xff]
        %v657 = vld [vmem:[#allocation2 + $0x6b] sm:$0xff]
        %v658 = vld [vmem:[#allocation2 + $0x73] sm:$0xff]
        %v659 = vld [vmem:[#allocation2 + $0x7b] sm:$0xff]
        %v660 = vld [vmem:[#allocation2 + $0x83] sm:$0xff]
        %v661 = vld [vmem:[#allocation2 + $0x8b] sm:$0xff]
        %v662 = vld [vmem:[#allocation2 + $0x93] sm:$0xff]
        %v663 = vld [vmem:[#allocation2 + $0x9b] sm:$0xff]
        %v664 = vld [vmem:[#allocation2 + $0xa3] sm:$0xff]
        %v665 = vld [vmem:[#allocation2 + $0xab] sm:$0xff]
        %v666 = vld [vmem:[#allocation2 + $0xb3] sm:$0xff]
        %v667 = vld [vmem:[#allocation2 + $0xbb] sm:$0xff]
        %v668 = vld [vmem:[#allocation2 + $0xc3] sm:$0xff]
        %v669 = vld [vmem:[#allocation2 + $0xcb] sm:$0xff]
        %v670 = vld [vmem:[#allocation2 + $0xd3] sm:$0xff]
        %v671 = vld [vmem:[#allocation2 + $0xdb] sm:$0xff]
        %v672 = vld [vmem:[#allocation2 + $0xe3] sm:$0xff]
        %v673 = vld [vmem:[#allocation2 + $0xeb] sm:$0xff]
        %v674 = vld [vmem:[#allocation2 + $0xf3] sm:$0xff]
        %v675 = vld [vmem:[#allocation2 + $0xfb] sm:$0xff]
        %676 = vst [vmem:[#allocation3 + $0x18] sm:$0xff] %v644
        %677 = vst [vmem:[#allocation3 + $0x40] sm:$0xff] %v645
        %678 = vst [vmem:[#allocation3 + $0x68] sm:$0xff] %v646
        %679 = vst [vmem:[#allocation3 + $0x90] sm:$0xff] %v647
        %680 = vst [vmem:[#allocation3 + $0xb8] sm:$0xff] %v648
        %681 = vst [vmem:[#allocation3 + $0xe0] sm:$0xff] %v649
        %682 = vst [vmem:[#allocation3 + $0x108] sm:$0xff] %v650
        %683 = vst [vmem:[#allocation3 + $0x130] sm:$0xff] %v651
        %684 = vst [vmem:[#allocation3 + $0x158] sm:$0xff] %v652
        %685 = vst [vmem:[#allocation3 + $0x180] sm:$0xff] %v653
        %686 = vst [vmem:[#allocation3 + $0x1a8] sm:$0xff] %v654
        %687 = vst [vmem:[#allocation3 + $0x1d0] sm:$0xff] %v655
        %688 = vst [vmem:[#allocation3 + $0x1f8] sm:$0xff] %v656
        %689 = vst [vmem:[#allocation3 + $0x220] sm:$0xff] %v657
        %690 = vst [vmem:[#allocation3 + $0x248] sm:$0xff] %v658
        %691 = vst [vmem:[#allocation3 + $0x270] sm:$0xff] %v659
        %692 = vst [vmem:[#allocation3 + $0x298] sm:$0xff] %v660
        %693 = vst [vmem:[#allocation3 + $0x2c0] sm:$0xff] %v661
        %694 = vst [vmem:[#allocation3 + $0x2e8] sm:$0xff] %v662
        %695 = vst [vmem:[#allocation3 + $0x310] sm:$0xff] %v663
        %696 = vst [vmem:[#allocation3 + $0x338] sm:$0xff] %v664
        %697 = vst [vmem:[#allocation3 + $0x360] sm:$0xff] %v665
        %698 = vst [vmem:[#allocation3 + $0x388] sm:$0xff] %v666
        %699 = vst [vmem:[#allocation3 + $0x3b0] sm:$0xff] %v667
        %700 = vst [vmem:[#allocation3 + $0x3d8] sm:$0xff] %v668
        %701 = vst [vmem:[#allocation3 + $0x400] sm:$0xff] %v669
        %702 = vst [vmem:[#allocation3 + $0x428] sm:$0xff] %v670
        %703 = vst [vmem:[#allocation3 + $0x450] sm:$0xff] %v671
        %704 = vst [vmem:[#allocation3 + $0x478] sm:$0xff] %v672
        %705 = vst [vmem:[#allocation3 + $0x4a0] sm:$0xff] %v673
        %706 = vst [vmem:[#allocation3 + $0x4c8] sm:$0xff] %v674
        %707 = vst [vmem:[#allocation3 + $0x4f0] sm:$0xff] %v675
        %v708 = vld [vmem:[#allocation2 + $0x4] sm:$0xff]
        %v709 = vld [vmem:[#allocation2 + $0xc] sm:$0xff]
        %v710 = vld [vmem:[#allocation2 + $0x14] sm:$0xff]
        %v711 = vld [vmem:[#allocation2 + $0x1c] sm:$0xff]
        %v712 = vld [vmem:[#allocation2 + $0x24] sm:$0xff]
        %v713 = vld [vmem:[#allocation2 + $0x2c] sm:$0xff]
        %v714 = vld [vmem:[#allocation2 + $0x34] sm:$0xff]
        %v715 = vld [vmem:[#allocation2 + $0x3c] sm:$0xff]
        %v716 = vld [vmem:[#allocation2 + $0x44] sm:$0xff]
        %v717 = vld [vmem:[#allocation2 + $0x4c] sm:$0xff]
        %v718 = vld [vmem:[#allocation2 + $0x54] sm:$0xff]
        %v719 = vld [vmem:[#allocation2 + $0x5c] sm:$0xff]
        %v720 = vld [vmem:[#allocation2 + $0x64] sm:$0xff]
        %v721 = vld [vmem:[#allocation2 + $0x6c] sm:$0xff]
        %v722 = vld [vmem:[#allocation2 + $0x74] sm:$0xff]
        %v723 = vld [vmem:[#allocation2 + $0x7c] sm:$0xff]
        %v724 = vld [vmem:[#allocation2 + $0x84] sm:$0xff]
        %v725 = vld [vmem:[#allocation2 + $0x8c] sm:$0xff]
        %v726 = vld [vmem:[#allocation2 + $0x94] sm:$0xff]
        %v727 = vld [vmem:[#allocation2 + $0x9c] sm:$0xff]
        %v728 = vld [vmem:[#allocation2 + $0xa4] sm:$0xff]
        %v729 = vld [vmem:[#allocation2 + $0xac] sm:$0xff]
        %v730 = vld [vmem:[#allocation2 + $0xb4] sm:$0xff]
        %v731 = vld [vmem:[#allocation2 + $0xbc] sm:$0xff]
        %v732 = vld [vmem:[#allocation2 + $0xc4] sm:$0xff]
        %v733 = vld [vmem:[#allocation2 + $0xcc] sm:$0xff]
        %v734 = vld [vmem:[#allocation2 + $0xd4] sm:$0xff]
        %v735 = vld [vmem:[#allocation2 + $0xdc] sm:$0xff]
        %v736 = vld [vmem:[#allocation2 + $0xe4] sm:$0xff]
        %v737 = vld [vmem:[#allocation2 + $0xec] sm:$0xff]
        %v738 = vld [vmem:[#allocation2 + $0xf4] sm:$0xff]
        %v739 = vld [vmem:[#allocation2 + $0xfc] sm:$0xff]
        %740 = vst [vmem:[#allocation3 + $0x20] sm:$0xff] %v708
        %741 = vst [vmem:[#allocation3 + $0x48] sm:$0xff] %v709
        %742 = vst [vmem:[#allocation3 + $0x70] sm:$0xff] %v710
        %743 = vst [vmem:[#allocation3 + $0x98] sm:$0xff] %v711
        %744 = vst [vmem:[#allocation3 + $0xc0] sm:$0xff] %v712
        %745 = vst [vmem:[#allocation3 + $0xe8] sm:$0xff] %v713
        %746 = vst [vmem:[#allocation3 + $0x110] sm:$0xff] %v714
        %747 = vst [vmem:[#allocation3 + $0x138] sm:$0xff] %v715
        %748 = vst [vmem:[#allocation3 + $0x160] sm:$0xff] %v716
        %749 = vst [vmem:[#allocation3 + $0x188] sm:$0xff] %v717
        %750 = vst [vmem:[#allocation3 + $0x1b0] sm:$0xff] %v718
        %751 = vst [vmem:[#allocation3 + $0x1d8] sm:$0xff] %v719
        %752 = vst [vmem:[#allocation3 + $0x200] sm:$0xff] %v720
        %753 = vst [vmem:[#allocation3 + $0x228] sm:$0xff] %v721
        %754 = vst [vmem:[#allocation3 + $0x250] sm:$0xff] %v722
        %755 = vst [vmem:[#allocation3 + $0x278] sm:$0xff] %v723
        %756 = vst [vmem:[#allocation3 + $0x2a0] sm:$0xff] %v724
        %757 = vst [vmem:[#allocation3 + $0x2c8] sm:$0xff] %v725
        %758 = vst [vmem:[#allocation3 + $0x2f0] sm:$0xff] %v726
        %759 = vst [vmem:[#allocation3 + $0x318] sm:$0xff] %v727
        %760 = vst [vmem:[#allocation3 + $0x340] sm:$0xff] %v728
        %761 = vst [vmem:[#allocation3 + $0x368] sm:$0xff] %v729
        %762 = vst [vmem:[#allocation3 + $0x390] sm:$0xff] %v730
        %763 = vst [vmem:[#allocation3 + $0x3b8] sm:$0xff] %v731
        %764 = vst [vmem:[#allocation3 + $0x3e0] sm:$0xff] %v732
        %765 = vst [vmem:[#allocation3 + $0x408] sm:$0xff] %v733
        %766 = vst [vmem:[#allocation3 + $0x430] sm:$0xff] %v734
        %767 = vst [vmem:[#allocation3 + $0x458] sm:$0xff] %v735
        %768 = vst [vmem:[#allocation3 + $0x480] sm:$0xff] %v736
        %769 = vst [vmem:[#allocation3 + $0x4a8] sm:$0xff] %v737
        %770 = vst [vmem:[#allocation3 + $0x4d0] sm:$0xff] %v738
        %771 = vst [vmem:[#allocation3 + $0x4f8] sm:$0xff] %v739
        %v772 = vld [vmem:[#allocation3] sm:$0xff]
        %v773 = vld [vmem:[#allocation3 + $0x8] sm:$0xff]
        %v774 = vld [vmem:[#allocation3 + $0x10] sm:$0xff]
        %v775 = vld [vmem:[#allocation3 + $0x18] sm:$0xff]
        %v776 = vld [vmem:[#allocation3 + $0x20] sm:$0xff]
        %v777 = vld [vmem:[#allocation3 + $0x28] sm:$0xff]
        %v778 = vld [vmem:[#allocation3 + $0x30] sm:$0xff]
        %v779 = vld [vmem:[#allocation3 + $0x38] sm:$0xff]
        %v780 = vld [vmem:[#allocation3 + $0x40] sm:$0xff]
        %v781 = vld [vmem:[#allocation3 + $0x48] sm:$0xff]
        %v782 = vld [vmem:[#allocation3 + $0x50] sm:$0xff]
        %v783 = vld [vmem:[#allocation3 + $0x58] sm:$0xff]
        %v784 = vld [vmem:[#allocation3 + $0x60] sm:$0xff]
        %v785 = vld [vmem:[#allocation3 + $0x68] sm:$0xff]
        %v786 = vld [vmem:[#allocation3 + $0x70] sm:$0xff]
        %v787 = vld [vmem:[#allocation3 + $0x78] sm:$0xff]
        %v788 = vld [vmem:[#allocation3 + $0x80] sm:$0xff]
        %v789 = vld [vmem:[#allocation3 + $0x88] sm:$0xff]
        %v790 = vld [vmem:[#allocation3 + $0x90] sm:$0xff]
        %v791 = vld [vmem:[#allocation3 + $0x98] sm:$0xff]
        %v792 = vld [vmem:[#allocation3 + $0xa0] sm:$0xff]
        %v793 = vld [vmem:[#allocation3 + $0xa8] sm:$0xff]
        %v794 = vld [vmem:[#allocation3 + $0xb0] sm:$0xff]
        %v795 = vld [vmem:[#allocation3 + $0xb8] sm:$0xff]
        %v796 = vld [vmem:[#allocation3 + $0xc0] sm:$0xff]
        %v797 = vld [vmem:[#allocation3 + $0xc8] sm:$0xff]
        %v798 = vld [vmem:[#allocation3 + $0xd0] sm:$0xff]
        %v799 = vld [vmem:[#allocation3 + $0xd8] sm:$0xff]
        %v800 = vld [vmem:[#allocation3 + $0xe0] sm:$0xff]
        %v801 = vld [vmem:[#allocation3 + $0xe8] sm:$0xff]
        %v802 = vld [vmem:[#allocation3 + $0xf0] sm:$0xff]
        %v803 = vld [vmem:[#allocation3 + $0xf8] sm:$0xff]
        %v804 = vld [vmem:[#allocation3 + $0x100] sm:$0xff]
        %v805 = vld [vmem:[#allocation3 + $0x108] sm:$0xff]
        %v806 = vld [vmem:[#allocation3 + $0x110] sm:$0xff]
        %v807 = vld [vmem:[#allocation3 + $0x118] sm:$0xff]
        %v808 = vld [vmem:[#allocation3 + $0x120] sm:$0xff]
        %v809 = vld [vmem:[#allocation3 + $0x128] sm:$0xff]
        %v810 = vld [vmem:[#allocation3 + $0x130] sm:$0xff]
        %v811 = vld [vmem:[#allocation3 + $0x138] sm:$0xff]
        %v812 = vld [vmem:[#allocation3 + $0x140] sm:$0xff]
        %v813 = vld [vmem:[#allocation3 + $0x148] sm:$0xff]
        %v814 = vld [vmem:[#allocation3 + $0x150] sm:$0xff]
        %v815 = vld [vmem:[#allocation3 + $0x158] sm:$0xff]
        %v816 = vld [vmem:[#allocation3 + $0x160] sm:$0xff]
        %v817 = vld [vmem:[#allocation3 + $0x168] sm:$0xff]
        %v818 = vld [vmem:[#allocation3 + $0x170] sm:$0xff]
        %v819 = vld [vmem:[#allocation3 + $0x178] sm:$0xff]
        %v820 = vld [vmem:[#allocation3 + $0x180] sm:$0xff]
        %v821 = vld [vmem:[#allocation3 + $0x188] sm:$0xff]
        %v822 = vld [vmem:[#allocation3 + $0x190] sm:$0xff]
        %v823 = vld [vmem:[#allocation3 + $0x198] sm:$0xff]
        %v824 = vld [vmem:[#allocation3 + $0x1a0] sm:$0xff]
        %v825 = vld [vmem:[#allocation3 + $0x1a8] sm:$0xff]
        %v826 = vld [vmem:[#allocation3 + $0x1b0] sm:$0xff]
        %v827 = vld [vmem:[#allocation3 + $0x1b8] sm:$0xff]
        %v828 = vld [vmem:[#allocation3 + $0x1c0] sm:$0xff]
        %v829 = vld [vmem:[#allocation3 + $0x1c8] sm:$0xff]
        %v830 = vld [vmem:[#allocation3 + $0x1d0] sm:$0xff]
        %v831 = vld [vmem:[#allocation3 + $0x1d8] sm:$0xff]
        %v832 = vld [vmem:[#allocation3 + $0x1e0] sm:$0xff]
        %v833 = vld [vmem:[#allocation3 + $0x1e8] sm:$0xff]
        %v834 = vld [vmem:[#allocation3 + $0x1f0] sm:$0xff]
        %v835 = vld [vmem:[#allocation3 + $0x1f8] sm:$0xff]
        %v836 = vld [vmem:[#allocation3 + $0x200] sm:$0xff]
        %v837 = vld [vmem:[#allocation3 + $0x208] sm:$0xff]
        %v838 = vld [vmem:[#allocation3 + $0x210] sm:$0xff]
        %v839 = vld [vmem:[#allocation3 + $0x218] sm:$0xff]
        %v840 = vld [vmem:[#allocation3 + $0x220] sm:$0xff]
        %v841 = vld [vmem:[#allocation3 + $0x228] sm:$0xff]
        %v842 = vld [vmem:[#allocation3 + $0x230] sm:$0xff]
        %v843 = vld [vmem:[#allocation3 + $0x238] sm:$0xff]
        %v844 = vld [vmem:[#allocation3 + $0x240] sm:$0xff]
        %v845 = vld [vmem:[#allocation3 + $0x248] sm:$0xff]
        %v846 = vld [vmem:[#allocation3 + $0x250] sm:$0xff]
        %v847 = vld [vmem:[#allocation3 + $0x258] sm:$0xff]
        %v848 = vld [vmem:[#allocation3 + $0x260] sm:$0xff]
        %v849 = vld [vmem:[#allocation3 + $0x268] sm:$0xff]
        %v850 = vld [vmem:[#allocation3 + $0x270] sm:$0xff]
        %v851 = vld [vmem:[#allocation3 + $0x278] sm:$0xff]
        %v852 = vld [vmem:[#allocation3 + $0x280] sm:$0xff]
        %v853 = vld [vmem:[#allocation3 + $0x288] sm:$0xff]
        %v854 = vld [vmem:[#allocation3 + $0x290] sm:$0xff]
        %v855 = vld [vmem:[#allocation3 + $0x298] sm:$0xff]
        %v856 = vld [vmem:[#allocation3 + $0x2a0] sm:$0xff]
        %v857 = vld [vmem:[#allocation3 + $0x2a8] sm:$0xff]
        %v858 = vld [vmem:[#allocation3 + $0x2b0] sm:$0xff]
        %v859 = vld [vmem:[#allocation3 + $0x2b8] sm:$0xff]
        %v860 = vld [vmem:[#allocation3 + $0x2c0] sm:$0xff]
        %v861 = vld [vmem:[#allocation3 + $0x2c8] sm:$0xff]
        %v862 = vld [vmem:[#allocation3 + $0x2d0] sm:$0xff]
        %v863 = vld [vmem:[#allocation3 + $0x2d8] sm:$0xff]
        %v864 = vld [vmem:[#allocation3 + $0x2e0] sm:$0xff]
        %v865 = vld [vmem:[#allocation3 + $0x2e8] sm:$0xff]
        %v866 = vld [vmem:[#allocation3 + $0x2f0] sm:$0xff]
        %v867 = vld [vmem:[#allocation3 + $0x2f8] sm:$0xff]
        %v868 = vld [vmem:[#allocation3 + $0x300] sm:$0xff]
        %v869 = vld [vmem:[#allocation3 + $0x308] sm:$0xff]
        %v870 = vld [vmem:[#allocation3 + $0x310] sm:$0xff]
        %v871 = vld [vmem:[#allocation3 + $0x318] sm:$0xff]
        %v872 = vld [vmem:[#allocation3 + $0x320] sm:$0xff]
        %v873 = vld [vmem:[#allocation3 + $0x328] sm:$0xff]
        %v874 = vld [vmem:[#allocation3 + $0x330] sm:$0xff]
        %v875 = vld [vmem:[#allocation3 + $0x338] sm:$0xff]
        %v876 = vld [vmem:[#allocation3 + $0x340] sm:$0xff]
        %v877 = vld [vmem:[#allocation3 + $0x348] sm:$0xff]
        %v878 = vld [vmem:[#allocation3 + $0x350] sm:$0xff]
        %v879 = vld [vmem:[#allocation3 + $0x358] sm:$0xff]
        %v880 = vld [vmem:[#allocation3 + $0x360] sm:$0xff]
        %v881 = vld [vmem:[#allocation3 + $0x368] sm:$0xff]
        %v882 = vld [vmem:[#allocation3 + $0x370] sm:$0xff]
        %v883 = vld [vmem:[#allocation3 + $0x378] sm:$0xff]
        %v884 = vld [vmem:[#allocation3 + $0x380] sm:$0xff]
        %v885 = vld [vmem:[#allocation3 + $0x388] sm:$0xff]
        %v886 = vld [vmem:[#allocation3 + $0x390] sm:$0xff]
        %v887 = vld [vmem:[#allocation3 + $0x398] sm:$0xff]
        %v888 = vld [vmem:[#allocation3 + $0x3a0] sm:$0xff]
        %v889 = vld [vmem:[#allocation3 + $0x3a8] sm:$0xff]
        %v890 = vld [vmem:[#allocation3 + $0x3b0] sm:$0xff]
        %v891 = vld [vmem:[#allocation3 + $0x3b8] sm:$0xff]
        %v892 = vld [vmem:[#allocation3 + $0x3c0] sm:$0xff]
        %v893 = vld [vmem:[#allocation3 + $0x3c8] sm:$0xff]
        %v894 = vld [vmem:[#allocation3 + $0x3d0] sm:$0xff]
        %v895 = vld [vmem:[#allocation3 + $0x3d8] sm:$0xff]
        %v896 = vld [vmem:[#allocation3 + $0x3e0] sm:$0xff]
        %v897 = vld [vmem:[#allocation3 + $0x3e8] sm:$0xff]
        %v898 = vld [vmem:[#allocation3 + $0x3f0] sm:$0xff]
        %v899 = vld [vmem:[#allocation3 + $0x3f8] sm:$0xff]
        %v900 = vld [vmem:[#allocation3 + $0x400] sm:$0xff]
        %v901 = vld [vmem:[#allocation3 + $0x408] sm:$0xff]
        %v902 = vld [vmem:[#allocation3 + $0x410] sm:$0xff]
        %v903 = vld [vmem:[#allocation3 + $0x418] sm:$0xff]
        %v904 = vld [vmem:[#allocation3 + $0x420] sm:$0xff]
        %v905 = vld [vmem:[#allocation3 + $0x428] sm:$0xff]
        %v906 = vld [vmem:[#allocation3 + $0x430] sm:$0xff]
        %v907 = vld [vmem:[#allocation3 + $0x438] sm:$0xff]
        %v908 = vld [vmem:[#allocation3 + $0x440] sm:$0xff]
        %v909 = vld [vmem:[#allocation3 + $0x448] sm:$0xff]
        %v910 = vld [vmem:[#allocation3 + $0x450] sm:$0xff]
        %v911 = vld [vmem:[#allocation3 + $0x458] sm:$0xff]
        %v912 = vld [vmem:[#allocation3 + $0x460] sm:$0xff]
        %v913 = vld [vmem:[#allocation3 + $0x468] sm:$0xff]
        %v914 = vld [vmem:[#allocation3 + $0x470] sm:$0xff]
        %v915 = vld [vmem:[#allocation3 + $0x478] sm:$0xff]
        %v916 = vld [vmem:[#allocation3 + $0x480] sm:$0xff]
        %v917 = vld [vmem:[#allocation3 + $0x488] sm:$0xff]
        %v918 = vld [vmem:[#allocation3 + $0x490] sm:$0xff]
        %v919 = vld [vmem:[#allocation3 + $0x498] sm:$0xff]
        %v920 = vld [vmem:[#allocation3 + $0x4a0] sm:$0xff]
        %v921 = vld [vmem:[#allocation3 + $0x4a8] sm:$0xff]
        %v922 = vld [vmem:[#allocation3 + $0x4b0] sm:$0xff]
        %v923 = vld [vmem:[#allocation3 + $0x4b8] sm:$0xff]
        %v924 = vld [vmem:[#allocation3 + $0x4c0] sm:$0xff]
        %v925 = vld [vmem:[#allocation3 + $0x4c8] sm:$0xff]
        %v926 = vld [vmem:[#allocation3 + $0x4d0] sm:$0xff]
        %v927 = vld [vmem:[#allocation3 + $0x4d8] sm:$0xff]
        %v928 = vld [vmem:[#allocation3 + $0x4e0] sm:$0xff]
        %v929 = vld [vmem:[#allocation3 + $0x4e8] sm:$0xff]
        %v930 = vld [vmem:[#allocation3 + $0x4f0] sm:$0xff]
        %v931 = vld [vmem:[#allocation3 + $0x4f8] sm:$0xff]
        %v932 = vld [vmem:[%s1] sm:$0xff]
        %v933 = vld [vmem:[%s1 + $0x8] sm:$0xff]
        %v934 = vld [vmem:[%s1 + $0x10] sm:$0xff]
        %v935 = vld [vmem:[%s1 + $0x18] sm:$0xff]
        %v936 = vld [vmem:[%s1 + $0x20] sm:$0xff]
        %v937 = vld [vmem:[%s1 + $0x28] sm:$0xff]
        %v938 = vld [vmem:[%s1 + $0x30] sm:$0xff]
        %v939 = vld [vmem:[%s1 + $0x38] sm:$0xff]
        %v940 = vld [vmem:[%s1 + $0x40] sm:$0xff]
        %v941 = vld [vmem:[%s1 + $0x48] sm:$0xff]
        %v942 = vld [vmem:[%s1 + $0x50] sm:$0xff]
        %v943 = vld [vmem:[%s1 + $0x58] sm:$0xff]
        %v944 = vld [vmem:[%s1 + $0x60] sm:$0xff]
        %v945 = vld [vmem:[%s1 + $0x68] sm:$0xff]
        %v946 = vld [vmem:[%s1 + $0x70] sm:$0xff]
        %v947 = vld [vmem:[%s1 + $0x78] sm:$0xff]
        %v948 = vld [vmem:[%s1 + $0x80] sm:$0xff]
        %v949 = vld [vmem:[%s1 + $0x88] sm:$0xff]
        %v950 = vld [vmem:[%s1 + $0x90] sm:$0xff]
        %v951 = vld [vmem:[%s1 + $0x98] sm:$0xff]
        %v952 = vld [vmem:[%s1 + $0xa0] sm:$0xff]
        %v953 = vld [vmem:[%s1 + $0xa8] sm:$0xff]
        %v954 = vld [vmem:[%s1 + $0xb0] sm:$0xff]
        %v955 = vld [vmem:[%s1 + $0xb8] sm:$0xff]
        %v956 = vld [vmem:[%s1 + $0xc0] sm:$0xff]
        %v957 = vld [vmem:[%s1 + $0xc8] sm:$0xff]
        %v958 = vld [vmem:[%s1 + $0xd0] sm:$0xff]
        %v959 = vld [vmem:[%s1 + $0xd8] sm:$0xff]
        %v960 = vld [vmem:[%s1 + $0xe0] sm:$0xff]
        %v961 = vld [vmem:[%s1 + $0xe8] sm:$0xff]
        %v962 = vld [vmem:[%s1 + $0xf0] sm:$0xff]
        %v963 = vld [vmem:[%s1 + $0xf8] sm:$0xff]
        %v964 = vld [vmem:[%s1 + $0x100] sm:$0xff]
        %v965 = vld [vmem:[%s1 + $0x108] sm:$0xff]
        %v966 = vld [vmem:[%s1 + $0x110] sm:$0xff]
        %v967 = vld [vmem:[%s1 + $0x118] sm:$0xff]
        %v968 = vld [vmem:[%s1 + $0x120] sm:$0xff]
        %v969 = vld [vmem:[%s1 + $0x128] sm:$0xff]
        %v970 = vld [vmem:[%s1 + $0x130] sm:$0xff]
        %v971 = vld [vmem:[%s1 + $0x138] sm:$0xff]
        %v972 = vld [vmem:[%s1 + $0x140] sm:$0xff]
        %v973 = vld [vmem:[%s1 + $0x148] sm:$0xff]
        %v974 = vld [vmem:[%s1 + $0x150] sm:$0xff]
        %v975 = vld [vmem:[%s1 + $0x158] sm:$0xff]
        %v976 = vld [vmem:[%s1 + $0x160] sm:$0xff]
        %v977 = vld [vmem:[%s1 + $0x168] sm:$0xff]
        %v978 = vld [vmem:[%s1 + $0x170] sm:$0xff]
        %v979 = vld [vmem:[%s1 + $0x178] sm:$0xff]
        %v980 = vld [vmem:[%s1 + $0x180] sm:$0xff]
        %v981 = vld [vmem:[%s1 + $0x188] sm:$0xff]
        %v982 = vld [vmem:[%s1 + $0x190] sm:$0xff]
        %v983 = vld [vmem:[%s1 + $0x198] sm:$0xff]
        %v984 = vld [vmem:[%s1 + $0x1a0] sm:$0xff]
        %v985 = vld [vmem:[%s1 + $0x1a8] sm:$0xff]
        %v986 = vld [vmem:[%s1 + $0x1b0] sm:$0xff]
        %v987 = vld [vmem:[%s1 + $0x1b8] sm:$0xff]
        %v988 = vld [vmem:[%s1 + $0x1c0] sm:$0xff]
        %v989 = vld [vmem:[%s1 + $0x1c8] sm:$0xff]
        %v990 = vld [vmem:[%s1 + $0x1d0] sm:$0xff]
        %v991 = vld [vmem:[%s1 + $0x1d8] sm:$0xff]
        %v992 = vld [vmem:[%s1 + $0x1e0] sm:$0xff]
        %v993 = vld [vmem:[%s1 + $0x1e8] sm:$0xff]
        %v994 = vld [vmem:[%s1 + $0x1f0] sm:$0xff]
        %v995 = vld [vmem:[%s1 + $0x1f8] sm:$0xff]
        %v996 = vld [vmem:[%s1 + $0x200] sm:$0xff]
        %v997 = vld [vmem:[%s1 + $0x208] sm:$0xff]
        %v998 = vld [vmem:[%s1 + $0x210] sm:$0xff]
        %v999 = vld [vmem:[%s1 + $0x218] sm:$0xff]
        %v1000 = vld [vmem:[%s1 + $0x220] sm:$0xff]
        %v1001 = vld [vmem:[%s1 + $0x228] sm:$0xff]
        %v1002 = vld [vmem:[%s1 + $0x230] sm:$0xff]
        %v1003 = vld [vmem:[%s1 + $0x238] sm:$0xff]
        %v1004 = vld [vmem:[%s1 + $0x240] sm:$0xff]
        %v1005 = vld [vmem:[%s1 + $0x248] sm:$0xff]
        %v1006 = vld [vmem:[%s1 + $0x250] sm:$0xff]
        %v1007 = vld [vmem:[%s1 + $0x258] sm:$0xff]
        %v1008 = vld [vmem:[%s1 + $0x260] sm:$0xff]
        %v1009 = vld [vmem:[%s1 + $0x268] sm:$0xff]
        %v1010 = vld [vmem:[%s1 + $0x270] sm:$0xff]
        %v1011 = vld [vmem:[%s1 + $0x278] sm:$0xff]
        %v1012 = vld [vmem:[%s1 + $0x280] sm:$0xff]
        %v1013 = vld [vmem:[%s1 + $0x288] sm:$0xff]
        %v1014 = vld [vmem:[%s1 + $0x290] sm:$0xff]
        %v1015 = vld [vmem:[%s1 + $0x298] sm:$0xff]
        %v1016 = vld [vmem:[%s1 + $0x2a0] sm:$0xff]
        %v1017 = vld [vmem:[%s1 + $0x2a8] sm:$0xff]
        %v1018 = vld [vmem:[%s1 + $0x2b0] sm:$0xff]
        %v1019 = vld [vmem:[%s1 + $0x2b8] sm:$0xff]
        %v1020 = vld [vmem:[%s1 + $0x2c0] sm:$0xff]
        %v1021 = vld [vmem:[%s1 + $0x2c8] sm:$0xff]
        %v1022 = vld [vmem:[%s1 + $0x2d0] sm:$0xff]
        %v1023 = vld [vmem:[%s1 + $0x2d8] sm:$0xff]
        %v1024 = vld [vmem:[%s1 + $0x2e0] sm:$0xff]
        %v1025 = vld [vmem:[%s1 + $0x2e8] sm:$0xff]
        %v1026 = vld [vmem:[%s1 + $0x2f0] sm:$0xff]
        %v1027 = vld [vmem:[%s1 + $0x2f8] sm:$0xff]
        %v1028 = vld [vmem:[%s1 + $0x300] sm:$0xff]
        %v1029 = vld [vmem:[%s1 + $0x308] sm:$0xff]
        %v1030 = vld [vmem:[%s1 + $0x310] sm:$0xff]
        %v1031 = vld [vmem:[%s1 + $0x318] sm:$0xff]
        %v1032 = vld [vmem:[%s1 + $0x320] sm:$0xff]
        %v1033 = vld [vmem:[%s1 + $0x328] sm:$0xff]
        %v1034 = vld [vmem:[%s1 + $0x330] sm:$0xff]
        %v1035 = vld [vmem:[%s1 + $0x338] sm:$0xff]
        %v1036 = vld [vmem:[%s1 + $0x340] sm:$0xff]
        %v1037 = vld [vmem:[%s1 + $0x348] sm:$0xff]
        %v1038 = vld [vmem:[%s1 + $0x350] sm:$0xff]
        %v1039 = vld [vmem:[%s1 + $0x358] sm:$0xff]
        %v1040 = vld [vmem:[%s1 + $0x360] sm:$0xff]
        %v1041 = vld [vmem:[%s1 + $0x368] sm:$0xff]
        %v1042 = vld [vmem:[%s1 + $0x370] sm:$0xff]
        %v1043 = vld [vmem:[%s1 + $0x378] sm:$0xff]
        %v1044 = vld [vmem:[%s1 + $0x380] sm:$0xff]
        %v1045 = vld [vmem:[%s1 + $0x388] sm:$0xff]
        %v1046 = vld [vmem:[%s1 + $0x390] sm:$0xff]
        %v1047 = vld [vmem:[%s1 + $0x398] sm:$0xff]
        %v1048 = vld [vmem:[%s1 + $0x3a0] sm:$0xff]
        %v1049 = vld [vmem:[%s1 + $0x3a8] sm:$0xff]
        %v1050 = vld [vmem:[%s1 + $0x3b0] sm:$0xff]
        %v1051 = vld [vmem:[%s1 + $0x3b8] sm:$0xff]
        %v1052 = vld [vmem:[%s1 + $0x3c0] sm:$0xff]
        %v1053 = vld [vmem:[%s1 + $0x3c8] sm:$0xff]
        %v1054 = vld [vmem:[%s1 + $0x3d0] sm:$0xff]
        %v1055 = vld [vmem:[%s1 + $0x3d8] sm:$0xff]
        %v1056 = vld [vmem:[%s1 + $0x3e0] sm:$0xff]
        %v1057 = vld [vmem:[%s1 + $0x3e8] sm:$0xff]
        %v1058 = vld [vmem:[%s1 + $0x3f0] sm:$0xff]
        %v1059 = vld [vmem:[%s1 + $0x3f8] sm:$0xff]
        %v1060 = vld [vmem:[%s1 + $0x400] sm:$0xff]
        %v1061 = vld [vmem:[%s1 + $0x408] sm:$0xff]
        %v1062 = vld [vmem:[%s1 + $0x410] sm:$0xff]
        %v1063 = vld [vmem:[%s1 + $0x418] sm:$0xff]
        %v1064 = vld [vmem:[%s1 + $0x420] sm:$0xff]
        %v1065 = vld [vmem:[%s1 + $0x428] sm:$0xff]
        %v1066 = vld [vmem:[%s1 + $0x430] sm:$0xff]
        %v1067 = vld [vmem:[%s1 + $0x438] sm:$0xff]
        %v1068 = vld [vmem:[%s1 + $0x440] sm:$0xff]
        %v1069 = vld [vmem:[%s1 + $0x448] sm:$0xff]
        %v1070 = vld [vmem:[%s1 + $0x450] sm:$0xff]
        %v1071 = vld [vmem:[%s1 + $0x458] sm:$0xff]
        %v1072 = vld [vmem:[%s1 + $0x460] sm:$0xff]
        %v1073 = vld [vmem:[%s1 + $0x468] sm:$0xff]
        %v1074 = vld [vmem:[%s1 + $0x470] sm:$0xff]
        %v1075 = vld [vmem:[%s1 + $0x478] sm:$0xff]
        %v1076 = vld [vmem:[%s1 + $0x480] sm:$0xff]
        %v1077 = vld [vmem:[%s1 + $0x488] sm:$0xff]
        %v1078 = vld [vmem:[%s1 + $0x490] sm:$0xff]
        %v1079 = vld [vmem:[%s1 + $0x498] sm:$0xff]
        %v1080 = vld [vmem:[%s1 + $0x4a0] sm:$0xff]
        %v1081 = vld [vmem:[%s1 + $0x4a8] sm:$0xff]
        %v1082 = vld [vmem:[%s1 + $0x4b0] sm:$0xff]
        %v1083 = vld [vmem:[%s1 + $0x4b8] sm:$0xff]
        %v1084 = vld [vmem:[%s1 + $0x4c0] sm:$0xff]
        %v1085 = vld [vmem:[%s1 + $0x4c8] sm:$0xff]
        %v1086 = vld [vmem:[%s1 + $0x4d0] sm:$0xff]
        %v1087 = vld [vmem:[%s1 + $0x4d8] sm:$0xff]
        %v1088 = vld [vmem:[%s1 + $0x4e0] sm:$0xff]
        %v1089 = vld [vmem:[%s1 + $0x4e8] sm:$0xff]
        %v1090 = vld [vmem:[%s1 + $0x4f0] sm:$0xff]
        %v1091 = vld [vmem:[%s1 + $0x4f8] sm:$0xff]
        %1092 = vmatprep.subr.mxu0 %v933
        %1093 = vmatpush1.msra.mxu0 %v932
        %1094 = vmatprep.subr.mxu0 %v935
        %1095 = vmatpush1.msra.mxu0 %v934
        %1096 = vmatprep.subr.mxu0 %v937
        %1097 = vmatpush1.msra.mxu0 %v936
        %1098 = vmatprep.subr.mxu0 %v939
        %1099 = vmatpush1.msra.mxu0 %v938
        %1100 = vmatprep.subr.mxu0 %v941
        %1101 = vmatpush1.msra.mxu0 %v940
        %1102 = vmatprep.subr.mxu0 %v943
        %1103 = vmatpush1.msra.mxu0 %v942
        %1104 = vmatprep.subr.mxu0 %v945
        %1105 = vmatpush1.msra.mxu0 %v944
        %1106 = vmatprep.subr.mxu0 %v947
        %1107 = vmatpush1.msra.mxu0 %v946
        %1108 = vmatprep.subr.mxu0 %v949
        %1109 = vmatpush1.msra.mxu0 %v948
        %1110 = vmatprep.subr.mxu0 %v951
        %1111 = vmatpush1.msra.mxu0 %v950
        %1112 = vmatprep.subr.mxu0 %v953
        %1113 = vmatpush1.msra.mxu0 %v952
        %1114 = vmatprep.subr.mxu0 %v955
        %1115 = vmatpush1.msra.mxu0 %v954
        %1116 = vmatprep.subr.mxu0 %v957
        %1117 = vmatpush1.msra.mxu0 %v956
        %1118 = vmatprep.subr.mxu0 %v959
        %1119 = vmatpush1.msra.mxu0 %v958
        %1120 = vmatprep.subr.mxu0 %v961
        %1121 = vmatpush1.msra.mxu0 %v960
        %1122 = vmatprep.subr.mxu0 %v963
        %1123 = vmatpush1.msra.mxu0 %v962
        %1124 = vmatprep.subr.mxu0 %v965
        %1125 = vmatpush1.msra.mxu0 %v964
        %1126 = vmatprep.subr.mxu0 %v967
        %1127 = vmatpush1.msra.mxu0 %v966
        %1128 = vmatprep.subr.mxu0 %v969
        %1129 = vmatpush1.msra.mxu0 %v968
        %1130 = vmatprep.subr.mxu0 %v971
        %1131 = vmatpush1.msra.mxu0 %v970
        %1132 = vmatprep.subr.mxu0 %v973
        %1133 = vmatpush1.msra.mxu0 %v972
        %1134 = vmatprep.subr.mxu0 %v975
        %1135 = vmatpush1.msra.mxu0 %v974
        %1136 = vmatprep.subr.mxu0 %v977
        %1137 = vmatpush1.msra.mxu0 %v976
        %1138 = vmatprep.subr.mxu0 %v979
        %1139 = vmatpush1.msra.mxu0 %v978
        %1140 = vmatprep.subr.mxu0 %v981
        %1141 = vmatpush1.msra.mxu0 %v980
        %1142 = vmatprep.subr.mxu0 %v983
        %1143 = vmatpush1.msra.mxu0 %v982
        %1144 = vmatprep.subr.mxu0 %v985
        %1145 = vmatpush1.msra.mxu0 %v984
        %1146 = vmatprep.subr.mxu0 %v987
        %1147 = vmatpush1.msra.mxu0 %v986
        %1148 = vmatprep.subr.mxu0 %v989
        %1149 = vmatpush1.msra.mxu0 %v988
        %1150 = vmatprep.subr.mxu0 %v991
        %1151 = vmatpush1.msra.mxu0 %v990
        %1152 = vmatprep.subr.mxu0 %v993
        %1153 = vmatpush1.msra.mxu0 %v992
        %1154 = vmatprep.subr.mxu0 %v995
        %1155 = vmatpush1.msra.mxu0 %v994
        %1156 = vmatprep.mubr.f32.mxu0 %v773
        %1157 = vmatmul.mubr.f32.gmra.mrb[0].mxu0 %v772
        %v1158 = vpop.f32.mrb[0].mxu0
        %v1159 = vadd.f32 0.0, %v1158
        %v1160 = vpop.f32.mrb[0].mxu0
        %v1161 = vadd.f32 0.0, %v1160
        %1162 = vmatprep.mubr.f32.mxu0 %v778
        %1163 = vmatmul.mubr.f32.gmra.mrb[0].mxu0 %v777
        %v1164 = vpop.f32.mrb[0].mxu0
        %v1165 = vadd.f32 0.0, %v1164
        %v1166 = vpop.f32.mrb[0].mxu0
        %v1167 = vadd.f32 0.0, %v1166
        %1168 = vmatprep.mubr.f32.mxu0 %v783
        %1169 = vmatmul.mubr.f32.gmra.mrb[0].mxu0 %v782
        %v1170 = vpop.f32.mrb[0].mxu0
        %v1171 = vadd.f32 0.0, %v1170
        %v1172 = vpop.f32.mrb[0].mxu0
        %v1173 = vadd.f32 0.0, %v1172
        %1174 = vmatprep.mubr.f32.mxu0 %v788
        %1175 = vmatmul.mubr.f32.gmra.mrb[0].mxu0 %v787
        %v1176 = vpop.f32.mrb[0].mxu0
        %v1177 = vadd.f32 0.0, %v1176
        %v1178 = vpop.f32.mrb[0].mxu0
        %v1179 = vadd.f32 0.0, %v1178
        %1180 = vmatprep.mubr.f32.mxu0 %v793
        %1181 = vmatmul.mubr.f32.gmra.mrb[0].mxu0 %v792
        %v1182 = vpop.f32.mrb[0].mxu0
        %v1183 = vadd.f32 0.0, %v1182
        %v1184 = vpop.f32.mrb[0].mxu0
        %v1185 = vadd.f32 0.0, %v1184
        %1186 = vmatprep.mubr.f32.mxu0 %v798
        %1187 = vmatmul.mubr.f32.gmra.mrb[0].mxu0 %v797
        %v1188 = vpop.f32.mrb[0].mxu0
        %v1189 = vadd.f32 0.0, %v1188
        %v1190 = vpop.f32.mrb[0].mxu0
        %v1191 = vadd.f32 0.0, %v1190
        %1192 = vmatprep.mubr.f32.mxu0 %v803
        %1193 = vmatmul.mubr.f32.gmra.mrb[0].mxu0 %v802
        %v1194 = vpop.f32.mrb[0].mxu0
        %v1195 = vadd.f32 0.0, %v1194
        %v1196 = vpop.f32.mrb[0].mxu0
        %v1197 = vadd.f32 0.0, %v1196
        %1198 = vmatprep.mubr.f32.mxu0 %v808
        %1199 = vmatmul.mubr.f32.gmra.mrb[0].mxu0 %v807
        %v1200 = vpop.f32.mrb[0].mxu0
        %v1201 = vadd.f32 0.0, %v1200
        %v1202 = vpop.f32.mrb[0].mxu0
        %v1203 = vadd.f32 0.0, %v1202
        %1204 = vmatprep.mubr.f32.mxu0 %v813
        %1205 = vmatmul.mubr.f32.gmra.mrb[0].mxu0 %v812
        %v1206 = vpop.f32.mrb[0].mxu0
        %v1207 = vadd.f32 0.0, %v1206
        %v1208 = vpop.f32.mrb[0].mxu0
        %v1209 = vadd.f32 0.0, %v1208
        %1210 = vmatprep.mubr.f32.mxu0 %v818
        %1211 = vmatmul.mubr.f32.gmra.mrb[0].mxu0 %v817
        %v1212 = vpop.f32.mrb[0].mxu0
        %v1213 = vadd.f32 0.0, %v1212
        %v1214 = vpop.f32.mrb[0].mxu0
        %v1215 = vadd.f32 0.0, %v1214
        %1216 = vmatprep.mubr.f32.mxu0 %v823
        %1217 = vmatmul.mubr.f32.gmra.mrb[0].mxu0 %v822
        %v1218 = vpop.f32.mrb[0].mxu0
        %v1219 = vadd.f32 0.0, %v1218
        %v1220 = vpop.f32.mrb[0].mxu0
        %v1221 = vadd.f32 0.0, %v1220
        %1222 = vmatprep.mubr.f32.mxu0 %v828
        %1223 = vmatmul.mubr.f32.gmra.mrb[0].mxu0 %v827
        %v1224 = vpop.f32.mrb[0].mxu0
        %v1225 = vadd.f32 0.0, %v1224
        %v1226 = vpop.f32.mrb[0].mxu0
        %v1227 = vadd.f32 0.0, %v1226
        %1228 = vmatprep.mubr.f32.mxu0 %v833
        %1229 = vmatmul.mubr.f32.gmra.mrb[0].mxu0 %v832
        %v1230 = vpop.f32.mrb[0].mxu0
        %v1231 = vadd.f32 0.0, %v1230
        %v1232 = vpop.f32.mrb[0].mxu0
        %v1233 = vadd.f32 0.0, %v1232
        %1234 = vmatprep.mubr.f32.mxu0 %v838
        %1235 = vmatmul.mubr.f32.gmra.mrb[0].mxu0 %v837
        %v1236 = vpop.f32.mrb[0].mxu0
        %v1237 = vadd.f32 0.0, %v1236
        %v1238 = vpop.f32.mrb[0].mxu0
        %v1239 = vadd.f32 0.0, %v1238
        %1240 = vmatprep.mubr.f32.mxu0 %v843
        %1241 = vmatmul.mubr.f32.gmra.mrb[0].mxu0 %v842
        %v1242 = vpop.f32.mrb[0].mxu0
        %v1243 = vadd.f32 0.0, %v1242
        %v1244 = vpop.f32.mrb[0].mxu0
        %v1245 = vadd.f32 0.0, %v1244
        %1246 = vmatprep.mubr.f32.mxu0 %v848
        %1247 = vmatmul.mubr.f32.gmra.mrb[0].mxu0 %v847
        %v1248 = vpop.f32.mrb[0].mxu0
        %v1249 = vadd.f32 0.0, %v1248
        %v1250 = vpop.f32.mrb[0].mxu0
        %v1251 = vadd.f32 0.0, %v1250
        %1252 = vmatprep.mubr.f32.mxu0 %v853
        %1253 = vmatmul.mubr.f32.gmra.mrb[0].mxu0 %v852
        %v1254 = vpop.f32.mrb[0].mxu0
        %v1255 = vadd.f32 0.0, %v1254
        %v1256 = vpop.f32.mrb[0].mxu0
        %v1257 = vadd.f32 0.0, %v1256
        %1258 = vmatprep.mubr.f32.mxu0 %v858
        %1259 = vmatmul.mubr.f32.gmra.mrb[0].mxu0 %v857
        %v1260 = vpop.f32.mrb[0].mxu0
        %v1261 = vadd.f32 0.0, %v1260
        %v1262 = vpop.f32.mrb[0].mxu0
        %v1263 = vadd.f32 0.0, %v1262
        %1264 = vmatprep.mubr.f32.mxu0 %v863
        %1265 = vmatmul.mubr.f32.gmra.mrb[0].mxu0 %v862
        %v1266 = vpop.f32.mrb[0].mxu0
        %v1267 = vadd.f32 0.0, %v1266
        %v1268 = vpop.f32.mrb[0].mxu0
        %v1269 = vadd.f32 0.0, %v1268
        %1270 = vmatprep.mubr.f32.mxu0 %v868
        %1271 = vmatmul.mubr.f32.gmra.mrb[0].mxu0 %v867
        %v1272 = vpop.f32.mrb[0].mxu0
        %v1273 = vadd.f32 0.0, %v1272
        %v1274 = vpop.f32.mrb[0].mxu0
        %v1275 = vadd.f32 0.0, %v1274
        %1276 = vmatprep.mubr.f32.mxu0 %v873
        %1277 = vmatmul.mubr.f32.gmra.mrb[0].mxu0 %v872
        %v1278 = vpop.f32.mrb[0].mxu0
        %v1279 = vadd.f32 0.0, %v1278
        %v1280 = vpop.f32.mrb[0].mxu0
        %v1281 = vadd.f32 0.0, %v1280
        %1282 = vmatprep.mubr.f32.mxu0 %v878
        %1283 = vmatmul.mubr.f32.gmra.mrb[0].mxu0 %v877
        %v1284 = vpop.f32.mrb[0].mxu0
        %v1285 = vadd.f32 0.0, %v1284
        %v1286 = vpop.f32.mrb[0].mxu0
        %v1287 = vadd.f32 0.0, %v1286
        %1288 = vmatprep.mubr.f32.mxu0 %v883
        %1289 = vmatmul.mubr.f32.gmra.mrb[0].mxu0 %v882
        %v1290 = vpop.f32.mrb[0].mxu0
        %v1291 = vadd.f32 0.0, %v1290
        %v1292 = vpop.f32.mrb[0].mxu0
        %v1293 = vadd.f32 0.0, %v1292
        %1294 = vmatprep.mubr.f32.mxu0 %v888
        %1295 = vmatmul.mubr.f32.gmra.mrb[0].mxu0 %v887
        %v1296 = vpop.f32.mrb[0].mxu0
        %v1297 = vadd.f32 0.0, %v1296
        %v1298 = vpop.f32.mrb[0].mxu0
        %v1299 = vadd.f32 0.0, %v1298
        %1300 = vmatprep.mubr.f32.mxu0 %v893
        %1301 = vmatmul.mubr.f32.gmra.mrb[0].mxu0 %v892
        %v1302 = vpop.f32.mrb[0].mxu0
        %v1303 = vadd.f32 0.0, %v1302
        %v1304 = vpop.f32.mrb[0].mxu0
        %v1305 = vadd.f32 0.0, %v1304
        %1306 = vmatprep.mubr.f32.mxu0 %v898
        %1307 = vmatmul.mubr.f32.gmra.mrb[0].mxu0 %v897
        %v1308 = vpop.f32.mrb[0].mxu0
        %v1309 = vadd.f32 0.0, %v1308
        %v1310 = vpop.f32.mrb[0].mxu0
        %v1311 = vadd.f32 0.0, %v1310
        %1312 = vmatprep.mubr.f32.mxu0 %v903
        %1313 = vmatmul.mubr.f32.gmra.mrb[0].mxu0 %v902
        %v1314 = vpop.f32.mrb[0].mxu0
        %v1315 = vadd.f32 0.0, %v1314
        %v1316 = vpop.f32.mrb[0].mxu0
        %v1317 = vadd.f32 0.0, %v1316
        %1318 = vmatprep.mubr.f32.mxu0 %v908
        %1319 = vmatmul.mubr.f32.gmra.mrb[0].mxu0 %v907
        %v1320 = vpop.f32.mrb[0].mxu0
        %v1321 = vadd.f32 0.0, %v1320
        %v1322 = vpop.f32.mrb[0].mxu0
        %v1323 = vadd.f32 0.0, %v1322
        %1324 = vmatprep.mubr.f32.mxu0 %v913
        %1325 = vmatmul.mubr.f32.gmra.mrb[0].mxu0 %v912
        %v1326 = vpop.f32.mrb[0].mxu0
        %v1327 = vadd.f32 0.0, %v1326
        %v1328 = vpop.f32.mrb[0].mxu0
        %v1329 = vadd.f32 0.0, %v1328
        %1330 = vmatprep.mubr.f32.mxu0 %v918
        %1331 = vmatmul.mubr.f32.gmra.mrb[0].mxu0 %v917
        %v1332 = vpop.f32.mrb[0].mxu0
        %v1333 = vadd.f32 0.0, %v1332
        %v1334 = vpop.f32.mrb[0].mxu0
        %v1335 = vadd.f32 0.0, %v1334
        %1336 = vmatprep.mubr.f32.mxu0 %v923
        %1337 = vmatmul.mubr.f32.gmra.mrb[0].mxu0 %v922
        %v1338 = vpop.f32.mrb[0].mxu0
        %v1339 = vadd.f32 0.0, %v1338
        %v1340 = vpop.f32.mrb[0].mxu0
        %v1341 = vadd.f32 0.0, %v1340
        %1342 = vmatprep.mubr.f32.mxu0 %v928
        %1343 = vmatmul.mubr.f32.gmra.mrb[0].mxu0 %v927
        %v1344 = vpop.f32.mrb[0].mxu0
        %v1345 = vadd.f32 0.0, %v1344
        %v1346 = vpop.f32.mrb[0].mxu0
        %v1347 = vadd.f32 0.0, %v1346
        %1348 = vdwg.mxu0
        %1349 = vmatprep.subr.mxu0 %v997
        %1350 = vmatpush1.msra.mxu0 %v996
        %1351 = vmatprep.subr.mxu0 %v999
        %1352 = vmatpush1.msra.mxu0 %v998
        %1353 = vmatprep.subr.mxu0 %v1001
        %1354 = vmatpush1.msra.mxu0 %v1000
        %1355 = vmatprep.subr.mxu0 %v1003
        %1356 = vmatpush1.msra.mxu0 %v1002
        %1357 = vmatprep.subr.mxu0 %v1005
        %1358 = vmatpush1.msra.mxu0 %v1004
        %1359 = vmatprep.subr.mxu0 %v1007
        %1360 = vmatpush1.msra.mxu0 %v1006
        %1361 = vmatprep.subr.mxu0 %v1009
        %1362 = vmatpush1.msra.mxu0 %v1008
        %1363 = vmatprep.subr.mxu0 %v1011
        %1364 = vmatpush1.msra.mxu0 %v1010
        %1365 = vmatprep.subr.mxu0 %v1013
        %1366 = vmatpush1.msra.mxu0 %v1012
        %1367 = vmatprep.subr.mxu0 %v1015
        %1368 = vmatpush1.msra.mxu0 %v1014
        %1369 = vmatprep.subr.mxu0 %v1017
        %1370 = vmatpush1.msra.mxu0 %v1016
        %1371 = vmatprep.subr.mxu0 %v1019
        %1372 = vmatpush1.msra.mxu0 %v1018
        %1373 = vmatprep.subr.mxu0 %v1021
        %1374 = vmatpush1.msra.mxu0 %v1020
        %1375 = vmatprep.subr.mxu0 %v1023
        %1376 = vmatpush1.msra.mxu0 %v1022
        %1377 = vmatprep.subr.mxu0 %v1025
        %1378 = vmatpush1.msra.mxu0 %v1024
        %1379 = vmatprep.subr.mxu0 %v1027
        %1380 = vmatpush1.msra.mxu0 %v1026
        %1381 = vmatprep.subr.mxu0 %v1029
        %1382 = vmatpush1.msra.mxu0 %v1028
        %1383 = vmatprep.subr.mxu0 %v1031
        %1384 = vmatpush1.msra.mxu0 %v1030
        %1385 = vmatprep.subr.mxu0 %v1033
        %1386 = vmatpush1.msra.mxu0 %v1032
        %1387 = vmatprep.subr.mxu0 %v1035
        %1388 = vmatpush1.msra.mxu0 %v1034
        %1389 = vmatprep.subr.mxu0 %v1037
        %1390 = vmatpush1.msra.mxu0 %v1036
        %1391 = vmatprep.subr.mxu0 %v1039
        %1392 = vmatpush1.msra.mxu0 %v1038
        %1393 = vmatprep.subr.mxu0 %v1041
        %1394 = vmatpush1.msra.mxu0 %v1040
        %1395 = vmatprep.subr.mxu0 %v1043
        %1396 = vmatpush1.msra.mxu0 %v1042
        %1397 = vmatprep.subr.mxu0 %v1045
        %1398 = vmatpush1.msra.mxu0 %v1044
        %1399 = vmatprep.subr.mxu0 %v1047
        %1400 = vmatpush1.msra.mxu0 %v1046
        %1401 = vmatprep.subr.mxu0 %v1049
        %1402 = vmatpush1.msra.mxu0 %v1048
        %1403 = vmatprep.subr.mxu0 %v1051
        %1404 = vmatpush1.msra.mxu0 %v1050
        %1405 = vmatprep.subr.mxu0 %v1053
        %1406 = vmatpush1.msra.mxu0 %v1052
        %1407 = vmatprep.subr.mxu0 %v1055
        %1408 = vmatpush1.msra.mxu0 %v1054
        %1409 = vmatprep.subr.mxu0 %v1057
        %1410 = vmatpush1.msra.mxu0 %v1056
        %1411 = vmatprep.subr.mxu0 %v1059
        %1412 = vmatpush1.msra.mxu0 %v1058
        %1413 = vmatprep.mubr.f32.mxu0 %v775
        %1414 = vmatmul.mubr.f32.gmra.mrb[0].mxu0 %v774
        %v1415 = vpop.f32.mrb[0].mxu0
        %v1416 = vadd.f32 %v1159, %v1415
        %v1417 = vpop.f32.mrb[0].mxu0
        %v1418 = vadd.f32 %v1161, %v1417
        %1419 = vmatprep.mubr.f32.mxu0 %v780
        %1420 = vmatmul.mubr.f32.gmra.mrb[0].mxu0 %v779
        %v1421 = vpop.f32.mrb[0].mxu0
        %v1422 = vadd.f32 %v1165, %v1421
        %v1423 = vpop.f32.mrb[0].mxu0
        %v1424 = vadd.f32 %v1167, %v1423
        %1425 = vmatprep.mubr.f32.mxu0 %v785
        %1426 = vmatmul.mubr.f32.gmra.mrb[0].mxu0 %v784
        %v1427 = vpop.f32.mrb[0].mxu0
        %v1428 = vadd.f32 %v1171, %v1427
        %v1429 = vpop.f32.mrb[0].mxu0
        %v1430 = vadd.f32 %v1173, %v1429
        %1431 = vmatprep.mubr.f32.mxu0 %v790
        %1432 = vmatmul.mubr.f32.gmra.mrb[0].mxu0 %v789
        %v1433 = vpop.f32.mrb[0].mxu0
        %v1434 = vadd.f32 %v1177, %v1433
        %v1435 = vpop.f32.mrb[0].mxu0
        %v1436 = vadd.f32 %v1179, %v1435
        %1437 = vmatprep.mubr.f32.mxu0 %v795
        %1438 = vmatmul.mubr.f32.gmra.mrb[0].mxu0 %v794
        %v1439 = vpop.f32.mrb[0].mxu0
        %v1440 = vadd.f32 %v1183, %v1439
        %v1441 = vpop.f32.mrb[0].mxu0
        %v1442 = vadd.f32 %v1185, %v1441
        %1443 = vmatprep.mubr.f32.mxu0 %v800
        %1444 = vmatmul.mubr.f32.gmra.mrb[0].mxu0 %v799
        %v1445 = vpop.f32.mrb[0].mxu0
        %v1446 = vadd.f32 %v1189, %v1445
        %v1447 = vpop.f32.mrb[0].mxu0
        %v1448 = vadd.f32 %v1191, %v1447
        %1449 = vmatprep.mubr.f32.mxu0 %v805
        %1450 = vmatmul.mubr.f32.gmra.mrb[0].mxu0 %v804
        %v1451 = vpop.f32.mrb[0].mxu0
        %v1452 = vadd.f32 %v1195, %v1451
        %v1453 = vpop.f32.mrb[0].mxu0
        %v1454 = vadd.f32 %v1197, %v1453
        %1455 = vmatprep.mubr.f32.mxu0 %v810
        %1456 = vmatmul.mubr.f32.gmra.mrb[0].mxu0 %v809
        %v1457 = vpop.f32.mrb[0].mxu0
        %v1458 = vadd.f32 %v1201, %v1457
        %v1459 = vpop.f32.mrb[0].mxu0
        %v1460 = vadd.f32 %v1203, %v1459
        %1461 = vmatprep.mubr.f32.mxu0 %v815
        %1462 = vmatmul.mubr.f32.gmra.mrb[0].mxu0 %v814
        %v1463 = vpop.f32.mrb[0].mxu0
        %v1464 = vadd.f32 %v1207, %v1463
        %v1465 = vpop.f32.mrb[0].mxu0
        %v1466 = vadd.f32 %v1209, %v1465
        %1467 = vmatprep.mubr.f32.mxu0 %v820
        %1468 = vmatmul.mubr.f32.gmra.mrb[0].mxu0 %v819
        %v1469 = vpop.f32.mrb[0].mxu0
        %v1470 = vadd.f32 %v1213, %v1469
        %v1471 = vpop.f32.mrb[0].mxu0
        %v1472 = vadd.f32 %v1215, %v1471
        %1473 = vmatprep.mubr.f32.mxu0 %v825
        %1474 = vmatmul.mubr.f32.gmra.mrb[0].mxu0 %v824
        %v1475 = vpop.f32.mrb[0].mxu0
        %v1476 = vadd.f32 %v1219, %v1475
        %v1477 = vpop.f32.mrb[0].mxu0
        %v1478 = vadd.f32 %v1221, %v1477
        %1479 = vmatprep.mubr.f32.mxu0 %v830
        %1480 = vmatmul.mubr.f32.gmra.mrb[0].mxu0 %v829
        %v1481 = vpop.f32.mrb[0].mxu0
        %v1482 = vadd.f32 %v1225, %v1481
        %v1483 = vpop.f32.mrb[0].mxu0
        %v1484 = vadd.f32 %v1227, %v1483
        %1485 = vmatprep.mubr.f32.mxu0 %v835
        %1486 = vmatmul.mubr.f32.gmra.mrb[0].mxu0 %v834
        %v1487 = vpop.f32.mrb[0].mxu0
        %v1488 = vadd.f32 %v1231, %v1487
        %v1489 = vpop.f32.mrb[0].mxu0
        %v1490 = vadd.f32 %v1233, %v1489
        %1491 = vmatprep.mubr.f32.mxu0 %v840
        %1492 = vmatmul.mubr.f32.gmra.mrb[0].mxu0 %v839
        %v1493 = vpop.f32.mrb[0].mxu0
        %v1494 = vadd.f32 %v1237, %v1493
        %v1495 = vpop.f32.mrb[0].mxu0
        %v1496 = vadd.f32 %v1239, %v1495
        %1497 = vmatprep.mubr.f32.mxu0 %v845
        %1498 = vmatmul.mubr.f32.gmra.mrb[0].mxu0 %v844
        %v1499 = vpop.f32.mrb[0].mxu0
        %v1500 = vadd.f32 %v1243, %v1499
        %v1501 = vpop.f32.mrb[0].mxu0
        %v1502 = vadd.f32 %v1245, %v1501
        %1503 = vmatprep.mubr.f32.mxu0 %v850
        %1504 = vmatmul.mubr.f32.gmra.mrb[0].mxu0 %v849
        %v1505 = vpop.f32.mrb[0].mxu0
        %v1506 = vadd.f32 %v1249, %v1505
        %v1507 = vpop.f32.mrb[0].mxu0
        %v1508 = vadd.f32 %v1251, %v1507
        %1509 = vmatprep.mubr.f32.mxu0 %v855
        %1510 = vmatmul.mubr.f32.gmra.mrb[0].mxu0 %v854
        %v1511 = vpop.f32.mrb[0].mxu0
        %v1512 = vadd.f32 %v1255, %v1511
        %v1513 = vpop.f32.mrb[0].mxu0
        %v1514 = vadd.f32 %v1257, %v1513
        %1515 = vmatprep.mubr.f32.mxu0 %v860
        %1516 = vmatmul.mubr.f32.gmra.mrb[0].mxu0 %v859
        %v1517 = vpop.f32.mrb[0].mxu0
        %v1518 = vadd.f32 %v1261, %v1517
        %v1519 = vpop.f32.mrb[0].mxu0
        %v1520 = vadd.f32 %v1263, %v1519
        %1521 = vmatprep.mubr.f32.mxu0 %v865
        %1522 = vmatmul.mubr.f32.gmra.mrb[0].mxu0 %v864
        %v1523 = vpop.f32.mrb[0].mxu0
        %v1524 = vadd.f32 %v1267, %v1523
        %v1525 = vpop.f32.mrb[0].mxu0
        %v1526 = vadd.f32 %v1269, %v1525
        %1527 = vmatprep.mubr.f32.mxu0 %v870
        %1528 = vmatmul.mubr.f32.gmra.mrb[0].mxu0 %v869
        %v1529 = vpop.f32.mrb[0].mxu0
        %v1530 = vadd.f32 %v1273, %v1529
        %v1531 = vpop.f32.mrb[0].mxu0
        %v1532 = vadd.f32 %v1275, %v1531
        %1533 = vmatprep.mubr.f32.mxu0 %v875
        %1534 = vmatmul.mubr.f32.gmra.mrb[0].mxu0 %v874
        %v1535 = vpop.f32.mrb[0].mxu0
        %v1536 = vadd.f32 %v1279, %v1535
        %v1537 = vpop.f32.mrb[0].mxu0
        %v1538 = vadd.f32 %v1281, %v1537
        %1539 = vmatprep.mubr.f32.mxu0 %v880
        %1540 = vmatmul.mubr.f32.gmra.mrb[0].mxu0 %v879
        %v1541 = vpop.f32.mrb[0].mxu0
        %v1542 = vadd.f32 %v1285, %v1541
        %v1543 = vpop.f32.mrb[0].mxu0
        %v1544 = vadd.f32 %v1287, %v1543
        %1545 = vmatprep.mubr.f32.mxu0 %v885
        %1546 = vmatmul.mubr.f32.gmra.mrb[0].mxu0 %v884
        %v1547 = vpop.f32.mrb[0].mxu0
        %v1548 = vadd.f32 %v1291, %v1547
        %v1549 = vpop.f32.mrb[0].mxu0
        %v1550 = vadd.f32 %v1293, %v1549
        %1551 = vmatprep.mubr.f32.mxu0 %v890
        %1552 = vmatmul.mubr.f32.gmra.mrb[0].mxu0 %v889
        %v1553 = vpop.f32.mrb[0].mxu0
        %v1554 = vadd.f32 %v1297, %v1553
        %v1555 = vpop.f32.mrb[0].mxu0
        %v1556 = vadd.f32 %v1299, %v1555
        %1557 = vmatprep.mubr.f32.mxu0 %v895
        %1558 = vmatmul.mubr.f32.gmra.mrb[0].mxu0 %v894
        %v1559 = vpop.f32.mrb[0].mxu0
        %v1560 = vadd.f32 %v1303, %v1559
        %v1561 = vpop.f32.mrb[0].mxu0
        %v1562 = vadd.f32 %v1305, %v1561
        %1563 = vmatprep.mubr.f32.mxu0 %v900
        %1564 = vmatmul.mubr.f32.gmra.mrb[0].mxu0 %v899
        %v1565 = vpop.f32.mrb[0].mxu0
        %v1566 = vadd.f32 %v1309, %v1565
        %v1567 = vpop.f32.mrb[0].mxu0
        %v1568 = vadd.f32 %v1311, %v1567
        %1569 = vmatprep.mubr.f32.mxu0 %v905
        %1570 = vmatmul.mubr.f32.gmra.mrb[0].mxu0 %v904
        %v1571 = vpop.f32.mrb[0].mxu0
        %v1572 = vadd.f32 %v1315, %v1571
        %v1573 = vpop.f32.mrb[0].mxu0
        %v1574 = vadd.f32 %v1317, %v1573
        %1575 = vmatprep.mubr.f32.mxu0 %v910
        %1576 = vmatmul.mubr.f32.gmra.mrb[0].mxu0 %v909
        %v1577 = vpop.f32.mrb[0].mxu0
        %v1578 = vadd.f32 %v1321, %v1577
        %v1579 = vpop.f32.mrb[0].mxu0
        %v1580 = vadd.f32 %v1323, %v1579
        %1581 = vmatprep.mubr.f32.mxu0 %v915
        %1582 = vmatmul.mubr.f32.gmra.mrb[0].mxu0 %v914
        %v1583 = vpop.f32.mrb[0].mxu0
        %v1584 = vadd.f32 %v1327, %v1583
        %v1585 = vpop.f32.mrb[0].mxu0
        %v1586 = vadd.f32 %v1329, %v1585
        %1587 = vmatprep.mubr.f32.mxu0 %v920
        %1588 = vmatmul.mubr.f32.gmra.mrb[0].mxu0 %v919
        %v1589 = vpop.f32.mrb[0].mxu0
        %v1590 = vadd.f32 %v1333, %v1589
        %v1591 = vpop.f32.mrb[0].mxu0
        %v1592 = vadd.f32 %v1335, %v1591
        %1593 = vmatprep.mubr.f32.mxu0 %v925
        %1594 = vmatmul.mubr.f32.gmra.mrb[0].mxu0 %v924
        %v1595 = vpop.f32.mrb[0].mxu0
        %v1596 = vadd.f32 %v1339, %v1595
        %v1597 = vpop.f32.mrb[0].mxu0
        %v1598 = vadd.f32 %v1341, %v1597
        %1599 = vmatprep.mubr.f32.mxu0 %v930
        %1600 = vmatmul.mubr.f32.gmra.mrb[0].mxu0 %v929
        %v1601 = vpop.f32.mrb[0].mxu0
        %v1602 = vadd.f32 %v1345, %v1601
        %v1603 = vpop.f32.mrb[0].mxu0
        %v1604 = vadd.f32 %v1347, %v1603
        %1605 = vdwg.mxu0
        %1606 = vmatprep.subr.mxu0 %v1061
        %1607 = vmatpush1.msra.mxu0 %v1060
        %1608 = vmatprep.subr.mxu0 %v1063
        %1609 = vmatpush1.msra.mxu0 %v1062
        %1610 = vmatprep.subr.mxu0 %v1065
        %1611 = vmatpush1.msra.mxu0 %v1064
        %1612 = vmatprep.subr.mxu0 %v1067
        %1613 = vmatpush1.msra.mxu0 %v1066
        %1614 = vmatprep.subr.mxu0 %v1069
        %1615 = vmatpush1.msra.mxu0 %v1068
        %1616 = vmatprep.subr.mxu0 %v1071
        %1617 = vmatpush1.msra.mxu0 %v1070
        %1618 = vmatprep.subr.mxu0 %v1073
        %1619 = vmatpush1.msra.mxu0 %v1072
        %1620 = vmatprep.subr.mxu0 %v1075
        %1621 = vmatpush1.msra.mxu0 %v1074
        %1622 = vmatprep.subr.mxu0 %v1077
        %1623 = vmatpush1.msra.mxu0 %v1076
        %1624 = vmatprep.subr.mxu0 %v1079
        %1625 = vmatpush1.msra.mxu0 %v1078
        %1626 = vmatprep.subr.mxu0 %v1081
        %1627 = vmatpush1.msra.mxu0 %v1080
        %1628 = vmatprep.subr.mxu0 %v1083
        %1629 = vmatpush1.msra.mxu0 %v1082
        %1630 = vmatprep.subr.mxu0 %v1085
        %1631 = vmatpush1.msra.mxu0 %v1084
        %1632 = vmatprep.subr.mxu0 %v1087
        %1633 = vmatpush1.msra.mxu0 %v1086
        %1634 = vmatprep.subr.mxu0 %v1089
        %1635 = vmatpush1.msra.mxu0 %v1088
        %1636 = vmatprep.subr.mxu0 %v1091
        %1637 = vmatpush1.msra.mxu0 %v1090
        %1638 = vmatprep.subr.mxu0 0.0
        %1639 = vmatpush1.msra.mxu0 0.0
        %1640 = vmatprep.subr.mxu0 0.0
        %1641 = vmatpush1.msra.mxu0 0.0
        %1642 = vmatprep.subr.mxu0 0.0
        %1643 = vmatpush1.msra.mxu0 0.0
        %1644 = vmatprep.subr.mxu0 0.0
        %1645 = vmatpush1.msra.mxu0 0.0
        %1646 = vmatprep.subr.mxu0 0.0
        %1647 = vmatpush1.msra.mxu0 0.0
        %1648 = vmatprep.subr.mxu0 0.0
        %1649 = vmatpush1.msra.mxu0 0.0
        %1650 = vmatprep.subr.mxu0 0.0
        %1651 = vmatpush1.msra.mxu0 0.0
        %1652 = vmatprep.subr.mxu0 0.0
        %1653 = vmatpush1.msra.mxu0 0.0
        %1654 = vmatprep.subr.mxu0 0.0
        %1655 = vmatpush1.msra.mxu0 0.0
        %1656 = vmatprep.subr.mxu0 0.0
        %1657 = vmatpush1.msra.mxu0 0.0
        %1658 = vmatprep.subr.mxu0 0.0
        %1659 = vmatpush1.msra.mxu0 0.0
        %1660 = vmatprep.subr.mxu0 0.0
        %1661 = vmatpush1.msra.mxu0 0.0
        %1662 = vmatprep.subr.mxu0 0.0
        %1663 = vmatpush1.msra.mxu0 0.0
        %1664 = vmatprep.subr.mxu0 0.0
        %1665 = vmatpush1.msra.mxu0 0.0
        %1666 = vmatprep.subr.mxu0 0.0
        %1667 = vmatpush1.msra.mxu0 0.0
        %1668 = vmatprep.subr.mxu0 0.0
        %1669 = vmatpush1.msra.mxu0 0.0
        %1670 = vmatprep.mubr.f32.mxu0 0.0
        %1671 = vmatmul.mubr.f32.gmra.mrb[0].mxu0 %v776
        %v1672 = vpop.f32.mrb[0].mxu0
        %v1673 = vadd.f32 %v1416, %v1672
        %v1674 = vpop.f32.mrb[0].mxu0
        %v1675 = vadd.f32 %v1418, %v1674
        %1676 = vmatprep.mubr.f32.mxu0 0.0
        %1677 = vmatmul.mubr.f32.gmra.mrb[0].mxu0 %v781
        %v1678 = vpop.f32.mrb[0].mxu0
        %v1679 = vadd.f32 %v1422, %v1678
        %v1680 = vpop.f32.mrb[0].mxu0
        %v1681 = vadd.f32 %v1424, %v1680
        %1682 = vmatprep.mubr.f32.mxu0 0.0
        %1683 = vmatmul.mubr.f32.gmra.mrb[0].mxu0 %v786
        %v1684 = vpop.f32.mrb[0].mxu0
        %v1685 = vadd.f32 %v1428, %v1684
        %v1686 = vpop.f32.mrb[0].mxu0
        %v1687 = vadd.f32 %v1430, %v1686
        %1688 = vmatprep.mubr.f32.mxu0 0.0
        %1689 = vmatmul.mubr.f32.gmra.mrb[0].mxu0 %v791
        %v1690 = vpop.f32.mrb[0].mxu0
        %v1691 = vadd.f32 %v1434, %v1690
        %v1692 = vpop.f32.mrb[0].mxu0
        %v1693 = vadd.f32 %v1436, %v1692
        %1694 = vmatprep.mubr.f32.mxu0 0.0
        %1695 = vmatmul.mubr.f32.gmra.mrb[0].mxu0 %v796
        %v1696 = vpop.f32.mrb[0].mxu0
        %v1697 = vadd.f32 %v1440, %v1696
        %v1698 = vpop.f32.mrb[0].mxu0
        %v1699 = vadd.f32 %v1442, %v1698
        %1700 = vmatprep.mubr.f32.mxu0 0.0
        %1701 = vmatmul.mubr.f32.gmra.mrb[0].mxu0 %v801
        %v1702 = vpop.f32.mrb[0].mxu0
        %v1703 = vadd.f32 %v1446, %v1702
        %v1704 = vpop.f32.mrb[0].mxu0
        %v1705 = vadd.f32 %v1448, %v1704
        %1706 = vmatprep.mubr.f32.mxu0 0.0
        %1707 = vmatmul.mubr.f32.gmra.mrb[0].mxu0 %v806
        %v1708 = vpop.f32.mrb[0].mxu0
        %v1709 = vadd.f32 %v1452, %v1708
        %v1710 = vpop.f32.mrb[0].mxu0
        %v1711 = vadd.f32 %v1454, %v1710
        %1712 = vmatprep.mubr.f32.mxu0 0.0
        %1713 = vmatmul.mubr.f32.gmra.mrb[0].mxu0 %v811
        %v1714 = vpop.f32.mrb[0].mxu0
        %v1715 = vadd.f32 %v1458, %v1714
        %v1716 = vpop.f32.mrb[0].mxu0
        %v1717 = vadd.f32 %v1460, %v1716
        %1718 = vmatprep.mubr.f32.mxu0 0.0
        %1719 = vmatmul.mubr.f32.gmra.mrb[0].mxu0 %v816
        %v1720 = vpop.f32.mrb[0].mxu0
        %v1721 = vadd.f32 %v1464, %v1720
        %v1722 = vpop.f32.mrb[0].mxu0
        %v1723 = vadd.f32 %v1466, %v1722
        %1724 = vmatprep.mubr.f32.mxu0 0.0
        %1725 = vmatmul.mubr.f32.gmra.mrb[0].mxu0 %v821
        %v1726 = vpop.f32.mrb[0].mxu0
        %v1727 = vadd.f32 %v1470, %v1726
        %v1728 = vpop.f32.mrb[0].mxu0
        %v1729 = vadd.f32 %v1472, %v1728
        %1730 = vmatprep.mubr.f32.mxu0 0.0
        %1731 = vmatmul.mubr.f32.gmra.mrb[0].mxu0 %v826
        %v1732 = vpop.f32.mrb[0].mxu0
        %v1733 = vadd.f32 %v1476, %v1732
        %v1734 = vpop.f32.mrb[0].mxu0
        %v1735 = vadd.f32 %v1478, %v1734
        %1736 = vmatprep.mubr.f32.mxu0 0.0
        %1737 = vmatmul.mubr.f32.gmra.mrb[0].mxu0 %v831
        %v1738 = vpop.f32.mrb[0].mxu0
        %v1739 = vadd.f32 %v1482, %v1738
        %v1740 = vpop.f32.mrb[0].mxu0
        %v1741 = vadd.f32 %v1484, %v1740
        %1742 = vmatprep.mubr.f32.mxu0 0.0
        %1743 = vmatmul.mubr.f32.gmra.mrb[0].mxu0 %v836
        %v1744 = vpop.f32.mrb[0].mxu0
        %v1745 = vadd.f32 %v1488, %v1744
        %v1746 = vpop.f32.mrb[0].mxu0
        %v1747 = vadd.f32 %v1490, %v1746
        %1748 = vmatprep.mubr.f32.mxu0 0.0
        %1749 = vmatmul.mubr.f32.gmra.mrb[0].mxu0 %v841
        %v1750 = vpop.f32.mrb[0].mxu0
        %v1751 = vadd.f32 %v1494, %v1750
        %v1752 = vpop.f32.mrb[0].mxu0
        %v1753 = vadd.f32 %v1496, %v1752
        %1754 = vmatprep.mubr.f32.mxu0 0.0
        %1755 = vmatmul.mubr.f32.gmra.mrb[0].mxu0 %v846
        %v1756 = vpop.f32.mrb[0].mxu0
        %v1757 = vadd.f32 %v1500, %v1756
        %v1758 = vpop.f32.mrb[0].mxu0
        %v1759 = vadd.f32 %v1502, %v1758
        %1760 = vmatprep.mubr.f32.mxu0 0.0
        %1761 = vmatmul.mubr.f32.gmra.mrb[0].mxu0 %v851
        %v1762 = vpop.f32.mrb[0].mxu0
        %v1763 = vadd.f32 %v1506, %v1762
        %v1764 = vpop.f32.mrb[0].mxu0
        %v1765 = vadd.f32 %v1508, %v1764
        %1766 = vmatprep.mubr.f32.mxu0 0.0
        %1767 = vmatmul.mubr.f32.gmra.mrb[0].mxu0 %v856
        %v1768 = vpop.f32.mrb[0].mxu0
        %v1769 = vadd.f32 %v1512, %v1768
        %v1770 = vpop.f32.mrb[0].mxu0
        %v1771 = vadd.f32 %v1514, %v1770
        %1772 = vmatprep.mubr.f32.mxu0 0.0
        %1773 = vmatmul.mubr.f32.gmra.mrb[0].mxu0 %v861
        %v1774 = vpop.f32.mrb[0].mxu0
        %v1775 = vadd.f32 %v1518, %v1774
        %v1776 = vpop.f32.mrb[0].mxu0
        %v1777 = vadd.f32 %v1520, %v1776
        %1778 = vmatprep.mubr.f32.mxu0 0.0
        %1779 = vmatmul.mubr.f32.gmra.mrb[0].mxu0 %v866
        %v1780 = vpop.f32.mrb[0].mxu0
        %v1781 = vadd.f32 %v1524, %v1780
        %v1782 = vpop.f32.mrb[0].mxu0
        %v1783 = vadd.f32 %v1526, %v1782
        %1784 = vmatprep.mubr.f32.mxu0 0.0
        %1785 = vmatmul.mubr.f32.gmra.mrb[0].mxu0 %v871
        %v1786 = vpop.f32.mrb[0].mxu0
        %v1787 = vadd.f32 %v1530, %v1786
        %v1788 = vpop.f32.mrb[0].mxu0
        %v1789 = vadd.f32 %v1532, %v1788
        %1790 = vmatprep.mubr.f32.mxu0 0.0
        %1791 = vmatmul.mubr.f32.gmra.mrb[0].mxu0 %v876
        %v1792 = vpop.f32.mrb[0].mxu0
        %v1793 = vadd.f32 %v1536, %v1792
        %v1794 = vpop.f32.mrb[0].mxu0
        %v1795 = vadd.f32 %v1538, %v1794
        %1796 = vmatprep.mubr.f32.mxu0 0.0
        %1797 = vmatmul.mubr.f32.gmra.mrb[0].mxu0 %v881
        %v1798 = vpop.f32.mrb[0].mxu0
        %v1799 = vadd.f32 %v1542, %v1798
        %v1800 = vpop.f32.mrb[0].mxu0
        %v1801 = vadd.f32 %v1544, %v1800
        %1802 = vmatprep.mubr.f32.mxu0 0.0
        %1803 = vmatmul.mubr.f32.gmra.mrb[0].mxu0 %v886
        %v1804 = vpop.f32.mrb[0].mxu0
        %v1805 = vadd.f32 %v1548, %v1804
        %v1806 = vpop.f32.mrb[0].mxu0
        %v1807 = vadd.f32 %v1550, %v1806
        %1808 = vmatprep.mubr.f32.mxu0 0.0
        %1809 = vmatmul.mubr.f32.gmra.mrb[0].mxu0 %v891
        %v1810 = vpop.f32.mrb[0].mxu0
        %v1811 = vadd.f32 %v1554, %v1810
        %v1812 = vpop.f32.mrb[0].mxu0
        %v1813 = vadd.f32 %v1556, %v1812
        %1814 = vmatprep.mubr.f32.mxu0 0.0
        %1815 = vmatmul.mubr.f32.gmra.mrb[0].mxu0 %v896
        %v1816 = vpop.f32.mrb[0].mxu0
        %v1817 = vadd.f32 %v1560, %v1816
        %v1818 = vpop.f32.mrb[0].mxu0
        %v1819 = vadd.f32 %v1562, %v1818
        %1820 = vmatprep.mubr.f32.mxu0 0.0
        %1821 = vmatmul.mubr.f32.gmra.mrb[0].mxu0 %v901
        %v1822 = vpop.f32.mrb[0].mxu0
        %v1823 = vadd.f32 %v1566, %v1822
        %v1824 = vpop.f32.mrb[0].mxu0
        %v1825 = vadd.f32 %v1568, %v1824
        %1826 = vmatprep.mubr.f32.mxu0 0.0
        %1827 = vmatmul.mubr.f32.gmra.mrb[0].mxu0 %v906
        %v1828 = vpop.f32.mrb[0].mxu0
        %v1829 = vadd.f32 %v1572, %v1828
        %v1830 = vpop.f32.mrb[0].mxu0
        %v1831 = vadd.f32 %v1574, %v1830
        %1832 = vmatprep.mubr.f32.mxu0 0.0
        %1833 = vmatmul.mubr.f32.gmra.mrb[0].mxu0 %v911
        %v1834 = vpop.f32.mrb[0].mxu0
        %v1835 = vadd.f32 %v1578, %v1834
        %v1836 = vpop.f32.mrb[0].mxu0
        %v1837 = vadd.f32 %v1580, %v1836
        %1838 = vmatprep.mubr.f32.mxu0 0.0
        %1839 = vmatmul.mubr.f32.gmra.mrb[0].mxu0 %v916
        %v1840 = vpop.f32.mrb[0].mxu0
        %v1841 = vadd.f32 %v1584, %v1840
        %v1842 = vpop.f32.mrb[0].mxu0
        %v1843 = vadd.f32 %v1586, %v1842
        %1844 = vmatprep.mubr.f32.mxu0 0.0
        %1845 = vmatmul.mubr.f32.gmra.mrb[0].mxu0 %v921
        %v1846 = vpop.f32.mrb[0].mxu0
        %v1847 = vadd.f32 %v1590, %v1846
        %v1848 = vpop.f32.mrb[0].mxu0
        %v1849 = vadd.f32 %v1592, %v1848
        %1850 = vmatprep.mubr.f32.mxu0 0.0
        %1851 = vmatmul.mubr.f32.gmra.mrb[0].mxu0 %v926
        %v1852 = vpop.f32.mrb[0].mxu0
        %v1853 = vadd.f32 %v1596, %v1852
        %v1854 = vpop.f32.mrb[0].mxu0
        %v1855 = vadd.f32 %v1598, %v1854
        %1856 = vmatprep.mubr.f32.mxu0 0.0
        %1857 = vmatmul.mubr.f32.gmra.mrb[0].mxu0 %v931
        %v1858 = vpop.f32.mrb[0].mxu0
        %v1859 = vadd.f32 %v1602, %v1858
        %v1860 = vpop.f32.mrb[0].mxu0
        %v1861 = vadd.f32 %v1604, %v1860
        %1862 = vdwg.mxu0
        %v1863 = vmax.f32 %v1673, %v1675
        %v1864 = vmax.f32 %v1679, %v1681
        %v1865 = vmax.f32 %v1685, %v1687
        %v1866 = vmax.f32 %v1691, %v1693
        %v1867 = vmax.f32 %v1697, %v1699
        %v1868 = vmax.f32 %v1703, %v1705
        %v1869 = vmax.f32 %v1709, %v1711
        %v1870 = vmax.f32 %v1715, %v1717
        %v1871 = vmax.f32 %v1721, %v1723
        %v1872 = vmax.f32 %v1727, %v1729
        %v1873 = vmax.f32 %v1733, %v1735
        %v1874 = vmax.f32 %v1739, %v1741
        %v1875 = vmax.f32 %v1745, %v1747
        %v1876 = vmax.f32 %v1751, %v1753
        %v1877 = vmax.f32 %v1757, %v1759
        %v1878 = vmax.f32 %v1763, %v1765
        %v1879 = vmax.f32 %v1769, %v1771
        %v1880 = vmax.f32 %v1775, %v1777
        %v1881 = vmax.f32 %v1781, %v1783
        %v1882 = vmax.f32 %v1787, %v1789
        %v1883 = vmax.f32 %v1793, %v1795
        %v1884 = vmax.f32 %v1799, %v1801
        %v1885 = vmax.f32 %v1805, %v1807
        %v1886 = vmax.f32 %v1811, %v1813
        %v1887 = vmax.f32 %v1817, %v1819
        %v1888 = vmax.f32 %v1823, %v1825
        %v1889 = vmax.f32 %v1829, %v1831
        %v1890 = vmax.f32 %v1835, %v1837
        %v1891 = vmax.f32 %v1841, %v1843
        %v1892 = vmax.f32 %v1847, %v1849
        %v1893 = vmax.f32 %v1853, %v1855
        %v1894 = vmax.f32 %v1859, %v1861
        %v1895 = vld [vmem:[%s2] sm:$0x1]
        %v1897 = vlaneseq
        %v1898 = vshrl.u32 %v1897, 7
        %v1899 = vsub.s32 0, %v1898
        %v1900 = vrot.slane %v1895, %v1899
        %v1902 = vadd.f32 %v1863, %v1900
        %v1903 = vadd.f32 %v1864, %v1900
        %v1904 = vadd.f32 %v1865, %v1900
        %v1905 = vadd.f32 %v1866, %v1900
        %v1906 = vadd.f32 %v1867, %v1900
        %v1907 = vadd.f32 %v1868, %v1900
        %v1908 = vadd.f32 %v1869, %v1900
        %v1909 = vadd.f32 %v1870, %v1900
        %v1910 = vadd.f32 %v1871, %v1900
        %v1911 = vadd.f32 %v1872, %v1900
        %v1912 = vadd.f32 %v1873, %v1900
        %v1913 = vadd.f32 %v1874, %v1900
        %v1914 = vadd.f32 %v1875, %v1900
        %v1915 = vadd.f32 %v1876, %v1900
        %v1916 = vadd.f32 %v1877, %v1900
        %v1917 = vadd.f32 %v1878, %v1900
        %v1918 = vadd.f32 %v1879, %v1900
        %v1919 = vadd.f32 %v1880, %v1900
        %v1920 = vadd.f32 %v1881, %v1900
        %v1921 = vadd.f32 %v1882, %v1900
        %v1922 = vadd.f32 %v1883, %v1900
        %v1923 = vadd.f32 %v1884, %v1900
        %v1924 = vadd.f32 %v1885, %v1900
        %v1925 = vadd.f32 %v1886, %v1900
        %v1926 = vadd.f32 %v1887, %v1900
        %v1927 = vadd.f32 %v1888, %v1900
        %v1928 = vadd.f32 %v1889, %v1900
        %v1929 = vadd.f32 %v1890, %v1900
        %v1930 = vadd.f32 %v1891, %v1900
        %v1931 = vadd.f32 %v1892, %v1900
        %v1932 = vadd.f32 %v1893, %v1900
        %v1933 = vadd.f32 %v1894, %v1900
        %v1934 = vmax.f32 %v1902, 0.0
        %v1935 = vmax.f32 %v1903, 0.0
        %v1936 = vmax.f32 %v1904, 0.0
        %v1937 = vmax.f32 %v1905, 0.0
        %v1938 = vmax.f32 %v1906, 0.0
        %v1939 = vmax.f32 %v1907, 0.0
        %v1940 = vmax.f32 %v1908, 0.0
        %v1941 = vmax.f32 %v1909, 0.0
        %v1942 = vmax.f32 %v1910, 0.0
        %v1943 = vmax.f32 %v1911, 0.0
        %v1944 = vmax.f32 %v1912, 0.0
        %v1945 = vmax.f32 %v1913, 0.0
        %v1946 = vmax.f32 %v1914, 0.0
        %v1947 = vmax.f32 %v1915, 0.0
        %v1948 = vmax.f32 %v1916, 0.0
        %v1949 = vmax.f32 %v1917, 0.0
        %v1950 = vmax.f32 %v1918, 0.0
        %v1951 = vmax.f32 %v1919, 0.0
        %v1952 = vmax.f32 %v1920, 0.0
        %v1953 = vmax.f32 %v1921, 0.0
        %v1954 = vmax.f32 %v1922, 0.0
        %v1955 = vmax.f32 %v1923, 0.0
        %v1956 = vmax.f32 %v1924, 0.0
        %v1957 = vmax.f32 %v1925, 0.0
        %v1958 = vmax.f32 %v1926, 0.0
        %v1959 = vmax.f32 %v1927, 0.0
        %v1960 = vmax.f32 %v1928, 0.0
        %v1961 = vmax.f32 %v1929, 0.0
        %v1962 = vmax.f32 %v1930, 0.0
        %v1963 = vmax.f32 %v1931, 0.0
        %v1964 = vmax.f32 %v1932, 0.0
        %v1965 = vmax.f32 %v1933, 0.0
        %1966 = vst [vmem:[#allocation4] sm:$0xff] %v1934
        %1967 = vst [vmem:[#allocation4 + $0x8] sm:$0xff] %v1935
        %1968 = vst [vmem:[#allocation4 + $0x10] sm:$0xff] %v1936
        %1969 = vst [vmem:[#allocation4 + $0x18] sm:$0xff] %v1937
        %1970 = vst [vmem:[#allocation4 + $0x20] sm:$0xff] %v1938
        %1971 = vst [vmem:[#allocation4 + $0x28] sm:$0xff] %v1939
        %1972 = vst [vmem:[#allocation4 + $0x30] sm:$0xff] %v1940
        %1973 = vst [vmem:[#allocation4 + $0x38] sm:$0xff] %v1941
        %1974 = vst [vmem:[#allocation4 + $0x40] sm:$0xff] %v1942
        %1975 = vst [vmem:[#allocation4 + $0x48] sm:$0xff] %v1943
        %1976 = vst [vmem:[#allocation4 + $0x50] sm:$0xff] %v1944
        %1977 = vst [vmem:[#allocation4 + $0x58] sm:$0xff] %v1945
        %1978 = vst [vmem:[#allocation4 + $0x60] sm:$0xff] %v1946
        %1979 = vst [vmem:[#allocation4 + $0x68] sm:$0xff] %v1947
        %1980 = vst [vmem:[#allocation4 + $0x70] sm:$0xff] %v1948
        %1981 = vst [vmem:[#allocation4 + $0x78] sm:$0xff] %v1949
        %1982 = vst [vmem:[#allocation4 + $0x80] sm:$0xff] %v1950
        %1983 = vst [vmem:[#allocation4 + $0x88] sm:$0xff] %v1951
        %1984 = vst [vmem:[#allocation4 + $0x90] sm:$0xff] %v1952
        %1985 = vst [vmem:[#allocation4 + $0x98] sm:$0xff] %v1953
        %1986 = vst [vmem:[#allocation4 + $0xa0] sm:$0xff] %v1954
        %1987 = vst [vmem:[#allocation4 + $0xa8] sm:$0xff] %v1955
        %1988 = vst [vmem:[#allocation4 + $0xb0] sm:$0xff] %v1956
        %1989 = vst [vmem:[#allocation4 + $0xb8] sm:$0xff] %v1957
        %1990 = vst [vmem:[#allocation4 + $0xc0] sm:$0xff] %v1958
        %1991 = vst [vmem:[#allocation4 + $0xc8] sm:$0xff] %v1959
        %1992 = vst [vmem:[#allocation4 + $0xd0] sm:$0xff] %v1960
        %1993 = vst [vmem:[#allocation4 + $0xd8] sm:$0xff] %v1961
        %1994 = vst [vmem:[#allocation4 + $0xe0] sm:$0xff] %v1962
        %1995 = vst [vmem:[#allocation4 + $0xe8] sm:$0xff] %v1963
        %1996 = vst [vmem:[#allocation4 + $0xf0] sm:$0xff] %v1964
        %1997 = vst [vmem:[#allocation4 + $0xf8] sm:$0xff] %v1965
        %v1998 = vld [vmem:[#allocation4] ss:$2 sm:$0xff]
        %s1999 = scalar_lea.vmem [#allocation4], 16
        %v2000 = vld [vmem:[%s1999] ss:$2 sm:$0xff]
        %s2001 = scalar_lea.vmem [#allocation4], 32
        %v2002 = vld [vmem:[%s2001] ss:$2 sm:$0xff]
        %s2003 = scalar_lea.vmem [#allocation4], 48
        %v2004 = vld [vmem:[%s2003] ss:$2 sm:$0xff]
        %s2005 = scalar_lea.vmem [#allocation4], 64
        %v2006 = vld [vmem:[%s2005] ss:$2 sm:$0xff]
        %s2007 = scalar_lea.vmem [#allocation4], 80
        %v2008 = vld [vmem:[%s2007] ss:$2 sm:$0xff]
        %s2009 = scalar_lea.vmem [#allocation4], 96
        %v2010 = vld [vmem:[%s2009] ss:$2 sm:$0xff]
        %s2011 = scalar_lea.vmem [#allocation4], 112
        %v2012 = vld [vmem:[%s2011] ss:$2 sm:$0xff]
        %s2013 = scalar_lea.vmem [#allocation4], 128
        %v2014 = vld [vmem:[%s2013] ss:$2 sm:$0xff]
        %s2015 = scalar_lea.vmem [#allocation4], 144
        %v2016 = vld [vmem:[%s2015] ss:$2 sm:$0xff]
        %s2017 = scalar_lea.vmem [#allocation4], 160
        %v2018 = vld [vmem:[%s2017] ss:$2 sm:$0xff]
        %s2019 = scalar_lea.vmem [#allocation4], 176
        %v2020 = vld [vmem:[%s2019] ss:$2 sm:$0xff]
        %s2021 = scalar_lea.vmem [#allocation4], 192
        %v2022 = vld [vmem:[%s2021] ss:$2 sm:$0xff]
        %s2023 = scalar_lea.vmem [#allocation4], 208
        %v2024 = vld [vmem:[%s2023] ss:$2 sm:$0xff]
        %s2025 = scalar_lea.vmem [#allocation4], 224
        %v2026 = vld [vmem:[%s2025] ss:$2 sm:$0xff]
        %s2027 = scalar_lea.vmem [#allocation4], 240
        %v2028 = vld [vmem:[%s2027] ss:$2 sm:$0xff]
        %s2029 = scalar_lea.vmem [#allocation4], 1
        %v2030 = vld [vmem:[%s2029] ss:$2 sm:$0xff]
        %s2031 = scalar_lea.vmem [#allocation4], 17
        %v2032 = vld [vmem:[%s2031] ss:$2 sm:$0xff]
        %s2033 = scalar_lea.vmem [#allocation4], 33
        %v2034 = vld [vmem:[%s2033] ss:$2 sm:$0xff]
        %s2035 = scalar_lea.vmem [#allocation4], 49
        %v2036 = vld [vmem:[%s2035] ss:$2 sm:$0xff]
        %s2037 = scalar_lea.vmem [#allocation4], 65
        %v2038 = vld [vmem:[%s2037] ss:$2 sm:$0xff]
        %s2039 = scalar_lea.vmem [#allocation4], 81
        %v2040 = vld [vmem:[%s2039] ss:$2 sm:$0xff]
        %s2041 = scalar_lea.vmem [#allocation4], 97
        %v2042 = vld [vmem:[%s2041] ss:$2 sm:$0xff]
        %s2043 = scalar_lea.vmem [#allocation4], 113
        %v2044 = vld [vmem:[%s2043] ss:$2 sm:$0xff]
        %s2045 = scalar_lea.vmem [#allocation4], 129
        %v2046 = vld [vmem:[%s2045] ss:$2 sm:$0xff]
        %s2047 = scalar_lea.vmem [#allocation4], 145
        %v2048 = vld [vmem:[%s2047] ss:$2 sm:$0xff]
        %s2049 = scalar_lea.vmem [#allocation4], 161
        %v2050 = vld [vmem:[%s2049] ss:$2 sm:$0xff]
        %s2051 = scalar_lea.vmem [#allocation4], 177
        %v2052 = vld [vmem:[%s2051] ss:$2 sm:$0xff]
        %s2053 = scalar_lea.vmem [#allocation4], 193
        %v2054 = vld [vmem:[%s2053] ss:$2 sm:$0xff]
        %s2055 = scalar_lea.vmem [#allocation4], 209
        %v2056 = vld [vmem:[%s2055] ss:$2 sm:$0xff]
        %s2057 = scalar_lea.vmem [#allocation4], 225
        %v2058 = vld [vmem:[%s2057] ss:$2 sm:$0xff]
        %s2059 = scalar_lea.vmem [#allocation4], 241
        %v2060 = vld [vmem:[%s2059] ss:$2 sm:$0xff]
        %v2061 = vmax.f32 %v1998, %v2030
        %v2062 = vmax.f32 %v2000, %v2032
        %v2063 = vmax.f32 %v2002, %v2034
        %v2064 = vmax.f32 %v2004, %v2036
        %v2065 = vmax.f32 %v2006, %v2038
        %v2066 = vmax.f32 %v2008, %v2040
        %v2067 = vmax.f32 %v2010, %v2042
        %v2068 = vmax.f32 %v2012, %v2044
        %v2069 = vmax.f32 %v2014, %v2046
        %v2070 = vmax.f32 %v2016, %v2048
        %v2071 = vmax.f32 %v2018, %v2050
        %v2072 = vmax.f32 %v2020, %v2052
        %v2073 = vmax.f32 %v2022, %v2054
        %v2074 = vmax.f32 %v2024, %v2056
        %v2075 = vmax.f32 %v2026, %v2058
        %v2076 = vmax.f32 %v2028, %v2060
        %2077 = vst [vmem:[#allocation5] sm:$0xff] %v2061
        %2078 = vst [vmem:[#allocation5 + $0x8] sm:$0xff] %v2062
        %2079 = vst [vmem:[#allocation5 + $0x10] sm:$0xff] %v2063
        %2080 = vst [vmem:[#allocation5 + $0x18] sm:$0xff] %v2064
        %2081 = vst [vmem:[#allocation5 + $0x20] sm:$0xff] %v2065
        %2082 = vst [vmem:[#allocation5 + $0x28] sm:$0xff] %v2066
        %2083 = vst [vmem:[#allocation5 + $0x30] sm:$0xff] %v2067
        %2084 = vst [vmem:[#allocation5 + $0x38] sm:$0xff] %v2068
        %2085 = vst [vmem:[#allocation5 + $0x40] sm:$0xff] %v2069
        %2086 = vst [vmem:[#allocation5 + $0x48] sm:$0xff] %v2070
        %2087 = vst [vmem:[#allocation5 + $0x50] sm:$0xff] %v2071
        %2088 = vst [vmem:[#allocation5 + $0x58] sm:$0xff] %v2072
        %2089 = vst [vmem:[#allocation5 + $0x60] sm:$0xff] %v2073
        %2090 = vst [vmem:[#allocation5 + $0x68] sm:$0xff] %v2074
        %2091 = vst [vmem:[#allocation5 + $0x70] sm:$0xff] %v2075
        %2092 = vst [vmem:[#allocation5 + $0x78] sm:$0xff] %v2076
        %2093 = vst [vmem:[#allocation5 + $0x80] sm:$0xff] 0.0
        %v2094 = vld [vmem:[#allocation5] sm:$0xff]
        %v2095 = vld [vmem:[#allocation5 + $0x8] sm:$0xff]
        %v2096 = vld [vmem:[#allocation5 + $0x10] sm:$0xff]
        %v2097 = vld [vmem:[#allocation5 + $0x18] sm:$0xff]
        %v2098 = vld [vmem:[#allocation5 + $0x20] sm:$0xff]
        %v2099 = vld [vmem:[#allocation5 + $0x28] sm:$0xff]
        %v2100 = vld [vmem:[#allocation5 + $0x30] sm:$0xff]
        %v2101 = vld [vmem:[#allocation5 + $0x38] sm:$0xff]
        %v2102 = vld [vmem:[#allocation5 + $0x40] sm:$0xff]
        %v2103 = vld [vmem:[#allocation5 + $0x48] sm:$0xff]
        %v2104 = vld [vmem:[#allocation5 + $0x50] sm:$0xff]
        %v2105 = vld [vmem:[#allocation5 + $0x58] sm:$0xff]
        %v2106 = vld [vmem:[#allocation5 + $0x60] sm:$0xff]
        %v2107 = vld [vmem:[#allocation5 + $0x68] sm:$0xff]
        %v2108 = vld [vmem:[#allocation5 + $0x70] sm:$0xff]
        %v2109 = vld [vmem:[#allocation5 + $0x78] sm:$0xff]
        %2110 = vst [vmem:[#allocation6] sm:$0xff] %v2094
        %2111 = vst [vmem:[#allocation6 + $0x28] sm:$0xff] %v2095
        %2112 = vst [vmem:[#allocation6 + $0x50] sm:$0xff] %v2096
        %2113 = vst [vmem:[#allocation6 + $0x78] sm:$0xff] %v2097
        %2114 = vst [vmem:[#allocation6 + $0xa0] sm:$0xff] %v2098
        %2115 = vst [vmem:[#allocation6 + $0xc8] sm:$0xff] %v2099
        %2116 = vst [vmem:[#allocation6 + $0xf0] sm:$0xff] %v2100
        %2117 = vst [vmem:[#allocation6 + $0x118] sm:$0xff] %v2101
        %2118 = vst [vmem:[#allocation6 + $0x140] sm:$0xff] %v2102
        %2119 = vst [vmem:[#allocation6 + $0x168] sm:$0xff] %v2103
        %2120 = vst [vmem:[#allocation6 + $0x190] sm:$0xff] %v2104
        %2121 = vst [vmem:[#allocation6 + $0x1b8] sm:$0xff] %v2105
        %2122 = vst [vmem:[#allocation6 + $0x1e0] sm:$0xff] %v2106
        %2123 = vst [vmem:[#allocation6 + $0x208] sm:$0xff] %v2107
        %2124 = vst [vmem:[#allocation6 + $0x230] sm:$0xff] %v2108
        %2125 = vst [vmem:[#allocation6 + $0x258] sm:$0xff] %v2109
        %v2126 = vld [vmem:[#allocation5 + $0x1] sm:$0xff]
        %v2127 = vld [vmem:[#allocation5 + $0x9] sm:$0xff]
        %v2128 = vld [vmem:[#allocation5 + $0x11] sm:$0xff]
        %v2129 = vld [vmem:[#allocation5 + $0x19] sm:$0xff]
        %v2130 = vld [vmem:[#allocation5 + $0x21] sm:$0xff]
        %v2131 = vld [vmem:[#allocation5 + $0x29] sm:$0xff]
        %v2132 = vld [vmem:[#allocation5 + $0x31] sm:$0xff]
        %v2133 = vld [vmem:[#allocation5 + $0x39] sm:$0xff]
        %v2134 = vld [vmem:[#allocation5 + $0x41] sm:$0xff]
        %v2135 = vld [vmem:[#allocation5 + $0x49] sm:$0xff]
        %v2136 = vld [vmem:[#allocation5 + $0x51] sm:$0xff]
        %v2137 = vld [vmem:[#allocation5 + $0x59] sm:$0xff]
        %v2138 = vld [vmem:[#allocation5 + $0x61] sm:$0xff]
        %v2139 = vld [vmem:[#allocation5 + $0x69] sm:$0xff]
        %v2140 = vld [vmem:[#allocation5 + $0x71] sm:$0xff]
        %v2141 = vld [vmem:[#allocation5 + $0x79] sm:$0xff]
        %2142 = vst [vmem:[#allocation6 + $0x8] sm:$0xff] %v2126
        %2143 = vst [vmem:[#allocation6 + $0x30] sm:$0xff] %v2127
        %2144 = vst [vmem:[#allocation6 + $0x58] sm:$0xff] %v2128
        %2145 = vst [vmem:[#allocation6 + $0x80] sm:$0xff] %v2129
        %2146 = vst [vmem:[#allocation6 + $0xa8] sm:$0xff] %v2130
        %2147 = vst [vmem:[#allocation6 + $0xd0] sm:$0xff] %v2131
        %2148 = vst [vmem:[#allocation6 + $0xf8] sm:$0xff] %v2132
        %2149 = vst [vmem:[#allocation6 + $0x120] sm:$0xff] %v2133
        %2150 = vst [vmem:[#allocation6 + $0x148] sm:$0xff] %v2134
        %2151 = vst [vmem:[#allocation6 + $0x170] sm:$0xff] %v2135
        %2152 = vst [vmem:[#allocation6 + $0x198] sm:$0xff] %v2136
        %2153 = vst [vmem:[#allocation6 + $0x1c0] sm:$0xff] %v2137
        %2154 = vst [vmem:[#allocation6 + $0x1e8] sm:$0xff] %v2138
        %2155 = vst [vmem:[#allocation6 + $0x210] sm:$0xff] %v2139
        %2156 = vst [vmem:[#allocation6 + $0x238] sm:$0xff] %v2140
        %2157 = vst [vmem:[#allocation6 + $0x260] sm:$0xff] %v2141
        %v2158 = vld [vmem:[#allocation5 + $0x2] sm:$0xff]
        %v2159 = vld [vmem:[#allocation5 + $0xa] sm:$0xff]
        %v2160 = vld [vmem:[#allocation5 + $0x12] sm:$0xff]
        %v2161 = vld [vmem:[#allocation5 + $0x1a] sm:$0xff]
        %v2162 = vld [vmem:[#allocation5 + $0x22] sm:$0xff]
        %v2163 = vld [vmem:[#allocation5 + $0x2a] sm:$0xff]
        %v2164 = vld [vmem:[#allocation5 + $0x32] sm:$0xff]
        %v2165 = vld [vmem:[#allocation5 + $0x3a] sm:$0xff]
        %v2166 = vld [vmem:[#allocation5 + $0x42] sm:$0xff]
        %v2167 = vld [vmem:[#allocation5 + $0x4a] sm:$0xff]
        %v2168 = vld [vmem:[#allocation5 + $0x52] sm:$0xff]
        %v2169 = vld [vmem:[#allocation5 + $0x5a] sm:$0xff]
        %v2170 = vld [vmem:[#allocation5 + $0x62] sm:$0xff]
        %v2171 = vld [vmem:[#allocation5 + $0x6a] sm:$0xff]
        %v2172 = vld [vmem:[#allocation5 + $0x72] sm:$0xff]
        %v2173 = vld [vmem:[#allocation5 + $0x7a] sm:$0xff]
        %2174 = vst [vmem:[#allocation6 + $0x10] sm:$0xff] %v2158
        %2175 = vst [vmem:[#allocation6 + $0x38] sm:$0xff] %v2159
        %2176 = vst [vmem:[#allocation6 + $0x60] sm:$0xff] %v2160
        %2177 = vst [vmem:[#allocation6 + $0x88] sm:$0xff] %v2161
        %2178 = vst [vmem:[#allocation6 + $0xb0] sm:$0xff] %v2162
        %2179 = vst [vmem:[#allocation6 + $0xd8] sm:$0xff] %v2163
        %2180 = vst [vmem:[#allocation6 + $0x100] sm:$0xff] %v2164
        %2181 = vst [vmem:[#allocation6 + $0x128] sm:$0xff] %v2165
        %2182 = vst [vmem:[#allocation6 + $0x150] sm:$0xff] %v2166
        %2183 = vst [vmem:[#allocation6 + $0x178] sm:$0xff] %v2167
        %2184 = vst [vmem:[#allocation6 + $0x1a0] sm:$0xff] %v2168
        %2185 = vst [vmem:[#allocation6 + $0x1c8] sm:$0xff] %v2169
        %2186 = vst [vmem:[#allocation6 + $0x1f0] sm:$0xff] %v2170
        %2187 = vst [vmem:[#allocation6 + $0x218] sm:$0xff] %v2171
        %2188 = vst [vmem:[#allocation6 + $0x240] sm:$0xff] %v2172
        %2189 = vst [vmem:[#allocation6 + $0x268] sm:$0xff] %v2173
        %v2190 = vld [vmem:[#allocation5 + $0x3] sm:$0xff]
        %v2191 = vld [vmem:[#allocation5 + $0xb] sm:$0xff]
        %v2192 = vld [vmem:[#allocation5 + $0x13] sm:$0xff]
        %v2193 = vld [vmem:[#allocation5 + $0x1b] sm:$0xff]
        %v2194 = vld [vmem:[#allocation5 + $0x23] sm:$0xff]
        %v2195 = vld [vmem:[#allocation5 + $0x2b] sm:$0xff]
        %v2196 = vld [vmem:[#allocation5 + $0x33] sm:$0xff]
        %v2197 = vld [vmem:[#allocation5 + $0x3b] sm:$0xff]
        %v2198 = vld [vmem:[#allocation5 + $0x43] sm:$0xff]
        %v2199 = vld [vmem:[#allocation5 + $0x4b] sm:$0xff]
        %v2200 = vld [vmem:[#allocation5 + $0x53] sm:$0xff]
        %v2201 = vld [vmem:[#allocation5 + $0x5b] sm:$0xff]
        %v2202 = vld [vmem:[#allocation5 + $0x63] sm:$0xff]
        %v2203 = vld [vmem:[#allocation5 + $0x6b] sm:$0xff]
        %v2204 = vld [vmem:[#allocation5 + $0x73] sm:$0xff]
        %v2205 = vld [vmem:[#allocation5 + $0x7b] sm:$0xff]
        %2206 = vst [vmem:[#allocation6 + $0x18] sm:$0xff] %v2190
        %2207 = vst [vmem:[#allocation6 + $0x40] sm:$0xff] %v2191
        %2208 = vst [vmem:[#allocation6 + $0x68] sm:$0xff] %v2192
        %2209 = vst [vmem:[#allocation6 + $0x90] sm:$0xff] %v2193
        %2210 = vst [vmem:[#allocation6 + $0xb8] sm:$0xff] %v2194
        %2211 = vst [vmem:[#allocation6 + $0xe0] sm:$0xff] %v2195
        %2212 = vst [vmem:[#allocation6 + $0x108] sm:$0xff] %v2196
        %2213 = vst [vmem:[#allocation6 + $0x130] sm:$0xff] %v2197
        %2214 = vst [vmem:[#allocation6 + $0x158] sm:$0xff] %v2198
        %2215 = vst [vmem:[#allocation6 + $0x180] sm:$0xff] %v2199
        %2216 = vst [vmem:[#allocation6 + $0x1a8] sm:$0xff] %v2200
        %2217 = vst [vmem:[#allocation6 + $0x1d0] sm:$0xff] %v2201
        %2218 = vst [vmem:[#allocation6 + $0x1f8] sm:$0xff] %v2202
        %2219 = vst [vmem:[#allocation6 + $0x220] sm:$0xff] %v2203
        %2220 = vst [vmem:[#allocation6 + $0x248] sm:$0xff] %v2204
        %2221 = vst [vmem:[#allocation6 + $0x270] sm:$0xff] %v2205
        %v2222 = vld [vmem:[#allocation5 + $0x4] sm:$0xff]
        %v2223 = vld [vmem:[#allocation5 + $0xc] sm:$0xff]
        %v2224 = vld [vmem:[#allocation5 + $0x14] sm:$0xff]
        %v2225 = vld [vmem:[#allocation5 + $0x1c] sm:$0xff]
        %v2226 = vld [vmem:[#allocation5 + $0x24] sm:$0xff]
        %v2227 = vld [vmem:[#allocation5 + $0x2c] sm:$0xff]
        %v2228 = vld [vmem:[#allocation5 + $0x34] sm:$0xff]
        %v2229 = vld [vmem:[#allocation5 + $0x3c] sm:$0xff]
        %v2230 = vld [vmem:[#allocation5 + $0x44] sm:$0xff]
        %v2231 = vld [vmem:[#allocation5 + $0x4c] sm:$0xff]
        %v2232 = vld [vmem:[#allocation5 + $0x54] sm:$0xff]
        %v2233 = vld [vmem:[#allocation5 + $0x5c] sm:$0xff]
        %v2234 = vld [vmem:[#allocation5 + $0x64] sm:$0xff]
        %v2235 = vld [vmem:[#allocation5 + $0x6c] sm:$0xff]
        %v2236 = vld [vmem:[#allocation5 + $0x74] sm:$0xff]
        %v2237 = vld [vmem:[#allocation5 + $0x7c] sm:$0xff]
        %2238 = vst [vmem:[#allocation6 + $0x20] sm:$0xff] %v2222
        %2239 = vst [vmem:[#allocation6 + $0x48] sm:$0xff] %v2223
        %2240 = vst [vmem:[#allocation6 + $0x70] sm:$0xff] %v2224
        %2241 = vst [vmem:[#allocation6 + $0x98] sm:$0xff] %v2225
        %2242 = vst [vmem:[#allocation6 + $0xc0] sm:$0xff] %v2226
        %2243 = vst [vmem:[#allocation6 + $0xe8] sm:$0xff] %v2227
        %2244 = vst [vmem:[#allocation6 + $0x110] sm:$0xff] %v2228
        %2245 = vst [vmem:[#allocation6 + $0x138] sm:$0xff] %v2229
        %2246 = vst [vmem:[#allocation6 + $0x160] sm:$0xff] %v2230
        %2247 = vst [vmem:[#allocation6 + $0x188] sm:$0xff] %v2231
        %2248 = vst [vmem:[#allocation6 + $0x1b0] sm:$0xff] %v2232
        %2249 = vst [vmem:[#allocation6 + $0x1d8] sm:$0xff] %v2233
        %2250 = vst [vmem:[#allocation6 + $0x200] sm:$0xff] %v2234
        %2251 = vst [vmem:[#allocation6 + $0x228] sm:$0xff] %v2235
        %2252 = vst [vmem:[#allocation6 + $0x250] sm:$0xff] %v2236
        %2253 = vst [vmem:[#allocation6 + $0x278] sm:$0xff] %v2237
        %v2254 = vld [vmem:[#allocation6] sm:$0xff]
        %v2255 = vld [vmem:[#allocation6 + $0x8] sm:$0xff]
        %v2256 = vld [vmem:[#allocation6 + $0x10] sm:$0xff]
        %v2257 = vld [vmem:[#allocation6 + $0x18] sm:$0xff]
        %v2258 = vld [vmem:[#allocation6 + $0x20] sm:$0xff]
        %v2259 = vld [vmem:[#allocation6 + $0x28] sm:$0xff]
        %v2260 = vld [vmem:[#allocation6 + $0x30] sm:$0xff]
        %v2261 = vld [vmem:[#allocation6 + $0x38] sm:$0xff]
        %v2262 = vld [vmem:[#allocation6 + $0x40] sm:$0xff]
        %v2263 = vld [vmem:[#allocation6 + $0x48] sm:$0xff]
        %v2264 = vld [vmem:[#allocation6 + $0x50] sm:$0xff]
        %v2265 = vld [vmem:[#allocation6 + $0x58] sm:$0xff]
        %v2266 = vld [vmem:[#allocation6 + $0x60] sm:$0xff]
        %v2267 = vld [vmem:[#allocation6 + $0x68] sm:$0xff]
        %v2268 = vld [vmem:[#allocation6 + $0x70] sm:$0xff]
        %v2269 = vld [vmem:[#allocation6 + $0x78] sm:$0xff]
        %v2270 = vld [vmem:[#allocation6 + $0x80] sm:$0xff]
        %v2271 = vld [vmem:[#allocation6 + $0x88] sm:$0xff]
        %v2272 = vld [vmem:[#allocation6 + $0x90] sm:$0xff]
        %v2273 = vld [vmem:[#allocation6 + $0x98] sm:$0xff]
        %v2274 = vld [vmem:[#allocation6 + $0xa0] sm:$0xff]
        %v2275 = vld [vmem:[#allocation6 + $0xa8] sm:$0xff]
        %v2276 = vld [vmem:[#allocation6 + $0xb0] sm:$0xff]
        %v2277 = vld [vmem:[#allocation6 + $0xb8] sm:$0xff]
        %v2278 = vld [vmem:[#allocation6 + $0xc0] sm:$0xff]
        %v2279 = vld [vmem:[#allocation6 + $0xc8] sm:$0xff]
        %v2280 = vld [vmem:[#allocation6 + $0xd0] sm:$0xff]
        %v2281 = vld [vmem:[#allocation6 + $0xd8] sm:$0xff]
        %v2282 = vld [vmem:[#allocation6 + $0xe0] sm:$0xff]
        %v2283 = vld [vmem:[#allocation6 + $0xe8] sm:$0xff]
        %v2284 = vld [vmem:[#allocation6 + $0xf0] sm:$0xff]
        %v2285 = vld [vmem:[#allocation6 + $0xf8] sm:$0xff]
        %v2286 = vld [vmem:[#allocation6 + $0x100] sm:$0xff]
        %v2287 = vld [vmem:[#allocation6 + $0x108] sm:$0xff]
        %v2288 = vld [vmem:[#allocation6 + $0x110] sm:$0xff]
        %v2289 = vld [vmem:[#allocation6 + $0x118] sm:$0xff]
        %v2290 = vld [vmem:[#allocation6 + $0x120] sm:$0xff]
        %v2291 = vld [vmem:[#allocation6 + $0x128] sm:$0xff]
        %v2292 = vld [vmem:[#allocation6 + $0x130] sm:$0xff]
        %v2293 = vld [vmem:[#allocation6 + $0x138] sm:$0xff]
        %v2294 = vld [vmem:[#allocation6 + $0x140] sm:$0xff]
        %v2295 = vld [vmem:[#allocation6 + $0x148] sm:$0xff]
        %v2296 = vld [vmem:[#allocation6 + $0x150] sm:$0xff]
        %v2297 = vld [vmem:[#allocation6 + $0x158] sm:$0xff]
        %v2298 = vld [vmem:[#allocation6 + $0x160] sm:$0xff]
        %v2299 = vld [vmem:[#allocation6 + $0x168] sm:$0xff]
        %v2300 = vld [vmem:[#allocation6 + $0x170] sm:$0xff]
        %v2301 = vld [vmem:[#allocation6 + $0x178] sm:$0xff]
        %v2302 = vld [vmem:[#allocation6 + $0x180] sm:$0xff]
        %v2303 = vld [vmem:[#allocation6 + $0x188] sm:$0xff]
        %v2304 = vld [vmem:[#allocation6 + $0x190] sm:$0xff]
        %v2305 = vld [vmem:[#allocation6 + $0x198] sm:$0xff]
        %v2306 = vld [vmem:[#allocation6 + $0x1a0] sm:$0xff]
        %v2307 = vld [vmem:[#allocation6 + $0x1a8] sm:$0xff]
        %v2308 = vld [vmem:[#allocation6 + $0x1b0] sm:$0xff]
        %v2309 = vld [vmem:[#allocation6 + $0x1b8] sm:$0xff]
        %v2310 = vld [vmem:[#allocation6 + $0x1c0] sm:$0xff]
        %v2311 = vld [vmem:[#allocation6 + $0x1c8] sm:$0xff]
        %v2312 = vld [vmem:[#allocation6 + $0x1d0] sm:$0xff]
        %v2313 = vld [vmem:[#allocation6 + $0x1d8] sm:$0xff]
        %v2314 = vld [vmem:[#allocation6 + $0x1e0] sm:$0xff]
        %v2315 = vld [vmem:[#allocation6 + $0x1e8] sm:$0xff]
        %v2316 = vld [vmem:[#allocation6 + $0x1f0] sm:$0xff]
        %v2317 = vld [vmem:[#allocation6 + $0x1f8] sm:$0xff]
        %v2318 = vld [vmem:[#allocation6 + $0x200] sm:$0xff]
        %v2319 = vld [vmem:[#allocation6 + $0x208] sm:$0xff]
        %v2320 = vld [vmem:[#allocation6 + $0x210] sm:$0xff]
        %v2321 = vld [vmem:[#allocation6 + $0x218] sm:$0xff]
        %v2322 = vld [vmem:[#allocation6 + $0x220] sm:$0xff]
        %v2323 = vld [vmem:[#allocation6 + $0x228] sm:$0xff]
        %v2324 = vld [vmem:[#allocation6 + $0x230] sm:$0xff]
        %v2325 = vld [vmem:[#allocation6 + $0x238] sm:$0xff]
        %v2326 = vld [vmem:[#allocation6 + $0x240] sm:$0xff]
        %v2327 = vld [vmem:[#allocation6 + $0x248] sm:$0xff]
        %v2328 = vld [vmem:[#allocation6 + $0x250] sm:$0xff]
        %v2329 = vld [vmem:[#allocation6 + $0x258] sm:$0xff]
        %v2330 = vld [vmem:[#allocation6 + $0x260] sm:$0xff]
        %v2331 = vld [vmem:[#allocation6 + $0x268] sm:$0xff]
        %v2332 = vld [vmem:[#allocation6 + $0x270] sm:$0xff]
        %v2333 = vld [vmem:[#allocation6 + $0x278] sm:$0xff]
        %v2334 = vld [vmem:[%s3] sm:$0xff]
        %v2335 = vld [vmem:[%s3 + $0x8] sm:$0xff]
        %v2336 = vld [vmem:[%s3 + $0x10] sm:$0xff]
        %v2337 = vld [vmem:[%s3 + $0x18] sm:$0xff]
        %v2338 = vld [vmem:[%s3 + $0x20] sm:$0xff]
        %v2339 = vld [vmem:[%s3 + $0x28] sm:$0xff]
        %v2340 = vld [vmem:[%s3 + $0x30] sm:$0xff]
        %v2341 = vld [vmem:[%s3 + $0x38] sm:$0xff]
        %v2342 = vld [vmem:[%s3 + $0x40] sm:$0xff]
        %v2343 = vld [vmem:[%s3 + $0x48] sm:$0xff]
        %v2344 = vld [vmem:[%s3 + $0x50] sm:$0xff]
        %v2345 = vld [vmem:[%s3 + $0x58] sm:$0xff]
        %v2346 = vld [vmem:[%s3 + $0x60] sm:$0xff]
        %v2347 = vld [vmem:[%s3 + $0x68] sm:$0xff]
        %v2348 = vld [vmem:[%s3 + $0x70] sm:$0xff]
        %v2349 = vld [vmem:[%s3 + $0x78] sm:$0xff]
        %v2350 = vld [vmem:[%s3 + $0x80] sm:$0xff]
        %v2351 = vld [vmem:[%s3 + $0x88] sm:$0xff]
        %v2352 = vld [vmem:[%s3 + $0x90] sm:$0xff]
        %v2353 = vld [vmem:[%s3 + $0x98] sm:$0xff]
        %v2354 = vld [vmem:[%s3 + $0xa0] sm:$0xff]
        %v2355 = vld [vmem:[%s3 + $0xa8] sm:$0xff]
        %v2356 = vld [vmem:[%s3 + $0xb0] sm:$0xff]
        %v2357 = vld [vmem:[%s3 + $0xb8] sm:$0xff]
        %v2358 = vld [vmem:[%s3 + $0xc0] sm:$0xff]
        %v2359 = vld [vmem:[%s3 + $0xc8] sm:$0xff]
        %v2360 = vld [vmem:[%s3 + $0xd0] sm:$0xff]
        %v2361 = vld [vmem:[%s3 + $0xd8] sm:$0xff]
        %v2362 = vld [vmem:[%s3 + $0xe0] sm:$0xff]
        %v2363 = vld [vmem:[%s3 + $0xe8] sm:$0xff]
        %v2364 = vld [vmem:[%s3 + $0xf0] sm:$0xff]
        %v2365 = vld [vmem:[%s3 + $0xf8] sm:$0xff]
        %v2366 = vld [vmem:[%s3 + $0x100] sm:$0xff]
        %v2367 = vld [vmem:[%s3 + $0x108] sm:$0xff]
        %v2368 = vld [vmem:[%s3 + $0x110] sm:$0xff]
        %v2369 = vld [vmem:[%s3 + $0x118] sm:$0xff]
        %v2370 = vld [vmem:[%s3 + $0x120] sm:$0xff]
        %v2371 = vld [vmem:[%s3 + $0x128] sm:$0xff]
        %v2372 = vld [vmem:[%s3 + $0x130] sm:$0xff]
        %v2373 = vld [vmem:[%s3 + $0x138] sm:$0xff]
        %v2374 = vld [vmem:[%s3 + $0x140] sm:$0xff]
        %v2375 = vld [vmem:[%s3 + $0x148] sm:$0xff]
        %v2376 = vld [vmem:[%s3 + $0x150] sm:$0xff]
        %v2377 = vld [vmem:[%s3 + $0x158] sm:$0xff]
        %v2378 = vld [vmem:[%s3 + $0x160] sm:$0xff]
        %v2379 = vld [vmem:[%s3 + $0x168] sm:$0xff]
        %v2380 = vld [vmem:[%s3 + $0x170] sm:$0xff]
        %v2381 = vld [vmem:[%s3 + $0x178] sm:$0xff]
        %v2382 = vld [vmem:[%s3 + $0x180] sm:$0xff]
        %v2383 = vld [vmem:[%s3 + $0x188] sm:$0xff]
        %v2384 = vld [vmem:[%s3 + $0x190] sm:$0xff]
        %v2385 = vld [vmem:[%s3 + $0x198] sm:$0xff]
        %v2386 = vld [vmem:[%s3 + $0x1a0] sm:$0xff]
        %v2387 = vld [vmem:[%s3 + $0x1a8] sm:$0xff]
        %v2388 = vld [vmem:[%s3 + $0x1b0] sm:$0xff]
        %v2389 = vld [vmem:[%s3 + $0x1b8] sm:$0xff]
        %v2390 = vld [vmem:[%s3 + $0x1c0] sm:$0xff]
        %v2391 = vld [vmem:[%s3 + $0x1c8] sm:$0xff]
        %v2392 = vld [vmem:[%s3 + $0x1d0] sm:$0xff]
        %v2393 = vld [vmem:[%s3 + $0x1d8] sm:$0xff]
        %v2394 = vld [vmem:[%s3 + $0x1e0] sm:$0xff]
        %v2395 = vld [vmem:[%s3 + $0x1e8] sm:$0xff]
        %v2396 = vld [vmem:[%s3 + $0x1f0] sm:$0xff]
        %v2397 = vld [vmem:[%s3 + $0x1f8] sm:$0xff]
        %v2398 = vld [vmem:[%s3 + $0x200] sm:$0xff]
        %v2399 = vld [vmem:[%s3 + $0x208] sm:$0xff]
        %v2400 = vld [vmem:[%s3 + $0x210] sm:$0xff]
        %v2401 = vld [vmem:[%s3 + $0x218] sm:$0xff]
        %v2402 = vld [vmem:[%s3 + $0x220] sm:$0xff]
        %v2403 = vld [vmem:[%s3 + $0x228] sm:$0xff]
        %v2404 = vld [vmem:[%s3 + $0x230] sm:$0xff]
        %v2405 = vld [vmem:[%s3 + $0x238] sm:$0xff]
        %v2406 = vld [vmem:[%s3 + $0x240] sm:$0xff]
        %v2407 = vld [vmem:[%s3 + $0x248] sm:$0xff]
        %v2408 = vld [vmem:[%s3 + $0x250] sm:$0xff]
        %v2409 = vld [vmem:[%s3 + $0x258] sm:$0xff]
        %v2410 = vld [vmem:[%s3 + $0x260] sm:$0xff]
        %v2411 = vld [vmem:[%s3 + $0x268] sm:$0xff]
        %v2412 = vld [vmem:[%s3 + $0x270] sm:$0xff]
        %v2413 = vld [vmem:[%s3 + $0x278] sm:$0xff]
        %v2414 = vld [vmem:[%s3 + $0x280] sm:$0xff]
        %v2415 = vld [vmem:[%s3 + $0x288] sm:$0xff]
        %v2416 = vld [vmem:[%s3 + $0x290] sm:$0xff]
        %v2417 = vld [vmem:[%s3 + $0x298] sm:$0xff]
        %v2418 = vld [vmem:[%s3 + $0x2a0] sm:$0xff]
        %v2419 = vld [vmem:[%s3 + $0x2a8] sm:$0xff]
        %v2420 = vld [vmem:[%s3 + $0x2b0] sm:$0xff]
        %v2421 = vld [vmem:[%s3 + $0x2b8] sm:$0xff]
        %v2422 = vld [vmem:[%s3 + $0x2c0] sm:$0xff]
        %v2423 = vld [vmem:[%s3 + $0x2c8] sm:$0xff]
        %v2424 = vld [vmem:[%s3 + $0x2d0] sm:$0xff]
        %v2425 = vld [vmem:[%s3 + $0x2d8] sm:$0xff]
        %v2426 = vld [vmem:[%s3 + $0x2e0] sm:$0xff]
        %v2427 = vld [vmem:[%s3 + $0x2e8] sm:$0xff]
        %v2428 = vld [vmem:[%s3 + $0x2f0] sm:$0xff]
        %v2429 = vld [vmem:[%s3 + $0x2f8] sm:$0xff]
        %v2430 = vld [vmem:[%s3 + $0x300] sm:$0xff]
        %v2431 = vld [vmem:[%s3 + $0x308] sm:$0xff]
        %v2432 = vld [vmem:[%s3 + $0x310] sm:$0xff]
        %v2433 = vld [vmem:[%s3 + $0x318] sm:$0xff]
        %v2434 = vld [vmem:[%s3 + $0x320] sm:$0xff]
        %v2435 = vld [vmem:[%s3 + $0x328] sm:$0xff]
        %v2436 = vld [vmem:[%s3 + $0x330] sm:$0xff]
        %v2437 = vld [vmem:[%s3 + $0x338] sm:$0xff]
        %v2438 = vld [vmem:[%s3 + $0x340] sm:$0xff]
        %v2439 = vld [vmem:[%s3 + $0x348] sm:$0xff]
        %v2440 = vld [vmem:[%s3 + $0x350] sm:$0xff]
        %v2441 = vld [vmem:[%s3 + $0x358] sm:$0xff]
        %v2442 = vld [vmem:[%s3 + $0x360] sm:$0xff]
        %v2443 = vld [vmem:[%s3 + $0x368] sm:$0xff]
        %v2444 = vld [vmem:[%s3 + $0x370] sm:$0xff]
        %v2445 = vld [vmem:[%s3 + $0x378] sm:$0xff]
        %v2446 = vld [vmem:[%s3 + $0x380] sm:$0xff]
        %v2447 = vld [vmem:[%s3 + $0x388] sm:$0xff]
        %v2448 = vld [vmem:[%s3 + $0x390] sm:$0xff]
        %v2449 = vld [vmem:[%s3 + $0x398] sm:$0xff]
        %v2450 = vld [vmem:[%s3 + $0x3a0] sm:$0xff]
        %v2451 = vld [vmem:[%s3 + $0x3a8] sm:$0xff]
        %v2452 = vld [vmem:[%s3 + $0x3b0] sm:$0xff]
        %v2453 = vld [vmem:[%s3 + $0x3b8] sm:$0xff]
        %v2454 = vld [vmem:[%s3 + $0x3c0] sm:$0xff]
        %v2455 = vld [vmem:[%s3 + $0x3c8] sm:$0xff]
        %v2456 = vld [vmem:[%s3 + $0x3d0] sm:$0xff]
        %v2457 = vld [vmem:[%s3 + $0x3d8] sm:$0xff]
        %v2458 = vld [vmem:[%s3 + $0x3e0] sm:$0xff]
        %v2459 = vld [vmem:[%s3 + $0x3e8] sm:$0xff]
        %v2460 = vld [vmem:[%s3 + $0x3f0] sm:$0xff]
        %v2461 = vld [vmem:[%s3 + $0x3f8] sm:$0xff]
        %v2462 = vld [vmem:[%s3 + $0x400] sm:$0xff]
        %v2463 = vld [vmem:[%s3 + $0x408] sm:$0xff]
        %v2464 = vld [vmem:[%s3 + $0x410] sm:$0xff]
        %v2465 = vld [vmem:[%s3 + $0x418] sm:$0xff]
        %v2466 = vld [vmem:[%s3 + $0x420] sm:$0xff]
        %v2467 = vld [vmem:[%s3 + $0x428] sm:$0xff]
        %v2468 = vld [vmem:[%s3 + $0x430] sm:$0xff]
        %v2469 = vld [vmem:[%s3 + $0x438] sm:$0xff]
        %v2470 = vld [vmem:[%s3 + $0x440] sm:$0xff]
        %v2471 = vld [vmem:[%s3 + $0x448] sm:$0xff]
        %v2472 = vld [vmem:[%s3 + $0x450] sm:$0xff]
        %v2473 = vld [vmem:[%s3 + $0x458] sm:$0xff]
        %v2474 = vld [vmem:[%s3 + $0x460] sm:$0xff]
        %v2475 = vld [vmem:[%s3 + $0x468] sm:$0xff]
        %v2476 = vld [vmem:[%s3 + $0x470] sm:$0xff]
        %v2477 = vld [vmem:[%s3 + $0x478] sm:$0xff]
        %v2478 = vld [vmem:[%s3 + $0x480] sm:$0xff]
        %v2479 = vld [vmem:[%s3 + $0x488] sm:$0xff]
        %v2480 = vld [vmem:[%s3 + $0x490] sm:$0xff]
        %v2481 = vld [vmem:[%s3 + $0x498] sm:$0xff]
        %v2482 = vld [vmem:[%s3 + $0x4a0] sm:$0xff]
        %v2483 = vld [vmem:[%s3 + $0x4a8] sm:$0xff]
        %v2484 = vld [vmem:[%s3 + $0x4b0] sm:$0xff]
        %v2485 = vld [vmem:[%s3 + $0x4b8] sm:$0xff]
        %v2486 = vld [vmem:[%s3 + $0x4c0] sm:$0xff]
        %v2487 = vld [vmem:[%s3 + $0x4c8] sm:$0xff]
        %v2488 = vld [vmem:[%s3 + $0x4d0] sm:$0xff]
        %v2489 = vld [vmem:[%s3 + $0x4d8] sm:$0xff]
        %v2490 = vld [vmem:[%s3 + $0x4e0] sm:$0xff]
        %v2491 = vld [vmem:[%s3 + $0x4e8] sm:$0xff]
        %v2492 = vld [vmem:[%s3 + $0x4f0] sm:$0xff]
        %v2493 = vld [vmem:[%s3 + $0x4f8] sm:$0xff]
        %2494 = vmatprep.subr.mxu0 %v2335
        %2495 = vmatpush1.msra.mxu0 %v2334
        %2496 = vmatprep.subr.mxu0 %v2337
        %2497 = vmatpush1.msra.mxu0 %v2336
        %2498 = vmatprep.subr.mxu0 %v2339
        %2499 = vmatpush1.msra.mxu0 %v2338
        %2500 = vmatprep.subr.mxu0 %v2341
        %2501 = vmatpush1.msra.mxu0 %v2340
        %2502 = vmatprep.subr.mxu0 %v2343
        %2503 = vmatpush1.msra.mxu0 %v2342
        %2504 = vmatprep.subr.mxu0 %v2345
        %2505 = vmatpush1.msra.mxu0 %v2344
        %2506 = vmatprep.subr.mxu0 %v2347
        %2507 = vmatpush1.msra.mxu0 %v2346
        %2508 = vmatprep.subr.mxu0 %v2349
        %2509 = vmatpush1.msra.mxu0 %v2348
        %2510 = vmatprep.subr.mxu0 %v2351
        %2511 = vmatpush1.msra.mxu0 %v2350
        %2512 = vmatprep.subr.mxu0 %v2353
        %2513 = vmatpush1.msra.mxu0 %v2352
        %2514 = vmatprep.subr.mxu0 %v2355
        %2515 = vmatpush1.msra.mxu0 %v2354
        %2516 = vmatprep.subr.mxu0 %v2357
        %2517 = vmatpush1.msra.mxu0 %v2356
        %2518 = vmatprep.subr.mxu0 %v2359
        %2519 = vmatpush1.msra.mxu0 %v2358
        %2520 = vmatprep.subr.mxu0 %v2361
        %2521 = vmatpush1.msra.mxu0 %v2360
        %2522 = vmatprep.subr.mxu0 %v2363
        %2523 = vmatpush1.msra.mxu0 %v2362
        %2524 = vmatprep.subr.mxu0 %v2365
        %2525 = vmatpush1.msra.mxu0 %v2364
        %2526 = vmatprep.subr.mxu0 %v2367
        %2527 = vmatpush1.msra.mxu0 %v2366
        %2528 = vmatprep.subr.mxu0 %v2369
        %2529 = vmatpush1.msra.mxu0 %v2368
        %2530 = vmatprep.subr.mxu0 %v2371
        %2531 = vmatpush1.msra.mxu0 %v2370
        %2532 = vmatprep.subr.mxu0 %v2373
        %2533 = vmatpush1.msra.mxu0 %v2372
        %2534 = vmatprep.subr.mxu0 %v2375
        %2535 = vmatpush1.msra.mxu0 %v2374
        %2536 = vmatprep.subr.mxu0 %v2377
        %2537 = vmatpush1.msra.mxu0 %v2376
        %2538 = vmatprep.subr.mxu0 %v2379
        %2539 = vmatpush1.msra.mxu0 %v2378
        %2540 = vmatprep.subr.mxu0 %v2381
        %2541 = vmatpush1.msra.mxu0 %v2380
        %2542 = vmatprep.subr.mxu0 %v2383
        %2543 = vmatpush1.msra.mxu0 %v2382
        %2544 = vmatprep.subr.mxu0 %v2385
        %2545 = vmatpush1.msra.mxu0 %v2384
        %2546 = vmatprep.subr.mxu0 %v2387
        %2547 = vmatpush1.msra.mxu0 %v2386
        %2548 = vmatprep.subr.mxu0 %v2389
        %2549 = vmatpush1.msra.mxu0 %v2388
        %2550 = vmatprep.subr.mxu0 %v2391
        %2551 = vmatpush1.msra.mxu0 %v2390
        %2552 = vmatprep.subr.mxu0 %v2393
        %2553 = vmatpush1.msra.mxu0 %v2392
        %2554 = vmatprep.subr.mxu0 %v2395
        %2555 = vmatpush1.msra.mxu0 %v2394
        %2556 = vmatprep.subr.mxu0 %v2397
        %2557 = vmatpush1.msra.mxu0 %v2396
        %2558 = vmatprep.mubr.f32.mxu0 %v2255
        %2559 = vmatmul.mubr.f32.gmra.mrb[0].mxu0 %v2254
        %v2560 = vpop.f32.mrb[0].mxu0
        %v2561 = vadd.f32 0.0, %v2560
        %v2562 = vpop.f32.mrb[0].mxu0
        %v2563 = vadd.f32 0.0, %v2562
        %2564 = vmatprep.mubr.f32.mxu0 %v2260
        %2565 = vmatmul.mubr.f32.gmra.mrb[0].mxu0 %v2259
        %v2566 = vpop.f32.mrb[0].mxu0
        %v2567 = vadd.f32 0.0, %v2566
        %v2568 = vpop.f32.mrb[0].mxu0
        %v2569 = vadd.f32 0.0, %v2568
        %2570 = vmatprep.mubr.f32.mxu0 %v2265
        %2571 = vmatmul.mubr.f32.gmra.mrb[0].mxu0 %v2264
        %v2572 = vpop.f32.mrb[0].mxu0
        %v2573 = vadd.f32 0.0, %v2572
        %v2574 = vpop.f32.mrb[0].mxu0
        %v2575 = vadd.f32 0.0, %v2574
        %2576 = vmatprep.mubr.f32.mxu0 %v2270
        %2577 = vmatmul.mubr.f32.gmra.mrb[0].mxu0 %v2269
        %v2578 = vpop.f32.mrb[0].mxu0
        %v2579 = vadd.f32 0.0, %v2578
        %v2580 = vpop.f32.mrb[0].mxu0
        %v2581 = vadd.f32 0.0, %v2580
        %2582 = vmatprep.mubr.f32.mxu0 %v2275
        %2583 = vmatmul.mubr.f32.gmra.mrb[0].mxu0 %v2274
        %v2584 = vpop.f32.mrb[0].mxu0
        %v2585 = vadd.f32 0.0, %v2584
        %v2586 = vpop.f32.mrb[0].mxu0
        %v2587 = vadd.f32 0.0, %v2586
        %2588 = vmatprep.mubr.f32.mxu0 %v2280
        %2589 = vmatmul.mubr.f32.gmra.mrb[0].mxu0 %v2279
        %v2590 = vpop.f32.mrb[0].mxu0
        %v2591 = vadd.f32 0.0, %v2590
        %v2592 = vpop.f32.mrb[0].mxu0
        %v2593 = vadd.f32 0.0, %v2592
        %2594 = vmatprep.mubr.f32.mxu0 %v2285
        %2595 = vmatmul.mubr.f32.gmra.mrb[0].mxu0 %v2284
        %v2596 = vpop.f32.mrb[0].mxu0
        %v2597 = vadd.f32 0.0, %v2596
        %v2598 = vpop.f32.mrb[0].mxu0
        %v2599 = vadd.f32 0.0, %v2598
        %2600 = vmatprep.mubr.f32.mxu0 %v2290
        %2601 = vmatmul.mubr.f32.gmra.mrb[0].mxu0 %v2289
        %v2602 = vpop.f32.mrb[0].mxu0
        %v2603 = vadd.f32 0.0, %v2602
        %v2604 = vpop.f32.mrb[0].mxu0
        %v2605 = vadd.f32 0.0, %v2604
        %2606 = vmatprep.mubr.f32.mxu0 %v2295
        %2607 = vmatmul.mubr.f32.gmra.mrb[0].mxu0 %v2294
        %v2608 = vpop.f32.mrb[0].mxu0
        %v2609 = vadd.f32 0.0, %v2608
        %v2610 = vpop.f32.mrb[0].mxu0
        %v2611 = vadd.f32 0.0, %v2610
        %2612 = vmatprep.mubr.f32.mxu0 %v2300
        %2613 = vmatmul.mubr.f32.gmra.mrb[0].mxu0 %v2299
        %v2614 = vpop.f32.mrb[0].mxu0
        %v2615 = vadd.f32 0.0, %v2614
        %v2616 = vpop.f32.mrb[0].mxu0
        %v2617 = vadd.f32 0.0, %v2616
        %2618 = vmatprep.mubr.f32.mxu0 %v2305
        %2619 = vmatmul.mubr.f32.gmra.mrb[0].mxu0 %v2304
        %v2620 = vpop.f32.mrb[0].mxu0
        %v2621 = vadd.f32 0.0, %v2620
        %v2622 = vpop.f32.mrb[0].mxu0
        %v2623 = vadd.f32 0.0, %v2622
        %2624 = vmatprep.mubr.f32.mxu0 %v2310
        %2625 = vmatmul.mubr.f32.gmra.mrb[0].mxu0 %v2309
        %v2626 = vpop.f32.mrb[0].mxu0
        %v2627 = vadd.f32 0.0, %v2626
        %v2628 = vpop.f32.mrb[0].mxu0
        %v2629 = vadd.f32 0.0, %v2628
        %2630 = vmatprep.mubr.f32.mxu0 %v2315
        %2631 = vmatmul.mubr.f32.gmra.mrb[0].mxu0 %v2314
        %v2632 = vpop.f32.mrb[0].mxu0
        %v2633 = vadd.f32 0.0, %v2632
        %v2634 = vpop.f32.mrb[0].mxu0
        %v2635 = vadd.f32 0.0, %v2634
        %2636 = vmatprep.mubr.f32.mxu0 %v2320
        %2637 = vmatmul.mubr.f32.gmra.mrb[0].mxu0 %v2319
        %v2638 = vpop.f32.mrb[0].mxu0
        %v2639 = vadd.f32 0.0, %v2638
        %v2640 = vpop.f32.mrb[0].mxu0
        %v2641 = vadd.f32 0.0, %v2640
        %2642 = vmatprep.mubr.f32.mxu0 %v2325
        %2643 = vmatmul.mubr.f32.gmra.mrb[0].mxu0 %v2324
        %v2644 = vpop.f32.mrb[0].mxu0
        %v2645 = vadd.f32 0.0, %v2644
        %v2646 = vpop.f32.mrb[0].mxu0
        %v2647 = vadd.f32 0.0, %v2646
        %2648 = vmatprep.mubr.f32.mxu0 %v2330
        %2649 = vmatmul.mubr.f32.gmra.mrb[0].mxu0 %v2329
        %v2650 = vpop.f32.mrb[0].mxu0
        %v2651 = vadd.f32 0.0, %v2650
        %v2652 = vpop.f32.mrb[0].mxu0
        %v2653 = vadd.f32 0.0, %v2652
        %2654 = vdwg.mxu0
        %2655 = vmatprep.subr.mxu0 %v2399
        %2656 = vmatpush1.msra.mxu0 %v2398
        %2657 = vmatprep.subr.mxu0 %v2401
        %2658 = vmatpush1.msra.mxu0 %v2400
        %2659 = vmatprep.subr.mxu0 %v2403
        %2660 = vmatpush1.msra.mxu0 %v2402
        %2661 = vmatprep.subr.mxu0 %v2405
        %2662 = vmatpush1.msra.mxu0 %v2404
        %2663 = vmatprep.subr.mxu0 %v2407
        %2664 = vmatpush1.msra.mxu0 %v2406
        %2665 = vmatprep.subr.mxu0 %v2409
        %2666 = vmatpush1.msra.mxu0 %v2408
        %2667 = vmatprep.subr.mxu0 %v2411
        %2668 = vmatpush1.msra.mxu0 %v2410
        %2669 = vmatprep.subr.mxu0 %v2413
        %2670 = vmatpush1.msra.mxu0 %v2412
        %2671 = vmatprep.subr.mxu0 %v2415
        %2672 = vmatpush1.msra.mxu0 %v2414
        %2673 = vmatprep.subr.mxu0 %v2417
        %2674 = vmatpush1.msra.mxu0 %v2416
        %2675 = vmatprep.subr.mxu0 %v2419
        %2676 = vmatpush1.msra.mxu0 %v2418
        %2677 = vmatprep.subr.mxu0 %v2421
        %2678 = vmatpush1.msra.mxu0 %v2420
        %2679 = vmatprep.subr.mxu0 %v2423
        %2680 = vmatpush1.msra.mxu0 %v2422
        %2681 = vmatprep.subr.mxu0 %v2425
        %2682 = vmatpush1.msra.mxu0 %v2424
        %2683 = vmatprep.subr.mxu0 %v2427
        %2684 = vmatpush1.msra.mxu0 %v2426
        %2685 = vmatprep.subr.mxu0 %v2429
        %2686 = vmatpush1.msra.mxu0 %v2428
        %2687 = vmatprep.subr.mxu0 %v2431
        %2688 = vmatpush1.msra.mxu0 %v2430
        %2689 = vmatprep.subr.mxu0 %v2433
        %2690 = vmatpush1.msra.mxu0 %v2432
        %2691 = vmatprep.subr.mxu0 %v2435
        %2692 = vmatpush1.msra.mxu0 %v2434
        %2693 = vmatprep.subr.mxu0 %v2437
        %2694 = vmatpush1.msra.mxu0 %v2436
        %2695 = vmatprep.subr.mxu0 %v2439
        %2696 = vmatpush1.msra.mxu0 %v2438
        %2697 = vmatprep.subr.mxu0 %v2441
        %2698 = vmatpush1.msra.mxu0 %v2440
        %2699 = vmatprep.subr.mxu0 %v2443
        %2700 = vmatpush1.msra.mxu0 %v2442
        %2701 = vmatprep.subr.mxu0 %v2445
        %2702 = vmatpush1.msra.mxu0 %v2444
        %2703 = vmatprep.subr.mxu0 %v2447
        %2704 = vmatpush1.msra.mxu0 %v2446
        %2705 = vmatprep.subr.mxu0 %v2449
        %2706 = vmatpush1.msra.mxu0 %v2448
        %2707 = vmatprep.subr.mxu0 %v2451
        %2708 = vmatpush1.msra.mxu0 %v2450
        %2709 = vmatprep.subr.mxu0 %v2453
        %2710 = vmatpush1.msra.mxu0 %v2452
        %2711 = vmatprep.subr.mxu0 %v2455
        %2712 = vmatpush1.msra.mxu0 %v2454
        %2713 = vmatprep.subr.mxu0 %v2457
        %2714 = vmatpush1.msra.mxu0 %v2456
        %2715 = vmatprep.subr.mxu0 %v2459
        %2716 = vmatpush1.msra.mxu0 %v2458
        %2717 = vmatprep.subr.mxu0 %v2461
        %2718 = vmatpush1.msra.mxu0 %v2460
        %2719 = vmatprep.mubr.f32.mxu0 %v2257
        %2720 = vmatmul.mubr.f32.gmra.mrb[0].mxu0 %v2256
        %v2721 = vpop.f32.mrb[0].mxu0
        %v2722 = vadd.f32 %v2561, %v2721
        %v2723 = vpop.f32.mrb[0].mxu0
        %v2724 = vadd.f32 %v2563, %v2723
        %2725 = vmatprep.mubr.f32.mxu0 %v2262
        %2726 = vmatmul.mubr.f32.gmra.mrb[0].mxu0 %v2261
        %v2727 = vpop.f32.mrb[0].mxu0
        %v2728 = vadd.f32 %v2567, %v2727
        %v2729 = vpop.f32.mrb[0].mxu0
        %v2730 = vadd.f32 %v2569, %v2729
        %2731 = vmatprep.mubr.f32.mxu0 %v2267
        %2732 = vmatmul.mubr.f32.gmra.mrb[0].mxu0 %v2266
        %v2733 = vpop.f32.mrb[0].mxu0
        %v2734 = vadd.f32 %v2573, %v2733
        %v2735 = vpop.f32.mrb[0].mxu0
        %v2736 = vadd.f32 %v2575, %v2735
        %2737 = vmatprep.mubr.f32.mxu0 %v2272
        %2738 = vmatmul.mubr.f32.gmra.mrb[0].mxu0 %v2271
        %v2739 = vpop.f32.mrb[0].mxu0
        %v2740 = vadd.f32 %v2579, %v2739
        %v2741 = vpop.f32.mrb[0].mxu0
        %v2742 = vadd.f32 %v2581, %v2741
        %2743 = vmatprep.mubr.f32.mxu0 %v2277
        %2744 = vmatmul.mubr.f32.gmra.mrb[0].mxu0 %v2276
        %v2745 = vpop.f32.mrb[0].mxu0
        %v2746 = vadd.f32 %v2585, %v2745
        %v2747 = vpop.f32.mrb[0].mxu0
        %v2748 = vadd.f32 %v2587, %v2747
        %2749 = vmatprep.mubr.f32.mxu0 %v2282
        %2750 = vmatmul.mubr.f32.gmra.mrb[0].mxu0 %v2281
        %v2751 = vpop.f32.mrb[0].mxu0
        %v2752 = vadd.f32 %v2591, %v2751
        %v2753 = vpop.f32.mrb[0].mxu0
        %v2754 = vadd.f32 %v2593, %v2753
        %2755 = vmatprep.mubr.f32.mxu0 %v2287
        %2756 = vmatmul.mubr.f32.gmra.mrb[0].mxu0 %v2286
        %v2757 = vpop.f32.mrb[0].mxu0
        %v2758 = vadd.f32 %v2597, %v2757
        %v2759 = vpop.f32.mrb[0].mxu0
        %v2760 = vadd.f32 %v2599, %v2759
        %2761 = vmatprep.mubr.f32.mxu0 %v2292
        %2762 = vmatmul.mubr.f32.gmra.mrb[0].mxu0 %v2291
        %v2763 = vpop.f32.mrb[0].mxu0
        %v2764 = vadd.f32 %v2603, %v2763
        %v2765 = vpop.f32.mrb[0].mxu0
        %v2766 = vadd.f32 %v2605, %v2765
        %2767 = vmatprep.mubr.f32.mxu0 %v2297
        %2768 = vmatmul.mubr.f32.gmra.mrb[0].mxu0 %v2296
        %v2769 = vpop.f32.mrb[0].mxu0
        %v2770 = vadd.f32 %v2609, %v2769
        %v2771 = vpop.f32.mrb[0].mxu0
        %v2772 = vadd.f32 %v2611, %v2771
        %2773 = vmatprep.mubr.f32.mxu0 %v2302
        %2774 = vmatmul.mubr.f32.gmra.mrb[0].mxu0 %v2301
        %v2775 = vpop.f32.mrb[0].mxu0
        %v2776 = vadd.f32 %v2615, %v2775
        %v2777 = vpop.f32.mrb[0].mxu0
        %v2778 = vadd.f32 %v2617, %v2777
        %2779 = vmatprep.mubr.f32.mxu0 %v2307
        %2780 = vmatmul.mubr.f32.gmra.mrb[0].mxu0 %v2306
        %v2781 = vpop.f32.mrb[0].mxu0
        %v2782 = vadd.f32 %v2621, %v2781
        %v2783 = vpop.f32.mrb[0].mxu0
        %v2784 = vadd.f32 %v2623, %v2783
        %2785 = vmatprep.mubr.f32.mxu0 %v2312
        %2786 = vmatmul.mubr.f32.gmra.mrb[0].mxu0 %v2311
        %v2787 = vpop.f32.mrb[0].mxu0
        %v2788 = vadd.f32 %v2627, %v2787
        %v2789 = vpop.f32.mrb[0].mxu0
        %v2790 = vadd.f32 %v2629, %v2789
        %2791 = vmatprep.mubr.f32.mxu0 %v2317
        %2792 = vmatmul.mubr.f32.gmra.mrb[0].mxu0 %v2316
        %v2793 = vpop.f32.mrb[0].mxu0
        %v2794 = vadd.f32 %v2633, %v2793
        %v2795 = vpop.f32.mrb[0].mxu0
        %v2796 = vadd.f32 %v2635, %v2795
        %2797 = vmatprep.mubr.f32.mxu0 %v2322
        %2798 = vmatmul.mubr.f32.gmra.mrb[0].mxu0 %v2321
        %v2799 = vpop.f32.mrb[0].mxu0
        %v2800 = vadd.f32 %v2639, %v2799
        %v2801 = vpop.f32.mrb[0].mxu0
        %v2802 = vadd.f32 %v2641, %v2801
        %2803 = vmatprep.mubr.f32.mxu0 %v2327
        %2804 = vmatmul.mubr.f32.gmra.mrb[0].mxu0 %v2326
        %v2805 = vpop.f32.mrb[0].mxu0
        %v2806 = vadd.f32 %v2645, %v2805
        %v2807 = vpop.f32.mrb[0].mxu0
        %v2808 = vadd.f32 %v2647, %v2807
        %2809 = vmatprep.mubr.f32.mxu0 %v2332
        %2810 = vmatmul.mubr.f32.gmra.mrb[0].mxu0 %v2331
        %v2811 = vpop.f32.mrb[0].mxu0
        %v2812 = vadd.f32 %v2651, %v2811
        %v2813 = vpop.f32.mrb[0].mxu0
        %v2814 = vadd.f32 %v2653, %v2813
        %2815 = vdwg.mxu0
        %2816 = vmatprep.subr.mxu0 %v2463
        %2817 = vmatpush1.msra.mxu0 %v2462
        %2818 = vmatprep.subr.mxu0 %v2465
        %2819 = vmatpush1.msra.mxu0 %v2464
        %2820 = vmatprep.subr.mxu0 %v2467
        %2821 = vmatpush1.msra.mxu0 %v2466
        %2822 = vmatprep.subr.mxu0 %v2469
        %2823 = vmatpush1.msra.mxu0 %v2468
        %2824 = vmatprep.subr.mxu0 %v2471
        %2825 = vmatpush1.msra.mxu0 %v2470
        %2826 = vmatprep.subr.mxu0 %v2473
        %2827 = vmatpush1.msra.mxu0 %v2472
        %2828 = vmatprep.subr.mxu0 %v2475
        %2829 = vmatpush1.msra.mxu0 %v2474
        %2830 = vmatprep.subr.mxu0 %v2477
        %2831 = vmatpush1.msra.mxu0 %v2476
        %2832 = vmatprep.subr.mxu0 %v2479
        %2833 = vmatpush1.msra.mxu0 %v2478
        %2834 = vmatprep.subr.mxu0 %v2481
        %2835 = vmatpush1.msra.mxu0 %v2480
        %2836 = vmatprep.subr.mxu0 %v2483
        %2837 = vmatpush1.msra.mxu0 %v2482
        %2838 = vmatprep.subr.mxu0 %v2485
        %2839 = vmatpush1.msra.mxu0 %v2484
        %2840 = vmatprep.subr.mxu0 %v2487
        %2841 = vmatpush1.msra.mxu0 %v2486
        %2842 = vmatprep.subr.mxu0 %v2489
        %2843 = vmatpush1.msra.mxu0 %v2488
        %2844 = vmatprep.subr.mxu0 %v2491
        %2845 = vmatpush1.msra.mxu0 %v2490
        %2846 = vmatprep.subr.mxu0 %v2493
        %2847 = vmatpush1.msra.mxu0 %v2492
        %2848 = vmatprep.subr.mxu0 0.0
        %2849 = vmatpush1.msra.mxu0 0.0
        %2850 = vmatprep.subr.mxu0 0.0
        %2851 = vmatpush1.msra.mxu0 0.0
        %2852 = vmatprep.subr.mxu0 0.0
        %2853 = vmatpush1.msra.mxu0 0.0
        %2854 = vmatprep.subr.mxu0 0.0
        %2855 = vmatpush1.msra.mxu0 0.0
        %2856 = vmatprep.subr.mxu0 0.0
        %2857 = vmatpush1.msra.mxu0 0.0
        %2858 = vmatprep.subr.mxu0 0.0
        %2859 = vmatpush1.msra.mxu0 0.0
        %2860 = vmatprep.subr.mxu0 0.0
        %2861 = vmatpush1.msra.mxu0 0.0
        %2862 = vmatprep.subr.mxu0 0.0
        %2863 = vmatpush1.msra.mxu0 0.0
        %2864 = vmatprep.subr.mxu0 0.0
        %2865 = vmatpush1.msra.mxu0 0.0
        %2866 = vmatprep.subr.mxu0 0.0
        %2867 = vmatpush1.msra.mxu0 0.0
        %2868 = vmatprep.subr.mxu0 0.0
        %2869 = vmatpush1.msra.mxu0 0.0
        %2870 = vmatprep.subr.mxu0 0.0
        %2871 = vmatpush1.msra.mxu0 0.0
        %2872 = vmatprep.subr.mxu0 0.0
        %2873 = vmatpush1.msra.mxu0 0.0
        %2874 = vmatprep.subr.mxu0 0.0
        %2875 = vmatpush1.msra.mxu0 0.0
        %2876 = vmatprep.subr.mxu0 0.0
        %2877 = vmatpush1.msra.mxu0 0.0
        %2878 = vmatprep.subr.mxu0 0.0
        %2879 = vmatpush1.msra.mxu0 0.0
        %2880 = vmatprep.mubr.f32.mxu0 0.0
        %2881 = vmatmul.mubr.f32.gmra.mrb[0].mxu0 %v2258
        %v2882 = vpop.f32.mrb[0].mxu0
        %v2883 = vadd.f32 %v2722, %v2882
        %v2884 = vpop.f32.mrb[0].mxu0
        %v2885 = vadd.f32 %v2724, %v2884
        %2886 = vmatprep.mubr.f32.mxu0 0.0
        %2887 = vmatmul.mubr.f32.gmra.mrb[0].mxu0 %v2263
        %v2888 = vpop.f32.mrb[0].mxu0
        %v2889 = vadd.f32 %v2728, %v2888
        %v2890 = vpop.f32.mrb[0].mxu0
        %v2891 = vadd.f32 %v2730, %v2890
        %2892 = vmatprep.mubr.f32.mxu0 0.0
        %2893 = vmatmul.mubr.f32.gmra.mrb[0].mxu0 %v2268
        %v2894 = vpop.f32.mrb[0].mxu0
        %v2895 = vadd.f32 %v2734, %v2894
        %v2896 = vpop.f32.mrb[0].mxu0
        %v2897 = vadd.f32 %v2736, %v2896
        %2898 = vmatprep.mubr.f32.mxu0 0.0
        %2899 = vmatmul.mubr.f32.gmra.mrb[0].mxu0 %v2273
        %v2900 = vpop.f32.mrb[0].mxu0
        %v2901 = vadd.f32 %v2740, %v2900
        %v2902 = vpop.f32.mrb[0].mxu0
        %v2903 = vadd.f32 %v2742, %v2902
        %2904 = vmatprep.mubr.f32.mxu0 0.0
        %2905 = vmatmul.mubr.f32.gmra.mrb[0].mxu0 %v2278
        %v2906 = vpop.f32.mrb[0].mxu0
        %v2907 = vadd.f32 %v2746, %v2906
        %v2908 = vpop.f32.mrb[0].mxu0
        %v2909 = vadd.f32 %v2748, %v2908
        %2910 = vmatprep.mubr.f32.mxu0 0.0
        %2911 = vmatmul.mubr.f32.gmra.mrb[0].mxu0 %v2283
        %v2912 = vpop.f32.mrb[0].mxu0
        %v2913 = vadd.f32 %v2752, %v2912
        %v2914 = vpop.f32.mrb[0].mxu0
        %v2915 = vadd.f32 %v2754, %v2914
        %2916 = vmatprep.mubr.f32.mxu0 0.0
        %2917 = vmatmul.mubr.f32.gmra.mrb[0].mxu0 %v2288
        %v2918 = vpop.f32.mrb[0].mxu0
        %v2919 = vadd.f32 %v2758, %v2918
        %v2920 = vpop.f32.mrb[0].mxu0
        %v2921 = vadd.f32 %v2760, %v2920
        %2922 = vmatprep.mubr.f32.mxu0 0.0
        %2923 = vmatmul.mubr.f32.gmra.mrb[0].mxu0 %v2293
        %v2924 = vpop.f32.mrb[0].mxu0
        %v2925 = vadd.f32 %v2764, %v2924
        %v2926 = vpop.f32.mrb[0].mxu0
        %v2927 = vadd.f32 %v2766, %v2926
        %2928 = vmatprep.mubr.f32.mxu0 0.0
        %2929 = vmatmul.mubr.f32.gmra.mrb[0].mxu0 %v2298
        %v2930 = vpop.f32.mrb[0].mxu0
        %v2931 = vadd.f32 %v2770, %v2930
        %v2932 = vpop.f32.mrb[0].mxu0
        %v2933 = vadd.f32 %v2772, %v2932
        %2934 = vmatprep.mubr.f32.mxu0 0.0
        %2935 = vmatmul.mubr.f32.gmra.mrb[0].mxu0 %v2303
        %v2936 = vpop.f32.mrb[0].mxu0
        %v2937 = vadd.f32 %v2776, %v2936
        %v2938 = vpop.f32.mrb[0].mxu0
        %v2939 = vadd.f32 %v2778, %v2938
        %2940 = vmatprep.mubr.f32.mxu0 0.0
        %2941 = vmatmul.mubr.f32.gmra.mrb[0].mxu0 %v2308
        %v2942 = vpop.f32.mrb[0].mxu0
        %v2943 = vadd.f32 %v2782, %v2942
        %v2944 = vpop.f32.mrb[0].mxu0
        %v2945 = vadd.f32 %v2784, %v2944
        %2946 = vmatprep.mubr.f32.mxu0 0.0
        %2947 = vmatmul.mubr.f32.gmra.mrb[0].mxu0 %v2313
        %v2948 = vpop.f32.mrb[0].mxu0
        %v2949 = vadd.f32 %v2788, %v2948
        %v2950 = vpop.f32.mrb[0].mxu0
        %v2951 = vadd.f32 %v2790, %v2950
        %2952 = vmatprep.mubr.f32.mxu0 0.0
        %2953 = vmatmul.mubr.f32.gmra.mrb[0].mxu0 %v2318
        %v2954 = vpop.f32.mrb[0].mxu0
        %v2955 = vadd.f32 %v2794, %v2954
        %v2956 = vpop.f32.mrb[0].mxu0
        %v2957 = vadd.f32 %v2796, %v2956
        %2958 = vmatprep.mubr.f32.mxu0 0.0
        %2959 = vmatmul.mubr.f32.gmra.mrb[0].mxu0 %v2323
        %v2960 = vpop.f32.mrb[0].mxu0
        %v2961 = vadd.f32 %v2800, %v2960
        %v2962 = vpop.f32.mrb[0].mxu0
        %v2963 = vadd.f32 %v2802, %v2962
        %2964 = vmatprep.mubr.f32.mxu0 0.0
        %2965 = vmatmul.mubr.f32.gmra.mrb[0].mxu0 %v2328
        %v2966 = vpop.f32.mrb[0].mxu0
        %v2967 = vadd.f32 %v2806, %v2966
        %v2968 = vpop.f32.mrb[0].mxu0
        %v2969 = vadd.f32 %v2808, %v2968
        %2970 = vmatprep.mubr.f32.mxu0 0.0
        %2971 = vmatmul.mubr.f32.gmra.mrb[0].mxu0 %v2333
        %v2972 = vpop.f32.mrb[0].mxu0
        %v2973 = vadd.f32 %v2812, %v2972
        %v2974 = vpop.f32.mrb[0].mxu0
        %v2975 = vadd.f32 %v2814, %v2974
        %2976 = vdwg.mxu0
        %v2977 = vmax.f32 %v2883, %v2885
        %v2978 = vmax.f32 %v2889, %v2891
        %v2979 = vmax.f32 %v2895, %v2897
        %v2980 = vmax.f32 %v2901, %v2903
        %v2981 = vmax.f32 %v2907, %v2909
        %v2982 = vmax.f32 %v2913, %v2915
        %v2983 = vmax.f32 %v2919, %v2921
        %v2984 = vmax.f32 %v2925, %v2927
        %v2985 = vmax.f32 %v2931, %v2933
        %v2986 = vmax.f32 %v2937, %v2939
        %v2987 = vmax.f32 %v2943, %v2945
        %v2988 = vmax.f32 %v2949, %v2951
        %v2989 = vmax.f32 %v2955, %v2957
        %v2990 = vmax.f32 %v2961, %v2963
        %v2991 = vmax.f32 %v2967, %v2969
        %v2992 = vmax.f32 %v2973, %v2975
        %v2993 = vld [vmem:[%s4] sm:$0x1]
        %v2995 = vlaneseq
        %v2996 = vshrl.u32 %v2995, 7
        %v2997 = vsub.s32 0, %v2996
        %v2998 = vrot.slane %v2993, %v2997
        %v3000 = vadd.f32 %v2977, %v2998
        %v3001 = vadd.f32 %v2978, %v2998
        %v3002 = vadd.f32 %v2979, %v2998
        %v3003 = vadd.f32 %v2980, %v2998
        %v3004 = vadd.f32 %v2981, %v2998
        %v3005 = vadd.f32 %v2982, %v2998
        %v3006 = vadd.f32 %v2983, %v2998
        %v3007 = vadd.f32 %v2984, %v2998
        %v3008 = vadd.f32 %v2985, %v2998
        %v3009 = vadd.f32 %v2986, %v2998
        %v3010 = vadd.f32 %v2987, %v2998
        %v3011 = vadd.f32 %v2988, %v2998
        %v3012 = vadd.f32 %v2989, %v2998
        %v3013 = vadd.f32 %v2990, %v2998
        %v3014 = vadd.f32 %v2991, %v2998
        %v3015 = vadd.f32 %v2992, %v2998
        %v3016 = vmax.f32 %v3000, 0.0
        %v3017 = vmax.f32 %v3001, 0.0
        %v3018 = vmax.f32 %v3002, 0.0
        %v3019 = vmax.f32 %v3003, 0.0
        %v3020 = vmax.f32 %v3004, 0.0
        %v3021 = vmax.f32 %v3005, 0.0
        %v3022 = vmax.f32 %v3006, 0.0
        %v3023 = vmax.f32 %v3007, 0.0
        %v3024 = vmax.f32 %v3008, 0.0
        %v3025 = vmax.f32 %v3009, 0.0
        %v3026 = vmax.f32 %v3010, 0.0
        %v3027 = vmax.f32 %v3011, 0.0
        %v3028 = vmax.f32 %v3012, 0.0
        %v3029 = vmax.f32 %v3013, 0.0
        %v3030 = vmax.f32 %v3014, 0.0
        %v3031 = vmax.f32 %v3015, 0.0
        %3032 = vst [vmem:[#allocation7] sm:$0xff] %v3016
        %3033 = vst [vmem:[#allocation7 + $0x8] sm:$0xff] %v3017
        %3034 = vst [vmem:[#allocation7 + $0x10] sm:$0xff] %v3018
        %3035 = vst [vmem:[#allocation7 + $0x18] sm:$0xff] %v3019
        %3036 = vst [vmem:[#allocation7 + $0x20] sm:$0xff] %v3020
        %3037 = vst [vmem:[#allocation7 + $0x28] sm:$0xff] %v3021
        %3038 = vst [vmem:[#allocation7 + $0x30] sm:$0xff] %v3022
        %3039 = vst [vmem:[#allocation7 + $0x38] sm:$0xff] %v3023
        %3040 = vst [vmem:[#allocation7 + $0x40] sm:$0xff] %v3024
        %3041 = vst [vmem:[#allocation7 + $0x48] sm:$0xff] %v3025
        %3042 = vst [vmem:[#allocation7 + $0x50] sm:$0xff] %v3026
        %3043 = vst [vmem:[#allocation7 + $0x58] sm:$0xff] %v3027
        %3044 = vst [vmem:[#allocation7 + $0x60] sm:$0xff] %v3028
        %3045 = vst [vmem:[#allocation7 + $0x68] sm:$0xff] %v3029
        %3046 = vst [vmem:[#allocation7 + $0x70] sm:$0xff] %v3030
        %3047 = vst [vmem:[#allocation7 + $0x78] sm:$0xff] %v3031
        %v3048 = vld [vmem:[#allocation7] ss:$2 sm:$0xff]
        %s3049 = scalar_lea.vmem [#allocation7], 16
        %v3050 = vld [vmem:[%s3049] ss:$2 sm:$0xff]
        %s3051 = scalar_lea.vmem [#allocation7], 32
        %v3052 = vld [vmem:[%s3051] ss:$2 sm:$0xff]
        %s3053 = scalar_lea.vmem [#allocation7], 48
        %v3054 = vld [vmem:[%s3053] ss:$2 sm:$0xff]
        %s3055 = scalar_lea.vmem [#allocation7], 64
        %v3056 = vld [vmem:[%s3055] ss:$2 sm:$0xff]
        %s3057 = scalar_lea.vmem [#allocation7], 80
        %v3058 = vld [vmem:[%s3057] ss:$2 sm:$0xff]
        %s3059 = scalar_lea.vmem [#allocation7], 96
        %v3060 = vld [vmem:[%s3059] ss:$2 sm:$0xff]
        %s3061 = scalar_lea.vmem [#allocation7], 112
        %v3062 = vld [vmem:[%s3061] ss:$2 sm:$0xff]
        %s3063 = scalar_lea.vmem [#allocation7], 1
        %v3064 = vld [vmem:[%s3063] ss:$2 sm:$0xff]
        %s3065 = scalar_lea.vmem [#allocation7], 17
        %v3066 = vld [vmem:[%s3065] ss:$2 sm:$0xff]
        %s3067 = scalar_lea.vmem [#allocation7], 33
        %v3068 = vld [vmem:[%s3067] ss:$2 sm:$0xff]
        %s3069 = scalar_lea.vmem [#allocation7], 49
        %v3070 = vld [vmem:[%s3069] ss:$2 sm:$0xff]
        %s3071 = scalar_lea.vmem [#allocation7], 65
        %v3072 = vld [vmem:[%s3071] ss:$2 sm:$0xff]
        %s3073 = scalar_lea.vmem [#allocation7], 81
        %v3074 = vld [vmem:[%s3073] ss:$2 sm:$0xff]
        %s3075 = scalar_lea.vmem [#allocation7], 97
        %v3076 = vld [vmem:[%s3075] ss:$2 sm:$0xff]
        %s3077 = scalar_lea.vmem [#allocation7], 113
        %v3078 = vld [vmem:[%s3077] ss:$2 sm:$0xff]
        %v3079 = vmax.f32 %v3048, %v3064
        %v3080 = vmax.f32 %v3050, %v3066
        %v3081 = vmax.f32 %v3052, %v3068
        %v3082 = vmax.f32 %v3054, %v3070
        %v3083 = vmax.f32 %v3056, %v3072
        %v3084 = vmax.f32 %v3058, %v3074
        %v3085 = vmax.f32 %v3060, %v3076
        %v3086 = vmax.f32 %v3062, %v3078
        %3087 = vst [vmem:[#allocation8] sm:$0xff] %v3079
        %3088 = vst [vmem:[#allocation8 + $0x8] sm:$0xff] %v3080
        %3089 = vst [vmem:[#allocation8 + $0x10] sm:$0xff] %v3081
        %3090 = vst [vmem:[#allocation8 + $0x18] sm:$0xff] %v3082
        %3091 = vst [vmem:[#allocation8 + $0x20] sm:$0xff] %v3083
        %3092 = vst [vmem:[#allocation8 + $0x28] sm:$0xff] %v3084
        %3093 = vst [vmem:[#allocation8 + $0x30] sm:$0xff] %v3085
        %3094 = vst [vmem:[#allocation8 + $0x38] sm:$0xff] %v3086
        %v3095 = vld [vmem:[#allocation8] ss:$8 sm:$0xf]
        %v3096 = vld [vmem:[#allocation8] ss:$8 sm:$0xf0]
        %v3097 = vor.u32 %v3095, %v3096
        %3098 = vst [vmem:[#allocation9] sm:$0xff] %v3097
        %s3099 = scalar_lea.vmem [#allocation8], 1
        %v3100 = vld [vmem:[%s3099] ss:$8 sm:$0xf]
        %v3101 = vld [vmem:[%s3099] ss:$8 sm:$0xf0]
        %v3102 = vor.u32 %v3100, %v3101
        %3103 = vst [vmem:[#allocation9 + $0x8] sm:$0xff] %v3102
        %s3104 = scalar_lea.vmem [#allocation8], 2
        %v3105 = vld [vmem:[%s3104] ss:$8 sm:$0xf]
        %v3106 = vld [vmem:[%s3104] ss:$8 sm:$0xf0]
        %v3107 = vor.u32 %v3105, %v3106
        %3108 = vst [vmem:[#allocation9 + $0x10] sm:$0xff] %v3107
        %s3109 = scalar_lea.vmem [#allocation8], 3
        %v3110 = vld [vmem:[%s3109] ss:$8 sm:$0xf]
        %v3111 = vld [vmem:[%s3109] ss:$8 sm:$0xf0]
        %v3112 = vor.u32 %v3110, %v3111
        %3113 = vst [vmem:[#allocation9 + $0x18] sm:$0xff] %v3112
        %s3114 = scalar_lea.vmem [#allocation8], 4
        %v3115 = vld [vmem:[%s3114] ss:$8 sm:$0xf]
        %v3116 = vld [vmem:[%s3114] ss:$8 sm:$0xf0]
        %v3117 = vor.u32 %v3115, %v3116
        %3118 = vst [vmem:[#allocation9 + $0x20] sm:$0xff] %v3117
        %v3119 = vld [vmem:[#allocation9] sm:$0xff]
        %v3120 = vld [vmem:[#allocation9 + $0x8] sm:$0xff]
        %v3121 = vld [vmem:[#allocation9 + $0x10] sm:$0xff]
        %v3122 = vld [vmem:[#allocation9 + $0x18] sm:$0xff]
        %v3123 = vld [vmem:[#allocation9 + $0x20] sm:$0xff]
        %v3124 = vld [vmem:[%s5] sm:$0xff]
        %v3125 = vld [vmem:[%s5 + $0x8] sm:$0xff]
        %v3126 = vld [vmem:[%s5 + $0x10] sm:$0xff]
        %v3127 = vld [vmem:[%s5 + $0x18] sm:$0xff]
        %v3128 = vld [vmem:[%s5 + $0x20] sm:$0xff]
        %v3129 = vld [vmem:[%s5 + $0x28] sm:$0xff]
        %v3130 = vld [vmem:[%s5 + $0x30] sm:$0xff]
        %v3131 = vld [vmem:[%s5 + $0x38] sm:$0xff]
        %v3132 = vld [vmem:[%s5 + $0x40] sm:$0xff]
        %v3133 = vld [vmem:[%s5 + $0x48] sm:$0xff]
        %v3134 = vld [vmem:[%s5 + $0x50] sm:$0xff]
        %v3135 = vld [vmem:[%s5 + $0x58] sm:$0xff]
        %v3136 = vld [vmem:[%s5 + $0x60] sm:$0xff]
        %v3137 = vld [vmem:[%s5 + $0x68] sm:$0xff]
        %v3138 = vld [vmem:[%s5 + $0x70] sm:$0xff]
        %v3139 = vld [vmem:[%s5 + $0x78] sm:$0xff]
        %v3140 = vld [vmem:[%s5 + $0x80] sm:$0xff]
        %v3141 = vld [vmem:[%s5 + $0x88] sm:$0xff]
        %v3142 = vld [vmem:[%s5 + $0x90] sm:$0xff]
        %v3143 = vld [vmem:[%s5 + $0x98] sm:$0xff]
        %v3144 = vld [vmem:[%s5 + $0xa0] sm:$0xff]
        %v3145 = vld [vmem:[%s5 + $0xa8] sm:$0xff]
        %v3146 = vld [vmem:[%s5 + $0xb0] sm:$0xff]
        %v3147 = vld [vmem:[%s5 + $0xb8] sm:$0xff]
        %v3148 = vld [vmem:[%s5 + $0xc0] sm:$0xff]
        %v3149 = vld [vmem:[%s5 + $0xc8] sm:$0xff]
        %v3150 = vld [vmem:[%s5 + $0xd0] sm:$0xff]
        %v3151 = vld [vmem:[%s5 + $0xd8] sm:$0xff]
        %v3152 = vld [vmem:[%s5 + $0xe0] sm:$0xff]
        %v3153 = vld [vmem:[%s5 + $0xe8] sm:$0xff]
        %v3154 = vld [vmem:[%s5 + $0xf0] sm:$0xff]
        %v3155 = vld [vmem:[%s5 + $0xf8] sm:$0xff]
        %v3156 = vld [vmem:[%s5 + $0x100] sm:$0xff]
        %v3157 = vld [vmem:[%s5 + $0x108] sm:$0xff]
        %v3158 = vld [vmem:[%s5 + $0x110] sm:$0xff]
        %v3159 = vld [vmem:[%s5 + $0x118] sm:$0xff]
        %v3160 = vld [vmem:[%s5 + $0x120] sm:$0xff]
        %v3161 = vld [vmem:[%s5 + $0x128] sm:$0xff]
        %v3162 = vld [vmem:[%s5 + $0x130] sm:$0xff]
        %v3163 = vld [vmem:[%s5 + $0x138] sm:$0xff]
        %v3164 = vld [vmem:[%s5 + $0x140] sm:$0xff]
        %v3165 = vld [vmem:[%s5 + $0x148] sm:$0xff]
        %v3166 = vld [vmem:[%s5 + $0x150] sm:$0xff]
        %v3167 = vld [vmem:[%s5 + $0x158] sm:$0xff]
        %v3168 = vld [vmem:[%s5 + $0x160] sm:$0xff]
        %v3169 = vld [vmem:[%s5 + $0x168] sm:$0xff]
        %v3170 = vld [vmem:[%s5 + $0x170] sm:$0xff]
        %v3171 = vld [vmem:[%s5 + $0x178] sm:$0xff]
        %v3172 = vld [vmem:[%s5 + $0x180] sm:$0xff]
        %v3173 = vld [vmem:[%s5 + $0x188] sm:$0xff]
        %v3174 = vld [vmem:[%s5 + $0x190] sm:$0xff]
        %v3175 = vld [vmem:[%s5 + $0x198] sm:$0xff]
        %v3176 = vld [vmem:[%s5 + $0x1a0] sm:$0xff]
        %v3177 = vld [vmem:[%s5 + $0x1a8] sm:$0xff]
        %v3178 = vld [vmem:[%s5 + $0x1b0] sm:$0xff]
        %v3179 = vld [vmem:[%s5 + $0x1b8] sm:$0xff]
        %v3180 = vld [vmem:[%s5 + $0x1c0] sm:$0xff]
        %v3181 = vld [vmem:[%s5 + $0x1c8] sm:$0xff]
        %v3182 = vld [vmem:[%s5 + $0x1d0] sm:$0xff]
        %v3183 = vld [vmem:[%s5 + $0x1d8] sm:$0xff]
        %v3184 = vld [vmem:[%s5 + $0x1e0] sm:$0xff]
        %v3185 = vld [vmem:[%s5 + $0x1e8] sm:$0xff]
        %v3186 = vld [vmem:[%s5 + $0x1f0] sm:$0xff]
        %v3187 = vld [vmem:[%s5 + $0x1f8] sm:$0xff]
        %v3188 = vld [vmem:[%s5 + $0x200] sm:$0xff]
        %v3189 = vld [vmem:[%s5 + $0x208] sm:$0xff]
        %v3190 = vld [vmem:[%s5 + $0x210] sm:$0xff]
        %v3191 = vld [vmem:[%s5 + $0x218] sm:$0xff]
        %v3192 = vld [vmem:[%s5 + $0x220] sm:$0xff]
        %v3193 = vld [vmem:[%s5 + $0x228] sm:$0xff]
        %v3194 = vld [vmem:[%s5 + $0x230] sm:$0xff]
        %v3195 = vld [vmem:[%s5 + $0x238] sm:$0xff]
        %v3196 = vld [vmem:[%s5 + $0x240] sm:$0xff]
        %v3197 = vld [vmem:[%s5 + $0x248] sm:$0xff]
        %v3198 = vld [vmem:[%s5 + $0x250] sm:$0xff]
        %v3199 = vld [vmem:[%s5 + $0x258] sm:$0xff]
        %v3200 = vld [vmem:[%s5 + $0x260] sm:$0xff]
        %v3201 = vld [vmem:[%s5 + $0x268] sm:$0xff]
        %v3202 = vld [vmem:[%s5 + $0x270] sm:$0xff]
        %v3203 = vld [vmem:[%s5 + $0x278] sm:$0xff]
        %v3204 = vld [vmem:[%s6] sm:$0x1]
        %v3206 = vlaneseq
        %v3207 = vshrl.u32 %v3206, 7
        %v3208 = vsub.s32 0, %v3207
        %v3209 = vrot.slane %v3204, %v3208
        %3211 = vmatprep.subr.mxu0 0.0
        %3212 = vmatpush1.msra.mxu0 %v3124
        %3213 = vmatprep.subr.mxu0 0.0
        %3214 = vmatpush1.msra.mxu0 %v3125
        %3215 = vmatprep.subr.mxu0 0.0
        %3216 = vmatpush1.msra.mxu0 %v3126
        %3217 = vmatprep.subr.mxu0 0.0
        %3218 = vmatpush1.msra.mxu0 %v3127
        %3219 = vmatprep.subr.mxu0 0.0
        %3220 = vmatpush1.msra.mxu0 %v3128
        %3221 = vmatprep.subr.mxu0 0.0
        %3222 = vmatpush1.msra.mxu0 %v3129
        %3223 = vmatprep.subr.mxu0 0.0
        %3224 = vmatpush1.msra.mxu0 %v3130
        %3225 = vmatprep.subr.mxu0 0.0
        %3226 = vmatpush1.msra.mxu0 %v3131
        %3227 = vmatprep.subr.mxu0 0.0
        %3228 = vmatpush1.msra.mxu0 %v3132
        %3229 = vmatprep.subr.mxu0 0.0
        %3230 = vmatpush1.msra.mxu0 %v3133
        %3231 = vmatprep.subr.mxu0 0.0
        %3232 = vmatpush1.msra.mxu0 %v3134
        %3233 = vmatprep.subr.mxu0 0.0
        %3234 = vmatpush1.msra.mxu0 %v3135
        %3235 = vmatprep.subr.mxu0 0.0
        %3236 = vmatpush1.msra.mxu0 %v3136
        %3237 = vmatprep.subr.mxu0 0.0
        %3238 = vmatpush1.msra.mxu0 %v3137
        %3239 = vmatprep.subr.mxu0 0.0
        %3240 = vmatpush1.msra.mxu0 %v3138
        %3241 = vmatprep.subr.mxu0 0.0
        %3242 = vmatpush1.msra.mxu0 %v3139
        %3243 = vmatprep.subr.mxu0 0.0
        %3244 = vmatpush1.msra.mxu0 %v3140
        %3245 = vmatprep.subr.mxu0 0.0
        %3246 = vmatpush1.msra.mxu0 %v3141
        %3247 = vmatprep.subr.mxu0 0.0
        %3248 = vmatpush1.msra.mxu0 %v3142
        %3249 = vmatprep.subr.mxu0 0.0
        %3250 = vmatpush1.msra.mxu0 %v3143
        %3251 = vmatprep.subr.mxu0 0.0
        %3252 = vmatpush1.msra.mxu0 %v3144
        %3253 = vmatprep.subr.mxu0 0.0
        %3254 = vmatpush1.msra.mxu0 %v3145
        %3255 = vmatprep.subr.mxu0 0.0
        %3256 = vmatpush1.msra.mxu0 %v3146
        %3257 = vmatprep.subr.mxu0 0.0
        %3258 = vmatpush1.msra.mxu0 %v3147
        %3259 = vmatprep.subr.mxu0 0.0
        %3260 = vmatpush1.msra.mxu0 %v3148
        %3261 = vmatprep.subr.mxu0 0.0
        %3262 = vmatpush1.msra.mxu0 %v3149
        %3263 = vmatprep.subr.mxu0 0.0
        %3264 = vmatpush1.msra.mxu0 %v3150
        %3265 = vmatprep.subr.mxu0 0.0
        %3266 = vmatpush1.msra.mxu0 %v3151
        %3267 = vmatprep.subr.mxu0 0.0
        %3268 = vmatpush1.msra.mxu0 %v3152
        %3269 = vmatprep.subr.mxu0 0.0
        %3270 = vmatpush1.msra.mxu0 %v3153
        %3271 = vmatprep.subr.mxu0 0.0
        %3272 = vmatpush1.msra.mxu0 %v3154
        %3273 = vmatprep.subr.mxu0 0.0
        %3274 = vmatpush1.msra.mxu0 %v3155
        %3275 = vmatprep.mubr.f32.mxu0 %v3120
        %3276 = vmatmul.mubr.f32.gmra.mrb[0].mxu0 %v3119
        %v3277 = vpop.f32.mrb[0].mxu0
        %v3278 = vadd.f32 %v3209, %v3277
        %v3279 = vpop.f32.mrb[0].mxu0
        %3280 = vdwg.mxu0
        %3281 = vmatprep.subr.mxu0 0.0
        %3282 = vmatpush1.msra.mxu0 %v3156
        %3283 = vmatprep.subr.mxu0 0.0
        %3284 = vmatpush1.msra.mxu0 %v3157
        %3285 = vmatprep.subr.mxu0 0.0
        %3286 = vmatpush1.msra.mxu0 %v3158
        %3287 = vmatprep.subr.mxu0 0.0
        %3288 = vmatpush1.msra.mxu0 %v3159
        %3289 = vmatprep.subr.mxu0 0.0
        %3290 = vmatpush1.msra.mxu0 %v3160
        %3291 = vmatprep.subr.mxu0 0.0
        %3292 = vmatpush1.msra.mxu0 %v3161
        %3293 = vmatprep.subr.mxu0 0.0
        %3294 = vmatpush1.msra.mxu0 %v3162
        %3295 = vmatprep.subr.mxu0 0.0
        %3296 = vmatpush1.msra.mxu0 %v3163
        %3297 = vmatprep.subr.mxu0 0.0
        %3298 = vmatpush1.msra.mxu0 %v3164
        %3299 = vmatprep.subr.mxu0 0.0
        %3300 = vmatpush1.msra.mxu0 %v3165
        %3301 = vmatprep.subr.mxu0 0.0
        %3302 = vmatpush1.msra.mxu0 %v3166
        %3303 = vmatprep.subr.mxu0 0.0
        %3304 = vmatpush1.msra.mxu0 %v3167
        %3305 = vmatprep.subr.mxu0 0.0
        %3306 = vmatpush1.msra.mxu0 %v3168
        %3307 = vmatprep.subr.mxu0 0.0
        %3308 = vmatpush1.msra.mxu0 %v3169
        %3309 = vmatprep.subr.mxu0 0.0
        %3310 = vmatpush1.msra.mxu0 %v3170
        %3311 = vmatprep.subr.mxu0 0.0
        %3312 = vmatpush1.msra.mxu0 %v3171
        %3313 = vmatprep.subr.mxu0 0.0
        %3314 = vmatpush1.msra.mxu0 %v3172
        %3315 = vmatprep.subr.mxu0 0.0
        %3316 = vmatpush1.msra.mxu0 %v3173
        %3317 = vmatprep.subr.mxu0 0.0
        %3318 = vmatpush1.msra.mxu0 %v3174
        %3319 = vmatprep.subr.mxu0 0.0
        %3320 = vmatpush1.msra.mxu0 %v3175
        %3321 = vmatprep.subr.mxu0 0.0
        %3322 = vmatpush1.msra.mxu0 %v3176
        %3323 = vmatprep.subr.mxu0 0.0
        %3324 = vmatpush1.msra.mxu0 %v3177
        %3325 = vmatprep.subr.mxu0 0.0
        %3326 = vmatpush1.msra.mxu0 %v3178
        %3327 = vmatprep.subr.mxu0 0.0
        %3328 = vmatpush1.msra.mxu0 %v3179
        %3329 = vmatprep.subr.mxu0 0.0
        %3330 = vmatpush1.msra.mxu0 %v3180
        %3331 = vmatprep.subr.mxu0 0.0
        %3332 = vmatpush1.msra.mxu0 %v3181
        %3333 = vmatprep.subr.mxu0 0.0
        %3334 = vmatpush1.msra.mxu0 %v3182
        %3335 = vmatprep.subr.mxu0 0.0
        %3336 = vmatpush1.msra.mxu0 %v3183
        %3337 = vmatprep.subr.mxu0 0.0
        %3338 = vmatpush1.msra.mxu0 %v3184
        %3339 = vmatprep.subr.mxu0 0.0
        %3340 = vmatpush1.msra.mxu0 %v3185
        %3341 = vmatprep.subr.mxu0 0.0
        %3342 = vmatpush1.msra.mxu0 %v3186
        %3343 = vmatprep.subr.mxu0 0.0
        %3344 = vmatpush1.msra.mxu0 %v3187
        %3345 = vmatprep.mubr.f32.mxu0 %v3122
        %3346 = vmatmul.mubr.f32.gmra.mrb[0].mxu0 %v3121
        %v3347 = vpop.f32.mrb[0].mxu0
        %v3348 = vadd.f32 %v3278, %v3347
        %v3349 = vpop.f32.mrb[0].mxu0
        %3350 = vdwg.mxu0
        %3351 = vmatprep.subr.mxu0 0.0
        %3352 = vmatpush1.msra.mxu0 %v3188
        %3353 = vmatprep.subr.mxu0 0.0
        %3354 = vmatpush1.msra.mxu0 %v3189
        %3355 = vmatprep.subr.mxu0 0.0
        %3356 = vmatpush1.msra.mxu0 %v3190
        %3357 = vmatprep.subr.mxu0 0.0
        %3358 = vmatpush1.msra.mxu0 %v3191
        %3359 = vmatprep.subr.mxu0 0.0
        %3360 = vmatpush1.msra.mxu0 %v3192
        %3361 = vmatprep.subr.mxu0 0.0
        %3362 = vmatpush1.msra.mxu0 %v3193
        %3363 = vmatprep.subr.mxu0 0.0
        %3364 = vmatpush1.msra.mxu0 %v3194
        %3365 = vmatprep.subr.mxu0 0.0
        %3366 = vmatpush1.msra.mxu0 %v3195
        %3367 = vmatprep.subr.mxu0 0.0
        %3368 = vmatpush1.msra.mxu0 %v3196
        %3369 = vmatprep.subr.mxu0 0.0
        %3370 = vmatpush1.msra.mxu0 %v3197
        %3371 = vmatprep.subr.mxu0 0.0
        %3372 = vmatpush1.msra.mxu0 %v3198
        %3373 = vmatprep.subr.mxu0 0.0
        %3374 = vmatpush1.msra.mxu0 %v3199
        %3375 = vmatprep.subr.mxu0 0.0
        %3376 = vmatpush1.msra.mxu0 %v3200
        %3377 = vmatprep.subr.mxu0 0.0
        %3378 = vmatpush1.msra.mxu0 %v3201
        %3379 = vmatprep.subr.mxu0 0.0
        %3380 = vmatpush1.msra.mxu0 %v3202
        %3381 = vmatprep.subr.mxu0 0.0
        %3382 = vmatpush1.msra.mxu0 %v3203
        %3383 = vmatprep.subr.mxu0 0.0
        %3384 = vmatpush1.msra.mxu0 0.0
        %3385 = vmatprep.subr.mxu0 0.0
        %3386 = vmatpush1.msra.mxu0 0.0
        %3387 = vmatprep.subr.mxu0 0.0
        %3388 = vmatpush1.msra.mxu0 0.0
        %3389 = vmatprep.subr.mxu0 0.0
        %3390 = vmatpush1.msra.mxu0 0.0
        %3391 = vmatprep.subr.mxu0 0.0
        %3392 = vmatpush1.msra.mxu0 0.0
        %3393 = vmatprep.subr.mxu0 0.0
        %3394 = vmatpush1.msra.mxu0 0.0
        %3395 = vmatprep.subr.mxu0 0.0
        %3396 = vmatpush1.msra.mxu0 0.0
        %3397 = vmatprep.subr.mxu0 0.0
        %3398 = vmatpush1.msra.mxu0 0.0
        %3399 = vmatprep.subr.mxu0 0.0
        %3400 = vmatpush1.msra.mxu0 0.0
        %3401 = vmatprep.subr.mxu0 0.0
        %3402 = vmatpush1.msra.mxu0 0.0
        %3403 = vmatprep.subr.mxu0 0.0
        %3404 = vmatpush1.msra.mxu0 0.0
        %3405 = vmatprep.subr.mxu0 0.0
        %3406 = vmatpush1.msra.mxu0 0.0
        %3407 = vmatprep.subr.mxu0 0.0
        %3408 = vmatpush1.msra.mxu0 0.0
        %3409 = vmatprep.subr.mxu0 0.0
        %3410 = vmatpush1.msra.mxu0 0.0
        %3411 = vmatprep.subr.mxu0 0.0
        %3412 = vmatpush1.msra.mxu0 0.0
        %3413 = vmatprep.subr.mxu0 0.0
        %3414 = vmatpush1.msra.mxu0 0.0
        %3415 = vmatprep.mubr.f32.mxu0 0.0
        %3416 = vmatmul.mubr.f32.gmra.mrb[0].mxu0 %v3123
        %v3417 = vpop.f32.mrb[0].mxu0
        %v3418 = vadd.f32 %v3348, %v3417
        %v3419 = vpop.f32.mrb[0].mxu0
        %3420 = vdwg.mxu0
        %v3421 = vmax.f32 %v3418, 0.0
        %v3422 = vld [vmem:[%s7] sm:$0xff]
        %v3423 = vld [vmem:[%s7 + $0x8] sm:$0xff]
        %v3424 = vld [vmem:[%s7 + $0x10] sm:$0xff]
        %v3425 = vld [vmem:[%s7 + $0x18] sm:$0xff]
        %v3426 = vld [vmem:[%s7 + $0x20] sm:$0xff]
        %v3427 = vld [vmem:[%s7 + $0x28] sm:$0xff]
        %v3428 = vld [vmem:[%s7 + $0x30] sm:$0xff]
        %v3429 = vld [vmem:[%s7 + $0x38] sm:$0xff]
        %v3430 = vld [vmem:[%s7 + $0x40] sm:$0xff]
        %v3431 = vld [vmem:[%s7 + $0x48] sm:$0xff]
        %v3432 = vld [vmem:[%s7 + $0x50] sm:$0xff]
        %v3433 = vld [vmem:[%s7 + $0x58] sm:$0xff]
        %v3434 = vld [vmem:[%s7 + $0x60] sm:$0xff]
        %v3435 = vld [vmem:[%s7 + $0x68] sm:$0xff]
        %v3436 = vld [vmem:[%s7 + $0x70] sm:$0xff]
        %v3437 = vld [vmem:[%s7 + $0x78] sm:$0xff]
        %v3438 = vld [vmem:[%s8] sm:$0x1]
        %v3440 = vlaneseq
        %v3441 = vshrl.u32 %v3440, 7
        %v3442 = vsub.s32 0, %v3441
        %v3443 = vrot.slane %v3438, %v3442
        %3445 = vmatprep.subr.mxu0 0.0
        %3446 = vmatpush1.msra.mxu0 %v3422
        %3447 = vmatprep.subr.mxu0 0.0
        %3448 = vmatpush1.msra.mxu0 %v3423
        %3449 = vmatprep.subr.mxu0 0.0
        %3450 = vmatpush1.msra.mxu0 %v3424
        %3451 = vmatprep.subr.mxu0 0.0
        %3452 = vmatpush1.msra.mxu0 %v3425
        %3453 = vmatprep.subr.mxu0 0.0
        %3454 = vmatpush1.msra.mxu0 %v3426
        %3455 = vmatprep.subr.mxu0 0.0
        %3456 = vmatpush1.msra.mxu0 %v3427
        %3457 = vmatprep.subr.mxu0 0.0
        %3458 = vmatpush1.msra.mxu0 %v3428
        %3459 = vmatprep.subr.mxu0 0.0
        %3460 = vmatpush1.msra.mxu0 %v3429
        %3461 = vmatprep.subr.mxu0 0.0
        %3462 = vmatpush1.msra.mxu0 %v3430
        %3463 = vmatprep.subr.mxu0 0.0
        %3464 = vmatpush1.msra.mxu0 %v3431
        %3465 = vmatprep.subr.mxu0 0.0
        %3466 = vmatpush1.msra.mxu0 %v3432
        %3467 = vmatprep.subr.mxu0 0.0
        %3468 = vmatpush1.msra.mxu0 %v3433
        %3469 = vmatprep.subr.mxu0 0.0
        %3470 = vmatpush1.msra.mxu0 %v3434
        %3471 = vmatprep.subr.mxu0 0.0
        %3472 = vmatpush1.msra.mxu0 %v3435
        %3473 = vmatprep.subr.mxu0 0.0
        %3474 = vmatpush1.msra.mxu0 %v3436
        %3475 = vmatprep.subr.mxu0 0.0
        %3476 = vmatpush1.msra.mxu0 %v3437
        %3477 = vmatprep.subr.mxu0 0.0
        %3478 = vmatpush1.msra.mxu0 0.0
        %3479 = vmatprep.subr.mxu0 0.0
        %3480 = vmatpush1.msra.mxu0 0.0
        %3481 = vmatprep.subr.mxu0 0.0
        %3482 = vmatpush1.msra.mxu0 0.0
        %3483 = vmatprep.subr.mxu0 0.0
        %3484 = vmatpush1.msra.mxu0 0.0
        %3485 = vmatprep.subr.mxu0 0.0
        %3486 = vmatpush1.msra.mxu0 0.0
        %3487 = vmatprep.subr.mxu0 0.0
        %3488 = vmatpush1.msra.mxu0 0.0
        %3489 = vmatprep.subr.mxu0 0.0
        %3490 = vmatpush1.msra.mxu0 0.0
        %3491 = vmatprep.subr.mxu0 0.0
        %3492 = vmatpush1.msra.mxu0 0.0
        %3493 = vmatprep.subr.mxu0 0.0
        %3494 = vmatpush1.msra.mxu0 0.0
        %3495 = vmatprep.subr.mxu0 0.0
        %3496 = vmatpush1.msra.mxu0 0.0
        %3497 = vmatprep.subr.mxu0 0.0
        %3498 = vmatpush1.msra.mxu0 0.0
        %3499 = vmatprep.subr.mxu0 0.0
        %3500 = vmatpush1.msra.mxu0 0.0
        %3501 = vmatprep.subr.mxu0 0.0
        %3502 = vmatpush1.msra.mxu0 0.0
        %3503 = vmatprep.subr.mxu0 0.0
        %3504 = vmatpush1.msra.mxu0 0.0
        %3505 = vmatprep.subr.mxu0 0.0
        %3506 = vmatpush1.msra.mxu0 0.0
        %3507 = vmatprep.subr.mxu0 0.0
        %3508 = vmatpush1.msra.mxu0 0.0
        %3509 = vmatprep.mubr.f32.mxu0 0.0
        %3510 = vmatmul.mubr.f32.gmra.mrb[0].mxu0 %v3421
        %v3511 = vpop.f32.mrb[0].mxu0
        %v3512 = vadd.f32 %v3443, %v3511
        %v3513 = vpop.f32.mrb[0].mxu0
        %3514 = vdwg.mxu0
        %v3515 = vmax.f32 %v3512, 0.0
        %v3516 = vld [vmem:[%s9] sm:$0xff]
        %v3517 = vld [vmem:[%s9 + $0x8] sm:$0xff]
        %v3518 = vld [vmem:[%s9 + $0x10] sm:$0xff]
        %v3519 = vld [vmem:[%s9 + $0x18] sm:$0xff]
        %v3520 = vld [vmem:[%s9 + $0x20] sm:$0xff]
        %v3521 = vld [vmem:[%s9 + $0x28] sm:$0xff]
        %v3522 = vld [vmem:[%s9 + $0x30] sm:$0xff]
        %v3523 = vld [vmem:[%s9 + $0x38] sm:$0xff]
        %v3524 = vld [vmem:[%s9 + $0x40] sm:$0xff]
        %v3525 = vld [vmem:[%s9 + $0x48] sm:$0xff]
        %v3526 = vld [vmem:[%s9 + $0x50] sm:$0xff]
        %v3527 = vld [vmem:[%s9 + $0x58] sm:$0xff]
        %v3528 = vld [vmem:[%s9 + $0x60] sm:$0xff]
        %v3529 = vld [vmem:[%s9 + $0x68] sm:$0xff]
        %v3530 = vld [vmem:[%s9 + $0x70] sm:$0xff]
        %v3531 = vld [vmem:[%s9 + $0x78] sm:$0xff]
        %v3532 = vld [vmem:[%s10] sm:$0x1]
        %v3534 = vlaneseq
        %v3535 = vshrl.u32 %v3534, 7
        %v3536 = vsub.s32 0, %v3535
        %v3537 = vrot.slane %v3532, %v3536
        %3539 = vmatprep.subr.mxu0 0.0
        %3540 = vmatpush1.msra.mxu0 %v3516
        %3541 = vmatprep.subr.mxu0 0.0
        %3542 = vmatpush1.msra.mxu0 %v3517
        %3543 = vmatprep.subr.mxu0 0.0
        %3544 = vmatpush1.msra.mxu0 %v3518
        %3545 = vmatprep.subr.mxu0 0.0
        %3546 = vmatpush1.msra.mxu0 %v3519
        %3547 = vmatprep.subr.mxu0 0.0
        %3548 = vmatpush1.msra.mxu0 %v3520
        %3549 = vmatprep.subr.mxu0 0.0
        %3550 = vmatpush1.msra.mxu0 %v3521
        %3551 = vmatprep.subr.mxu0 0.0
        %3552 = vmatpush1.msra.mxu0 %v3522
        %3553 = vmatprep.subr.mxu0 0.0
        %3554 = vmatpush1.msra.mxu0 %v3523
        %3555 = vmatprep.subr.mxu0 0.0
        %3556 = vmatpush1.msra.mxu0 %v3524
        %3557 = vmatprep.subr.mxu0 0.0
        %3558 = vmatpush1.msra.mxu0 %v3525
        %3559 = vmatprep.subr.mxu0 0.0
        %3560 = vmatpush1.msra.mxu0 %v3526
        %3561 = vmatprep.subr.mxu0 0.0
        %3562 = vmatpush1.msra.mxu0 %v3527
        %3563 = vmatprep.subr.mxu0 0.0
        %3564 = vmatpush1.msra.mxu0 %v3528
        %3565 = vmatprep.subr.mxu0 0.0
        %3566 = vmatpush1.msra.mxu0 %v3529
        %3567 = vmatprep.subr.mxu0 0.0
        %3568 = vmatpush1.msra.mxu0 %v3530
        %3569 = vmatprep.subr.mxu0 0.0
        %3570 = vmatpush1.msra.mxu0 %v3531
        %3571 = vmatprep.subr.mxu0 0.0
        %3572 = vmatpush1.msra.mxu0 0.0
        %3573 = vmatprep.subr.mxu0 0.0
        %3574 = vmatpush1.msra.mxu0 0.0
        %3575 = vmatprep.subr.mxu0 0.0
        %3576 = vmatpush1.msra.mxu0 0.0
        %3577 = vmatprep.subr.mxu0 0.0
        %3578 = vmatpush1.msra.mxu0 0.0
        %3579 = vmatprep.subr.mxu0 0.0
        %3580 = vmatpush1.msra.mxu0 0.0
        %3581 = vmatprep.subr.mxu0 0.0
        %3582 = vmatpush1.msra.mxu0 0.0
        %3583 = vmatprep.subr.mxu0 0.0
        %3584 = vmatpush1.msra.mxu0 0.0
        %3585 = vmatprep.subr.mxu0 0.0
        %3586 = vmatpush1.msra.mxu0 0.0
        %3587 = vmatprep.subr.mxu0 0.0
        %3588 = vmatpush1.msra.mxu0 0.0
        %3589 = vmatprep.subr.mxu0 0.0
        %3590 = vmatpush1.msra.mxu0 0.0
        %3591 = vmatprep.subr.mxu0 0.0
        %3592 = vmatpush1.msra.mxu0 0.0
        %3593 = vmatprep.subr.mxu0 0.0
        %3594 = vmatpush1.msra.mxu0 0.0
        %3595 = vmatprep.subr.mxu0 0.0
        %3596 = vmatpush1.msra.mxu0 0.0
        %3597 = vmatprep.subr.mxu0 0.0
        %3598 = vmatpush1.msra.mxu0 0.0
        %3599 = vmatprep.subr.mxu0 0.0
        %3600 = vmatpush1.msra.mxu0 0.0
        %3601 = vmatprep.subr.mxu0 0.0
        %3602 = vmatpush1.msra.mxu0 0.0
        %3603 = vmatprep.mubr.f32.mxu0 0.0
        %3604 = vmatmul.mubr.f32.gmra.mrb[0].mxu0 %v3515
        %v3605 = vpop.f32.mrb[0].mxu0
        %v3606 = vadd.f32 %v3537, %v3605
        %v3607 = vpop.f32.mrb[0].mxu0
        %3608 = vdwg.mxu0
        %3609 = vst [vmem:[%s380] sm:$0xff] %v3606
        %s3610 = sand.u32 %s269, 1
        %s3611 = scalar_lea.sflag [#allocation11], %s3610
        %s3612 = sand.u32 %s269, 1
        %s3613 = smul.addr %s3612, 8
        %s3614 = scalar_lea.vmem [#allocation10], %s3613
        // Predicated region
        $region65: #{simple_conv3d_forward.1} parent=63 // pred_check
          %p3615 = pneg %p279
        $region66: #{simple_conv3d_forward.1} parent=63 // pred_check_branch
          %3617 = sbr.rel (%p3615) target = $region68
        $region67: #{simple_conv3d_forward.1} parent=63 // pred_region
          %s3619 = ssub.s32 128, 128
          %3620 = vsyncadd %s3611, %s3619
          %s3621 = smul.addr %s25, 128
          %s3622 = scalar_lea.hbm %s11, %s3621
          %s3624 = sshll.u32 %s3614, 4
          %s3625 = int_to_ptr.vmem [resolvable:$true] %s3624
          %3627 = dma.vmem_to_hbm [thread:$0]  %s3625, 128, %s3622, %s3611
        $region68: #{simple_conv3d_forward.1} parent=63 // pred_fallthru
          _
      $region64: #{simple_conv3d_forward.1} parent=5 // pred_fallthru
        _
      %p3628 = scmp.le.s32.totalorder 2, %s20
      // Predicated region
      $region69: #{simple_conv3d_forward.1} parent=5 // pred_check
        %p3629 = pneg %p3628
      $region70: #{simple_conv3d_forward.1} parent=5 // pred_check_branch
        %3631 = sbr.rel (%p3629) target = $region72
      $region71: #{simple_conv3d_forward.1} parent=5 // pred_region
        %s3632 = ssub.s32 %s20, 2
        // Predicated region
        $region73: #{simple_conv3d_forward.1} parent=71 // pred_check
          %p3633 = pneg %p285
        $region74: #{simple_conv3d_forward.1} parent=71 // pred_check_branch
          %3635 = sbr.rel (%p3633) target = $region76
        $region75: #{simple_conv3d_forward.1} parent=71 // pred_region
          %s3636 = sand.u32 %s270, 1
          %s3637 = scalar_lea.sflag [#allocation11], %s3636
          %s3638 = sand.u32 %s270, 1
          %s3639 = smul.addr %s3638, 8
          %s3640 = scalar_lea.vmem [#allocation10], %s3639
          %3641 = dma.done %s3637, 128
        $region76: #{simple_conv3d_forward.1} parent=71 // pred_fallthru
          _
      $region72: #{simple_conv3d_forward.1} parent=5 // pred_fallthru
        _
    $region6: #{simple_conv3d_forward.1} parent=1 // loop_footer
      %s24 = sadd.s32 1, %s20
    $region7: #{simple_conv3d_forward.1} parent=1 // loop_footer_branch
      %19 = sbr.rel target = $region3
    $region8: #{simple_conv3d_forward.1} parent=1 // loop_exit
      _
    %3642 = vsyncpa [#allocation11], 1
    %s3643 = scalar_lea.sflag [#allocation11], 1
    %3644 = vsyncpa %s3643, 1

</llo_original>
